<compile_context>
chip_gen: v7x
topology: tpu7x:2x2x1
jax: 0.10.0
libtpu: 0.0.40
codegen_flags: <defaults>
</compile_context>

<pallas_src>
import functools

import jax
import jax.numpy as jnp
from jax.experimental import pallas as pl
from jax.experimental.pallas import tpu as pltpu


def _round_up(x, m):
    return (x + m - 1) // m * m


# ----------------------------------------------------------------------------
# Pallas kernel 1: fused  out = act((A @ B) * scale + shift)
# ----------------------------------------------------------------------------
def _mm_bn_act_kernel(a_ref, b_ref, ss_ref, o_ref, *, relu):
    acc = jnp.dot(a_ref[...], b_ref[...], preferred_element_type=jnp.float32)
    y = acc * ss_ref[0:1, :] + ss_ref[1:2, :]
    if relu:
        y = jnp.maximum(y, 0.0)
    o_ref[...] = y.astype(o_ref.dtype)


_K_SINGLE_SHOT_MAX = 2048   # max K for this model is 9 * 64 = 576
_TINY_M = 64                # below this, a pallas_call is pure overhead


def fused_matmul(a, b, ss, *, relu=False, out_dtype=jnp.float32):
    """out[M, N] = act((a[M,K] @ b[K,N]) * ss[0] + ss[1]).

    a: (M, K) bf16 patches; b: (K, N) bf16 weights (no padding);
    ss: (2, N) f32 (row 0 = scale, row 1 = shift).
    """
    M, K = a.shape
    Kb, N = b.shape
    assert K == Kb
    assert K <= _K_SINGLE_SHOT_MAX, "K-looped reduction not needed for this model"

    if M < _TINY_M:
        # Tiny-M fast path (image pooling branch etc.): XLA dot, no launch cost.
        y = jnp.dot(a, b, preferred_element_type=jnp.float32)
        y = y * ss[0] + ss[1]
        if relu:
            y = jnp.maximum(y, 0.0)
        return y.astype(out_dtype)

    # M tiling: always >= 2 blocks (v7x dual TensorCore), big tiles for big M.
    if M > 2048:
        tm = 1024
    elif M > 512:
        tm = 512
    else:
        tm = _round_up((M + 1) // 2, 16)
    grid_m = pl.cdiv(M, tm)   # partial edge block handled by Pallas; no A pad

    return pl.pallas_call(
        functools.partial(_mm_bn_act_kernel, relu=relu),
        out_shape=jax.ShapeDtypeStruct((M, N), out_dtype),
        grid_spec=pltpu.PrefetchScalarGridSpec(
            num_scalar_prefetch=0,
            grid=(grid_m,),
            in_specs=[
                pl.BlockSpec((tm, K), lambda i: (i, 0)),
                pl.BlockSpec((K, N), lambda i: (0, 0)),     # VMEM-resident
                pl.BlockSpec((2, N), lambda i: (0, 0)),     # merged scale/shift
            ],
            out_specs=pl.BlockSpec((tm, N), lambda i: (i, 0)),
        ),
        compiler_params=pltpu.CompilerParams(
            dimension_semantics=("parallel",)),
    )(a, b, ss)


# ----------------------------------------------------------------------------
# Pallas kernel 2: fused separable bilinear resize (align_corners=True)
#   height pass = 2-row lerp (lo/frac tables in SMEM), width pass = matmul.
# ----------------------------------------------------------------------------
def _bilinear_kernel(lo_ref, fr_ref, x_ref, aw_ref, o_ref, *, ty):
    h_in = x_ref.shape[0]
    y0 = pl.program_id(1) * ty
    aw = aw_ref[...]                                   # (Wo, W) f32
    for i in range(ty):                                # static unroll
        yi = y0 + i
        lo = lo_ref[yi]
        hi = jnp.minimum(lo + 1, h_in - 1)
        f = fr_ref[yi]
        r_lo = x_ref[lo].astype(jnp.float32)           # (W, C)
        r_hi = x_ref[hi].astype(jnp.float32)
        row = r_lo + (r_hi - r_lo) * f                 # height lerp
        out = jnp.dot(aw, row, preferred_element_type=jnp.float32)   # (Wo, C)
        o_ref[i] = out.astype(o_ref.dtype)


def _interp_coeffs(out_size, in_size):
    o = jnp.arange(out_size, dtype=jnp.float32)
    if out_size == 1 or in_size == 1:
        src = jnp.zeros_like(o)
    else:
        src = o * (in_size - 1) / (out_size - 1)
    lo = jnp.clip(jnp.floor(src).astype(jnp.int32), 0, in_size - 1)
    hi = jnp.clip(lo + 1, 0, in_size - 1)
    frac = src - lo.astype(jnp.float32)
    return lo, hi, frac


def _interp_matrix(out_size, in_size, dtype=jnp.float32):
    lo, hi, frac = _interp_coeffs(out_size, in_size)
    cols = jnp.arange(in_size, dtype=jnp.int32)[None, :]
    m = ((cols == lo[:, None]).astype(jnp.float32) * (1.0 - frac)[:, None]
         + (cols == hi[:, None]).astype(jnp.float32) * frac[:, None])
    return m.astype(dtype)


def bilinear_resize_nhwc(x, out_h, out_w, *, out_dtype=jnp.float32):
    """x: (B, H, W, C) -> (B, out_h, out_w, C), align_corners=True."""
    B, H, W, C = x.shape
    if (out_h, out_w) == (H, W):
        return x.astype(out_dtype)

    if H < 8 or W < 8:
        # Degenerate tiny source maps (toy resolutions): plain XLA lerp.
        lo_h, hi_h, f_h = _interp_coeffs(out_h, H)
        lo_w, hi_w, f_w = _interp_coeffs(out_w, W)
        xf = x.astype(jnp.float32)
        t = (jnp.take(xf, lo_h, axis=1) * (1.0 - f_h)[None, :, None, None]
             + jnp.take(xf, hi_h, axis=1) * f_h[None, :, None, None])
        y = (jnp.take(t, lo_w, axis=2) * (1.0 - f_w)[None, None, :, None]
             + jnp.take(t, hi_w, axis=2) * f_w[None, None, :, None])
        return y.astype(out_dtype)

    ty = 8
    gy = pl.cdiv(out_h, ty)
    yp = gy * ty
    lo_h, _, f_h = _interp_coeffs(out_h, H)
    if yp != out_h:   # pad row tables so the (discarded) tail reads stay safe
        lo_h = jnp.pad(lo_h, (0, yp - out_h))
        f_h = jnp.pad(f_h, (0, yp - out_h))
    aw = _interp_matrix(out_w, W, jnp.float32)           # (Wo, W)

    return pl.pallas_call(
        functools.partial(_bilinear_kernel, ty=ty),
        out_shape=jax.ShapeDtypeStruct((B, out_h, out_w, C), out_dtype),
        grid_spec=pltpu.PrefetchScalarGridSpec(
            num_scalar_prefetch=0,
            grid=(B, gy),
            in_specs=[
                pl.BlockSpec(memory_space=pltpu.MemorySpace.SMEM),   # lo rows
                pl.BlockSpec(memory_space=pltpu.MemorySpace.SMEM),   # frac rows
                pl.BlockSpec((None, H, W, C), lambda b, y: (b, 0, 0, 0)),
                pl.BlockSpec((out_w, W), lambda b, y: (0, 0)),
            ],
            out_specs=pl.BlockSpec((None, ty, out_w, C),
                                   lambda b, y: (b, y, 0, 0)),
        ),
        compiler_params=pltpu.CompilerParams(
            dimension_semantics=("parallel", "parallel")),
    )(lo_h, f_h, x.astype(jnp.bfloat16), aw)


# ----------------------------------------------------------------------------
# Model configuration (static)
# ----------------------------------------------------------------------------
NUM_CLASSES = 21
C_LOW = 24      # low-level backbone features
C_HIGH = 64     # high-level backbone features (output_stride=16)
C_ASPP = 32     # ASPP branch width
C_DEC_LOW = 16  # decoder low-level projection
C_DEC = 32      # decoder refinement width

# name -> (Cout, Cin, kh, kw)
LAYER_DEFS = {
    # backbone
    "b1": (16, 3, 3, 3), "b2": (C_LOW, 16, 3, 3),
    "b3": (32, C_LOW, 3, 3), "b4": (C_HIGH, 32, 3, 3),
    # ASPP
    "a1": (C_ASPP, C_HIGH, 1, 1), "a2": (C_ASPP, C_HIGH, 3, 3),
    "a3": (C_ASPP, C_HIGH, 3, 3), "a4": (C_ASPP, C_HIGH, 3, 3),
    "a5": (C_ASPP, C_HIGH, 1, 1), "aproj": (C_ASPP, 5 * C_ASPP, 1, 1),
    # decoder
    "dll": (C_DEC_LOW, C_LOW, 1, 1),
    "d1": (C_DEC, C_ASPP + C_DEC_LOW, 3, 3),
    "d2": (C_DEC, C_DEC, 3, 3),
    "h1": (NUM_CLASSES, C_DEC, 1, 1),
    "h2": (NUM_CLASSES, C_DEC, 1, 1),
}


def _bn_fold(c, idx):
    # eval-mode BN folded to scale/shift; deterministic, non-trivial affine.
    r = jnp.arange(c, dtype=jnp.float32)
    gamma = 1.0 + 0.1 * jnp.cos(r + idx)
    beta = 0.05 * jnp.sin(r + idx)
    mean = jnp.zeros((c,), jnp.float32)
    var = jnp.ones((c,), jnp.float32)
    eps = 1e-5
    scale = gamma / jnp.sqrt(var + eps)
    shift = beta - mean * scale
    return scale, shift


def make_params(key):
    """Weights pre-transposed to (K, Cout) bf16; BN folded to (2, Cout) f32."""
    params = {}
    for idx, (name, shp) in enumerate(sorted(LAYER_DEFS.items())):
        cout, cin, kh, kw = shp
        k = jax.random.fold_in(key, idx)
        fan_in = cin * kh * kw
        w = jax.random.normal(k, shp, jnp.float32) / jnp.sqrt(float(fan_in))
        if name in ("h1", "h2"):   # classifier heads: bias, no BN/ReLU
            scale = jnp.ones((cout,), jnp.float32)
            shift = 0.01 * jnp.arange(cout, dtype=jnp.float32)
        else:
            scale, shift = _bn_fold(cout, idx)
        # (Cout,Cin,kh,kw) -> (kh*kw*Cin, Cout); tap order (ki, kj) outer,
        # Cin inner, matching conv_bn_relu's patch construction.
        K = kh * kw * cin
        w_mat = jnp.transpose(w, (2, 3, 1, 0)).reshape(K, cout)
        params[name + "_w"] = w_mat.astype(jnp.bfloat16)
        params[name + "_ss"] = jnp.stack([scale, shift], axis=0)   # (2, Cout)
    return params


# ----------------------------------------------------------------------------
# Conv2d (im2col glue + fused Pallas matmul), folded BN + ReLU — NHWC
# ----------------------------------------------------------------------------
def conv_bn_relu(x, params, name, *, stride=1, padding=0, dilation=1,
                 relu=True, out_dtype=jnp.bfloat16, pre_padded=None):
    """x: (B, H, W, Cin) NHWC (already padded by `pre_padded` if given)."""
    cout, cin, kh, kw = LAYER_DEFS[name]
    B = x.shape[0]
    assert x.shape[3] == cin, (name, x.shape[3], cin)
    w = params[name + "_w"]     # (K, Cout) bf16
    ss = params[name + "_ss"]   # (2, Cout) f32

    xh = x.astype(jnp.bfloat16)
    if pre_padded is None:
        H, W = x.shape[1], x.shape[2]
        if padding:
            xh = jnp.pad(xh, ((0, 0), (padding, padding),
                              (padding, padding), (0, 0)))
        off = 0
    else:
        # caller shares one max-dilation-padded buffer across branches
        assert pre_padded >= padding
        H, W = x.shape[1] - 2 * pre_padded, x.shape[2] - 2 * pre_padded
        off = pre_padded - padding

    Hout = (H + 2 * padding - dilation * (kh - 1) - 1) // stride + 1
    Wout = (W + 2 * padding - dilation * (kw - 1) - 1) // stride + 1

    if kh == 1 and kw == 1 and stride == 1 and padding == 0 and pre_padded is None:
        patches = xh.reshape(B * H * W, cin)
    else:
        cols = []
        for i in range(kh):
            for j in range(kw):
                hs = off + i * dilation
                ws = off + j * dilation
                cols.append(xh[:, hs:hs + stride * (Hout - 1) + 1:stride,
                               ws:ws + stride * (Wout - 1) + 1:stride, :])
        patches = jnp.concatenate(cols, axis=-1).reshape(
            B * Hout * Wout, kh * kw * cin)

    y = fused_matmul(patches, w, ss, relu=relu, out_dtype=out_dtype)
    return y.reshape(B, Hout, Wout, cout)


# ----------------------------------------------------------------------------
# Forward pass (NHWC internally; NCHW at the module boundary)
# ----------------------------------------------------------------------------
def deeplab_forward(params, x):
    p = params
    B, _, H, W = x.shape
    xh = jnp.transpose(x, (0, 2, 3, 1)).astype(jnp.bfloat16)   # boundary -> NHWC

    # ---- backbone: (x_high @ stride16, low_level_feat @ stride4) ----
    h = conv_bn_relu(xh, p, "b1", stride=2, padding=1)
    low = conv_bn_relu(h, p, "b2", stride=2, padding=1)
    h = conv_bn_relu(low, p, "b3", stride=2, padding=1)
    h = conv_bn_relu(h, p, "b4", stride=2, padding=1)

    # ---- ASPP (output_stride=16 -> rates 1, 6, 12, 18 + image pooling) ----
    a1 = conv_bn_relu(h, p, "a1")
    MAXD = 18   # one shared padded buffer for all dilated branches
    h_pad = jnp.pad(h, ((0, 0), (MAXD, MAXD), (MAXD, MAXD), (0, 0)))
    a2 = conv_bn_relu(h_pad, p, "a2", padding=6, dilation=6, pre_padded=MAXD)
    a3 = conv_bn_relu(h_pad, p, "a3", padding=12, dilation=12, pre_padded=MAXD)
    a4 = conv_bn_relu(h_pad, p, "a4", padding=18, dilation=18, pre_padded=MAXD)
    gp = jnp.mean(h.astype(jnp.float32), axis=(1, 2), keepdims=True)
    a5 = conv_bn_relu(gp, p, "a5")
    a5 = jnp.broadcast_to(a5, (B, a1.shape[1], a1.shape[2], a5.shape[3]))
    cat = jnp.concatenate([a1, a2, a3, a4, a5], axis=-1)
    feature = conv_bn_relu(cat, p, "aproj")

    # ---- decoder: returns (x1, x2) ----
    ll = conv_bn_relu(low, p, "dll")
    feat_up = bilinear_resize_nhwc(feature, ll.shape[1], ll.shape[2],
                                   out_dtype=jnp.bfloat16)
    d = jnp.concatenate([feat_up, ll], axis=-1)
    d1 = conv_bn_relu(d, p, "d1", padding=1)
    d2 = conv_bn_relu(d1, p, "d2", padding=1)
    x1 = conv_bn_relu(d1, p, "h1", relu=False)   # bf16 logits (pre-resize)
    x2 = conv_bn_relu(d2, p, "h2", relu=False)

    # ---- final bilinear upsample (align_corners=True); both heads fused ----
    xcat = jnp.concatenate([x1, x2], axis=-1)                  # (B, h, w, 2*NC)
    xcat = bilinear_resize_nhwc(xcat, H, W, out_dtype=jnp.float32)
    xcat = jnp.transpose(xcat, (0, 3, 1, 2))                   # boundary -> NCHW
    return xcat[:, :NUM_CLASSES], xcat[:, NUM_CLASSES:]


if __name__ == "__main__":
    key = jax.random.PRNGKey(0)
    pkey, xkey = jax.random.split(key)
    params = make_params(pkey)
    x = jax.random.normal(xkey, (2, 3, 32, 32), jnp.float32)   # NCHW input

    x1, x2 = jax.jit(deeplab_forward)(params, x)
    jax.block_until_ready((x1, x2))

    assert x1.shape == (2, NUM_CLASSES, 32, 32), x1.shape
    assert x2.shape == (2, NUM_CLASSES, 32, 32), x2.shape
    assert jnp.all(jnp.isfinite(x1)) and jnp.all(jnp.isfinite(x2))
    print("KERNEL_OK")
</pallas_src>

<mosaic_0001>
module attributes {stable_mosaic.version = 11 : i64} {
  func.func @_mm_bn_act_kernel(%arg0: i32, %arg1: memref<256x27xbf16, #tpu.memory_space<vmem>>, %arg2: memref<27x16xbf16, #tpu.memory_space<vmem>>, %arg3: memref<2x16xf32, #tpu.memory_space<vmem>>, %arg4: memref<256x16xbf16, #tpu.memory_space<vmem>>) attributes {dimension_semantics = [#tpu.dimension_semantics<parallel>], iteration_bounds = array<i64: 2>, scalar_prefetch = 0 : i64, scratch_operands = 0 : i64, tpu.core_type = #tpu.core_type<tc>, window_params = [{transform_indices = @transform_0, window_bounds = array<i64: 256, 27>}, {pipeline_mode = #tpu.pipeline_mode<synchronous>, transform_indices = @transform_1, window_bounds = array<i64: 27, 16>}, {pipeline_mode = #tpu.pipeline_mode<synchronous>, transform_indices = @transform_2, window_bounds = array<i64: 2, 16>}, {transform_indices = @transform_3, window_bounds = array<i64: 256, 16>}]} {
    %c0 = arith.constant 0 : index
    %c0_0 = arith.constant 0 : index
    %0 = vector.load %arg1[%c0, %c0_0] : memref<256x27xbf16, #tpu.memory_space<vmem>>, vector<256x27xbf16>
    %c0_1 = arith.constant 0 : index
    %c0_2 = arith.constant 0 : index
    %1 = vector.load %arg2[%c0_1, %c0_2] : memref<27x16xbf16, #tpu.memory_space<vmem>>, vector<27x16xbf16>
    %cst = arith.constant dense<0.000000e+00> : vector<256x16xf32>
    %2 = tpu.matmul %0, %1, %cst {dimension_numbers = #tpu.dot_dimension_numbers<[1], [0], [0], [1], [0, 0, 1, 1], [], []>} : vector<256x27xbf16>, vector<27x16xbf16>, vector<256x16xf32> -> vector<256x16xf32>
    %c0_3 = arith.constant 0 : index
    %c0_4 = arith.constant 0 : index
    %3 = vector.load %arg3[%c0_3, %c0_4] : memref<2x16xf32, #tpu.memory_space<vmem>>, vector<1x16xf32>
    %4 = vector.broadcast %3 : vector<1x16xf32> to vector<256x16xf32>
    %5 = arith.mulf %2, %4 : vector<256x16xf32>
    %c1 = arith.constant 1 : index
    %c0_5 = arith.constant 0 : index
    %6 = vector.load %arg3[%c1, %c0_5] : memref<2x16xf32, #tpu.memory_space<vmem>>, vector<1x16xf32>
    %7 = vector.broadcast %6 : vector<1x16xf32> to vector<256x16xf32>
    %8 = arith.addf %5, %7 : vector<256x16xf32>
    %cst_6 = arith.constant 0.000000e+00 : f32
    %9 = vector.broadcast %cst_6 : f32 to vector<256x16xf32>
    %10 = arith.maximumf %8, %9 : vector<256x16xf32>
    %11 = arith.truncf %10 : vector<256x16xf32> to vector<256x16xbf16>
    %c0_7 = arith.constant 0 : index
    %c0_8 = arith.constant 0 : index
    %12 = vector.load %arg4[%c0_7, %c0_8] : memref<256x16xbf16, #tpu.memory_space<vmem>>, vector<256x16xbf16>
    tpu.vector_store %arg4[%c0_7, %c0_8], %11 {strides = array<i32>} : memref<256x16xbf16, #tpu.memory_space<vmem>>, vector<256x16xbf16>,
    return
  }
  func.func @transform_0(%arg0: i32) -> (i32, i32) {
    %c0_i32 = arith.constant 0 : i32
    %c0_i32_0 = arith.constant 0 : i32
    return %arg0, %c0_i32 : i32, i32
  }
  func.func @transform_1(%arg0: i32) -> (i32, i32) {
    %c0_i32 = arith.constant 0 : i32
    %c0_i32_0 = arith.constant 0 : i32
    %c0_i32_1 = arith.constant 0 : i32
    return %c0_i32, %c0_i32_0 : i32, i32
  }
  func.func @transform_2(%arg0: i32) -> (i32, i32) {
    %c0_i32 = arith.constant 0 : i32
    %c0_i32_0 = arith.constant 0 : i32
    %c0_i32_1 = arith.constant 0 : i32
    return %c0_i32, %c0_i32_0 : i32, i32
  }
  func.func @transform_3(%arg0: i32) -> (i32, i32) {
    %c0_i32 = arith.constant 0 : i32
    %c0_i32_0 = arith.constant 0 : i32
    return %arg0, %c0_i32 : i32, i32
  }
}

module attributes {stable_mosaic.version = 11 : i64} {
  func.func @_mm_bn_act_kernel(%arg0: i32, %arg1: memref<64x144xbf16, #tpu.memory_space<vmem>>, %arg2: memref<144x24xbf16, #tpu.memory_space<vmem>>, %arg3: memref<2x24xf32, #tpu.memory_space<vmem>>, %arg4: memref<64x24xbf16, #tpu.memory_space<vmem>>) attributes {dimension_semantics = [#tpu.dimension_semantics<parallel>], iteration_bounds = array<i64: 2>, scalar_prefetch = 0 : i64, scratch_operands = 0 : i64, tpu.core_type = #tpu.core_type<tc>, window_params = [{transform_indices = @transform_0, window_bounds = array<i64: 64, 144>}, {pipeline_mode = #tpu.pipeline_mode<synchronous>, transform_indices = @transform_1, window_bounds = array<i64: 144, 24>}, {pipeline_mode = #tpu.pipeline_mode<synchronous>, transform_indices = @transform_2, window_bounds = array<i64: 2, 24>}, {transform_indices = @transform_3, window_bounds = array<i64: 64, 24>}]} {
    %c0 = arith.constant 0 : index
    %c0_0 = arith.constant 0 : index
    %0 = vector.load %arg1[%c0, %c0_0] : memref<64x144xbf16, #tpu.memory_space<vmem>>, vector<64x144xbf16>
    %c0_1 = arith.constant 0 : index
    %c0_2 = arith.constant 0 : index
    %1 = vector.load %arg2[%c0_1, %c0_2] : memref<144x24xbf16, #tpu.memory_space<vmem>>, vector<144x24xbf16>
    %cst = arith.constant dense<0.000000e+00> : vector<64x24xf32>
    %2 = tpu.matmul %0, %1, %cst {dimension_numbers = #tpu.dot_dimension_numbers<[1], [0], [0], [1], [0, 0, 1, 1], [], []>} : vector<64x144xbf16>, vector<144x24xbf16>, vector<64x24xf32> -> vector<64x24xf32>
    %c0_3 = arith.constant 0 : index
    %c0_4 = arith.constant 0 : index
    %3 = vector.load %arg3[%c0_3, %c0_4] : memref<2x24xf32, #tpu.memory_space<vmem>>, vector<1x24xf32>
    %4 = vector.broadcast %3 : vector<1x24xf32> to vector<64x24xf32>
    %5 = arith.mulf %2, %4 : vector<64x24xf32>
    %c1 = arith.constant 1 : index
    %c0_5 = arith.constant 0 : index
    %6 = vector.load %arg3[%c1, %c0_5] : memref<2x24xf32, #tpu.memory_space<vmem>>, vector<1x24xf32>
    %7 = vector.broadcast %6 : vector<1x24xf32> to vector<64x24xf32>
    %8 = arith.addf %5, %7 : vector<64x24xf32>
    %cst_6 = arith.constant 0.000000e+00 : f32
    %9 = vector.broadcast %cst_6 : f32 to vector<64x24xf32>
    %10 = arith.maximumf %8, %9 : vector<64x24xf32>
    %11 = arith.truncf %10 : vector<64x24xf32> to vector<64x24xbf16>
    %c0_7 = arith.constant 0 : index
    %c0_8 = arith.constant 0 : index
    %12 = vector.load %arg4[%c0_7, %c0_8] : memref<64x24xbf16, #tpu.memory_space<vmem>>, vector<64x24xbf16>
    tpu.vector_store %arg4[%c0_7, %c0_8], %11 {strides = array<i32>} : memref<64x24xbf16, #tpu.memory_space<vmem>>, vector<64x24xbf16>,
    return
  }
  func.func @transform_0(%arg0: i32) -> (i32, i32) {
    %c0_i32 = arith.constant 0 : i32
    %c0_i32_0 = arith.constant 0 : i32
    return %arg0, %c0_i32 : i32, i32
  }
  func.func @transform_1(%arg0: i32) -> (i32, i32) {
    %c0_i32 = arith.constant 0 : i32
    %c0_i32_0 = arith.constant 0 : i32
    %c0_i32_1 = arith.constant 0 : i32
    return %c0_i32, %c0_i32_0 : i32, i32
  }
  func.func @transform_2(%arg0: i32) -> (i32, i32) {
    %c0_i32 = arith.constant 0 : i32
    %c0_i32_0 = arith.constant 0 : i32
    %c0_i32_1 = arith.constant 0 : i32
    return %c0_i32, %c0_i32_0 : i32, i32
  }
  func.func @transform_3(%arg0: i32) -> (i32, i32) {
    %c0_i32 = arith.constant 0 : i32
    %c0_i32_0 = arith.constant 0 : i32
    return %arg0, %c0_i32 : i32, i32
  }
}

module attributes {stable_mosaic.version = 11 : i64} {
  func.func @_mm_bn_act_kernel(%arg0: i32, %arg1: memref<64x24xbf16, #tpu.memory_space<vmem>>, %arg2: memref<24x16xbf16, #tpu.memory_space<vmem>>, %arg3: memref<2x16xf32, #tpu.memory_space<vmem>>, %arg4: memref<64x16xbf16, #tpu.memory_space<vmem>>) attributes {dimension_semantics = [#tpu.dimension_semantics<parallel>], iteration_bounds = array<i64: 2>, scalar_prefetch = 0 : i64, scratch_operands = 0 : i64, tpu.core_type = #tpu.core_type<tc>, window_params = [{transform_indices = @transform_0, window_bounds = array<i64: 64, 24>}, {pipeline_mode = #tpu.pipeline_mode<synchronous>, transform_indices = @transform_1, window_bounds = array<i64: 24, 16>}, {pipeline_mode = #tpu.pipeline_mode<synchronous>, transform_indices = @transform_2, window_bounds = array<i64: 2, 16>}, {transform_indices = @transform_3, window_bounds = array<i64: 64, 16>}]} {
    %c0 = arith.constant 0 : index
    %c0_0 = arith.constant 0 : index
    %0 = vector.load %arg1[%c0, %c0_0] : memref<64x24xbf16, #tpu.memory_space<vmem>>, vector<64x24xbf16>
    %c0_1 = arith.constant 0 : index
    %c0_2 = arith.constant 0 : index
    %1 = vector.load %arg2[%c0_1, %c0_2] : memref<24x16xbf16, #tpu.memory_space<vmem>>, vector<24x16xbf16>
    %cst = arith.constant dense<0.000000e+00> : vector<64x16xf32>
    %2 = tpu.matmul %0, %1, %cst {dimension_numbers = #tpu.dot_dimension_numbers<[1], [0], [0], [1], [0, 0, 1, 1], [], []>} : vector<64x24xbf16>, vector<24x16xbf16>, vector<64x16xf32> -> vector<64x16xf32>
    %c0_3 = arith.constant 0 : index
    %c0_4 = arith.constant 0 : index
    %3 = vector.load %arg3[%c0_3, %c0_4] : memref<2x16xf32, #tpu.memory_space<vmem>>, vector<1x16xf32>
    %4 = vector.broadcast %3 : vector<1x16xf32> to vector<64x16xf32>
    %5 = arith.mulf %2, %4 : vector<64x16xf32>
    %c1 = arith.constant 1 : index
    %c0_5 = arith.constant 0 : index
    %6 = vector.load %arg3[%c1, %c0_5] : memref<2x16xf32, #tpu.memory_space<vmem>>, vector<1x16xf32>
    %7 = vector.broadcast %6 : vector<1x16xf32> to vector<64x16xf32>
    %8 = arith.addf %5, %7 : vector<64x16xf32>
    %cst_6 = arith.constant 0.000000e+00 : f32
    %9 = vector.broadcast %cst_6 : f32 to vector<64x16xf32>
    %10 = arith.maximumf %8, %9 : vector<64x16xf32>
    %11 = arith.truncf %10 : vector<64x16xf32> to vector<64x16xbf16>
    %c0_7 = arith.constant 0 : index
    %c0_8 = arith.constant 0 : index
    %12 = vector.load %arg4[%c0_7, %c0_8] : memref<64x16xbf16, #tpu.memory_space<vmem>>, vector<64x16xbf16>
    tpu.vector_store %arg4[%c0_7, %c0_8], %11 {strides = array<i32>} : memref<64x16xbf16, #tpu.memory_space<vmem>>, vector<64x16xbf16>,
    return
  }
  func.func @transform_0(%arg0: i32) -> (i32, i32) {
    %c0_i32 = arith.constant 0 : i32
    %c0_i32_0 = arith.constant 0 : i32
    return %arg0, %c0_i32 : i32, i32
  }
  func.func @transform_1(%arg0: i32) -> (i32, i32) {
    %c0_i32 = arith.constant 0 : i32
    %c0_i32_0 = arith.constant 0 : i32
    %c0_i32_1 = arith.constant 0 : i32
    return %c0_i32, %c0_i32_0 : i32, i32
  }
  func.func @transform_2(%arg0: i32) -> (i32, i32) {
    %c0_i32 = arith.constant 0 : i32
    %c0_i32_0 = arith.constant 0 : i32
    %c0_i32_1 = arith.constant 0 : i32
    return %c0_i32, %c0_i32_0 : i32, i32
  }
  func.func @transform_3(%arg0: i32) -> (i32, i32) {
    %c0_i32 = arith.constant 0 : i32
    %c0_i32_0 = arith.constant 0 : i32
    return %arg0, %c0_i32 : i32, i32
  }
}

module attributes {stable_mosaic.version = 11 : i64} {
  func.func @_mm_bn_act_kernel(%arg0: i32, %arg1: memref<64x432xbf16, #tpu.memory_space<vmem>>, %arg2: memref<432x32xbf16, #tpu.memory_space<vmem>>, %arg3: memref<2x32xf32, #tpu.memory_space<vmem>>, %arg4: memref<64x32xbf16, #tpu.memory_space<vmem>>) attributes {dimension_semantics = [#tpu.dimension_semantics<parallel>], iteration_bounds = array<i64: 2>, scalar_prefetch = 0 : i64, scratch_operands = 0 : i64, tpu.core_type = #tpu.core_type<tc>, window_params = [{transform_indices = @transform_0, window_bounds = array<i64: 64, 432>}, {pipeline_mode = #tpu.pipeline_mode<synchronous>, transform_indices = @transform_1, window_bounds = array<i64: 432, 32>}, {pipeline_mode = #tpu.pipeline_mode<synchronous>, transform_indices = @transform_2, window_bounds = array<i64: 2, 32>}, {transform_indices = @transform_3, window_bounds = array<i64: 64, 32>}]} {
    %c0 = arith.constant 0 : index
    %c0_0 = arith.constant 0 : index
    %0 = vector.load %arg1[%c0, %c0_0] : memref<64x432xbf16, #tpu.memory_space<vmem>>, vector<64x432xbf16>
    %c0_1 = arith.constant 0 : index
    %c0_2 = arith.constant 0 : index
    %1 = vector.load %arg2[%c0_1, %c0_2] : memref<432x32xbf16, #tpu.memory_space<vmem>>, vector<432x32xbf16>
    %cst = arith.constant dense<0.000000e+00> : vector<64x32xf32>
    %2 = tpu.matmul %0, %1, %cst {dimension_numbers = #tpu.dot_dimension_numbers<[1], [0], [0], [1], [0, 0, 1, 1], [], []>} : vector<64x432xbf16>, vector<432x32xbf16>, vector<64x32xf32> -> vector<64x32xf32>
    %c0_3 = arith.constant 0 : index
    %c0_4 = arith.constant 0 : index
    %3 = vector.load %arg3[%c0_3, %c0_4] : memref<2x32xf32, #tpu.memory_space<vmem>>, vector<1x32xf32>
    %4 = vector.broadcast %3 : vector<1x32xf32> to vector<64x32xf32>
    %5 = arith.mulf %2, %4 : vector<64x32xf32>
    %c1 = arith.constant 1 : index
    %c0_5 = arith.constant 0 : index
    %6 = vector.load %arg3[%c1, %c0_5] : memref<2x32xf32, #tpu.memory_space<vmem>>, vector<1x32xf32>
    %7 = vector.broadcast %6 : vector<1x32xf32> to vector<64x32xf32>
    %8 = arith.addf %5, %7 : vector<64x32xf32>
    %cst_6 = arith.constant 0.000000e+00 : f32
    %9 = vector.broadcast %cst_6 : f32 to vector<64x32xf32>
    %10 = arith.maximumf %8, %9 : vector<64x32xf32>
    %11 = arith.truncf %10 : vector<64x32xf32> to vector<64x32xbf16>
    %c0_7 = arith.constant 0 : index
    %c0_8 = arith.constant 0 : index
    %12 = vector.load %arg4[%c0_7, %c0_8] : memref<64x32xbf16, #tpu.memory_space<vmem>>, vector<64x32xbf16>
    tpu.vector_store %arg4[%c0_7, %c0_8], %11 {strides = array<i32>} : memref<64x32xbf16, #tpu.memory_space<vmem>>, vector<64x32xbf16>,
    return
  }
  func.func @transform_0(%arg0: i32) -> (i32, i32) {
    %c0_i32 = arith.constant 0 : i32
    %c0_i32_0 = arith.constant 0 : i32
    return %arg0, %c0_i32 : i32, i32
  }
  func.func @transform_1(%arg0: i32) -> (i32, i32) {
    %c0_i32 = arith.constant 0 : i32
    %c0_i32_0 = arith.constant 0 : i32
    %c0_i32_1 = arith.constant 0 : i32
    return %c0_i32, %c0_i32_0 : i32, i32
  }
  func.func @transform_2(%arg0: i32) -> (i32, i32) {
    %c0_i32 = arith.constant 0 : i32
    %c0_i32_0 = arith.constant 0 : i32
    %c0_i32_1 = arith.constant 0 : i32
    return %c0_i32, %c0_i32_0 : i32, i32
  }
  func.func @transform_3(%arg0: i32) -> (i32, i32) {
    %c0_i32 = arith.constant 0 : i32
    %c0_i32_0 = arith.constant 0 : i32
    return %arg0, %c0_i32 : i32, i32
  }
}

module attributes {stable_mosaic.version = 11 : i64} {
  func.func @_mm_bn_act_kernel(%arg0: i32, %arg1: memref<64x32xbf16, #tpu.memory_space<vmem>>, %arg2: memref<32x21xbf16, #tpu.memory_space<vmem>>, %arg3: memref<2x21xf32, #tpu.memory_space<vmem>>, %arg4: memref<64x21xbf16, #tpu.memory_space<vmem>>) attributes {dimension_semantics = [#tpu.dimension_semantics<parallel>], iteration_bounds = array<i64: 2>, scalar_prefetch = 0 : i64, scratch_operands = 0 : i64, tpu.core_type = #tpu.core_type<tc>, window_params = [{transform_indices = @transform_0, window_bounds = array<i64: 64, 32>}, {pipeline_mode = #tpu.pipeline_mode<synchronous>, transform_indices = @transform_1, window_bounds = array<i64: 32, 21>}, {pipeline_mode = #tpu.pipeline_mode<synchronous>, transform_indices = @transform_2, window_bounds = array<i64: 2, 21>}, {transform_indices = @transform_3, window_bounds = array<i64: 64, 21>}]} {
    %c0 = arith.constant 0 : index
    %c0_0 = arith.constant 0 : index
    %0 = vector.load %arg1[%c0, %c0_0] : memref<64x32xbf16, #tpu.memory_space<vmem>>, vector<64x32xbf16>
    %c0_1 = arith.constant 0 : index
    %c0_2 = arith.constant 0 : index
    %1 = vector.load %arg2[%c0_1, %c0_2] : memref<32x21xbf16, #tpu.memory_space<vmem>>, vector<32x21xbf16>
    %cst = arith.constant dense<0.000000e+00> : vector<64x21xf32>
    %2 = tpu.matmul %0, %1, %cst {dimension_numbers = #tpu.dot_dimension_numbers<[1], [0], [0], [1], [0, 0, 1, 1], [], []>} : vector<64x32xbf16>, vector<32x21xbf16>, vector<64x21xf32> -> vector<64x21xf32>
    %c0_3 = arith.constant 0 : index
    %c0_4 = arith.constant 0 : index
    %3 = vector.load %arg3[%c0_3, %c0_4] : memref<2x21xf32, #tpu.memory_space<vmem>>, vector<1x21xf32>
    %4 = vector.broadcast %3 : vector<1x21xf32> to vector<64x21xf32>
    %5 = arith.mulf %2, %4 : vector<64x21xf32>
    %c1 = arith.constant 1 : index
    %c0_5 = arith.constant 0 : index
    %6 = vector.load %arg3[%c1, %c0_5] : memref<2x21xf32, #tpu.memory_space<vmem>>, vector<1x21xf32>
    %7 = vector.broadcast %6 : vector<1x21xf32> to vector<64x21xf32>
    %8 = arith.addf %5, %7 : vector<64x21xf32>
    %9 = arith.truncf %8 : vector<64x21xf32> to vector<64x21xbf16>
    %c0_6 = arith.constant 0 : index
    %c0_7 = arith.constant 0 : index
    %10 = vector.load %arg4[%c0_6, %c0_7] : memref<64x21xbf16, #tpu.memory_space<vmem>>, vector<64x21xbf16>
    tpu.vector_store %arg4[%c0_6, %c0_7], %9 {strides = array<i32>} : memref<64x21xbf16, #tpu.memory_space<vmem>>, vector<64x21xbf16>,
    return
  }
  func.func @transform_0(%arg0: i32) -> (i32, i32) {
    %c0_i32 = arith.constant 0 : i32
    %c0_i32_0 = arith.constant 0 : i32
    return %arg0, %c0_i32 : i32, i32
  }
  func.func @transform_1(%arg0: i32) -> (i32, i32) {
    %c0_i32 = arith.constant 0 : i32
    %c0_i32_0 = arith.constant 0 : i32
    %c0_i32_1 = arith.constant 0 : i32
    return %c0_i32, %c0_i32_0 : i32, i32
  }
  func.func @transform_2(%arg0: i32) -> (i32, i32) {
    %c0_i32 = arith.constant 0 : i32
    %c0_i32_0 = arith.constant 0 : i32
    %c0_i32_1 = arith.constant 0 : i32
    return %c0_i32, %c0_i32_0 : i32, i32
  }
  func.func @transform_3(%arg0: i32) -> (i32, i32) {
    %c0_i32 = arith.constant 0 : i32
    %c0_i32_0 = arith.constant 0 : i32
    return %arg0, %c0_i32 : i32, i32
  }
}

module attributes {stable_mosaic.version = 11 : i64} {
  func.func @_mm_bn_act_kernel(%arg0: i32, %arg1: memref<64x288xbf16, #tpu.memory_space<vmem>>, %arg2: memref<288x32xbf16, #tpu.memory_space<vmem>>, %arg3: memref<2x32xf32, #tpu.memory_space<vmem>>, %arg4: memref<64x32xbf16, #tpu.memory_space<vmem>>) attributes {dimension_semantics = [#tpu.dimension_semantics<parallel>], iteration_bounds = array<i64: 2>, scalar_prefetch = 0 : i64, scratch_operands = 0 : i64, tpu.core_type = #tpu.core_type<tc>, window_params = [{transform_indices = @transform_0, window_bounds = array<i64: 64, 288>}, {pipeline_mode = #tpu.pipeline_mode<synchronous>, transform_indices = @transform_1, window_bounds = array<i64: 288, 32>}, {pipeline_mode = #tpu.pipeline_mode<synchronous>, transform_indices = @transform_2, window_bounds = array<i64: 2, 32>}, {transform_indices = @transform_3, window_bounds = array<i64: 64, 32>}]} {
    %c0 = arith.constant 0 : index
    %c0_0 = arith.constant 0 : index
    %0 = vector.load %arg1[%c0, %c0_0] : memref<64x288xbf16, #tpu.memory_space<vmem>>, vector<64x288xbf16>
    %c0_1 = arith.constant 0 : index
    %c0_2 = arith.constant 0 : index
    %1 = vector.load %arg2[%c0_1, %c0_2] : memref<288x32xbf16, #tpu.memory_space<vmem>>, vector<288x32xbf16>
    %cst = arith.constant dense<0.000000e+00> : vector<64x32xf32>
    %2 = tpu.matmul %0, %1, %cst {dimension_numbers = #tpu.dot_dimension_numbers<[1], [0], [0], [1], [0, 0, 1, 1], [], []>} : vector<64x288xbf16>, vector<288x32xbf16>, vector<64x32xf32> -> vector<64x32xf32>
    %c0_3 = arith.constant 0 : index
    %c0_4 = arith.constant 0 : index
    %3 = vector.load %arg3[%c0_3, %c0_4] : memref<2x32xf32, #tpu.memory_space<vmem>>, vector<1x32xf32>
    %4 = vector.broadcast %3 : vector<1x32xf32> to vector<64x32xf32>
    %5 = arith.mulf %2, %4 : vector<64x32xf32>
    %c1 = arith.constant 1 : index
    %c0_5 = arith.constant 0 : index
    %6 = vector.load %arg3[%c1, %c0_5] : memref<2x32xf32, #tpu.memory_space<vmem>>, vector<1x32xf32>
    %7 = vector.broadcast %6 : vector<1x32xf32> to vector<64x32xf32>
    %8 = arith.addf %5, %7 : vector<64x32xf32>
    %cst_6 = arith.constant 0.000000e+00 : f32
    %9 = vector.broadcast %cst_6 : f32 to vector<64x32xf32>
    %10 = arith.maximumf %8, %9 : vector<64x32xf32>
    %11 = arith.truncf %10 : vector<64x32xf32> to vector<64x32xbf16>
    %c0_7 = arith.constant 0 : index
    %c0_8 = arith.constant 0 : index
    %12 = vector.load %arg4[%c0_7, %c0_8] : memref<64x32xbf16, #tpu.memory_space<vmem>>, vector<64x32xbf16>
    tpu.vector_store %arg4[%c0_7, %c0_8], %11 {strides = array<i32>} : memref<64x32xbf16, #tpu.memory_space<vmem>>, vector<64x32xbf16>,
    return
  }
  func.func @transform_0(%arg0: i32) -> (i32, i32) {
    %c0_i32 = arith.constant 0 : i32
    %c0_i32_0 = arith.constant 0 : i32
    return %arg0, %c0_i32 : i32, i32
  }
  func.func @transform_1(%arg0: i32) -> (i32, i32) {
    %c0_i32 = arith.constant 0 : i32
    %c0_i32_0 = arith.constant 0 : i32
    %c0_i32_1 = arith.constant 0 : i32
    return %c0_i32, %c0_i32_0 : i32, i32
  }
  func.func @transform_2(%arg0: i32) -> (i32, i32) {
    %c0_i32 = arith.constant 0 : i32
    %c0_i32_0 = arith.constant 0 : i32
    %c0_i32_1 = arith.constant 0 : i32
    return %c0_i32, %c0_i32_0 : i32, i32
  }
  func.func @transform_3(%arg0: i32) -> (i32, i32) {
    %c0_i32 = arith.constant 0 : i32
    %c0_i32_0 = arith.constant 0 : i32
    return %arg0, %c0_i32 : i32, i32
  }
}

module attributes {stable_mosaic.version = 11 : i64} {
  func.func @_bilinear_kernel(%arg0: i32, %arg1: i32, %arg2: memref<32xi32, #tpu.memory_space<smem>>, %arg3: memref<32xf32, #tpu.memory_space<smem>>, %arg4: memref<1x8x8x42xbf16, #tpu.memory_space<vmem>>, %arg5: memref<32x8xf32, #tpu.memory_space<vmem>>, %arg6: memref<1x8x32x42xf32, #tpu.memory_space<vmem>>) attributes {dimension_semantics = [#tpu.dimension_semantics<parallel>, #tpu.dimension_semantics<parallel>], iteration_bounds = array<i64: 2, 4>, scalar_prefetch = 0 : i64, scratch_operands = 0 : i64, tpu.core_type = #tpu.core_type<tc>, window_params = [{transform_indices = @transform_0, window_bounds = array<i64: 32>}, {transform_indices = @transform_1, window_bounds = array<i64: 32>}, {transform_indices = @transform_2, window_bounds = array<i64: 1, 8, 8, 42>}, {pipeline_mode = #tpu.pipeline_mode<synchronous>, transform_indices = @transform_3, window_bounds = array<i64: 32, 8>}, {transform_indices = @transform_4, window_bounds = array<i64: 1, 8, 32, 42>}]} {
    %c8_i32 = arith.constant 8 : i32
    %0 = arith.muli %arg1, %c8_i32 : i32
    %c0 = arith.constant 0 : index
    %c0_0 = arith.constant 0 : index
    %1 = vector.load %arg5[%c0, %c0_0] : memref<32x8xf32, #tpu.memory_space<vmem>>, vector<32x8xf32>
    %c0_i32 = arith.constant 0 : i32
    %2 = arith.addi %0, %c0_i32 : i32
    %3 = arith.index_cast %2 : i32 to index
    %4 = memref.load %arg2[%3] : memref<32xi32, #tpu.memory_space<smem>>
    %c1_i32 = arith.constant 1 : i32
    %5 = arith.addi %4, %c1_i32 : i32
    %c7_i32 = arith.constant 7 : i32
    %6 = arith.minsi %5, %c7_i32 : i32
    %7 = arith.index_cast %2 : i32 to index
    %8 = memref.load %arg3[%7] : memref<32xf32, #tpu.memory_space<smem>>
    %c0_1 = arith.constant 0 : index
    %9 = arith.index_cast %4 : i32 to index
    %c0_2 = arith.constant 0 : index
    %c0_3 = arith.constant 0 : index
    %10 = vector.load %arg4[%c0_1, %9, %c0_2, %c0_3] : memref<1x8x8x42xbf16, #tpu.memory_space<vmem>>, vector<1x1x8x42xbf16>
    %11 = vector.shape_cast %10 : vector<1x1x8x42xbf16> to vector<8x42xbf16>
    %12 = arith.extf %11 : vector<8x42xbf16> to vector<8x42xf32>
    %c0_4 = arith.constant 0 : index
    %13 = arith.index_cast %6 : i32 to index
    %c0_5 = arith.constant 0 : index
    %c0_6 = arith.constant 0 : index
    %14 = vector.load %arg4[%c0_4, %13, %c0_5, %c0_6] : memref<1x8x8x42xbf16, #tpu.memory_space<vmem>>, vector<1x1x8x42xbf16>
    %15 = vector.shape_cast %14 : vector<1x1x8x42xbf16> to vector<8x42xbf16>
    %16 = arith.extf %15 : vector<8x42xbf16> to vector<8x42xf32>
    %17 = arith.subf %16, %12 : vector<8x42xf32>
    %18 = vector.broadcast %8 : f32 to vector<8x42xf32>
    %19 = arith.mulf %17, %18 : vector<8x42xf32>
    %20 = arith.addf %12, %19 : vector<8x42xf32>
    %cst = arith.constant dense<0.000000e+00> : vector<32x42xf32>
    %21 = tpu.matmul %1, %20, %cst {dimension_numbers = #tpu.dot_dimension_numbers<[1], [0], [0], [1], [0, 0, 1, 1], [], []>} : vector<32x8xf32>, vector<8x42xf32>, vector<32x42xf32> -> vector<32x42xf32>
    %c0_7 = arith.constant 0 : index
    %c0_8 = arith.constant 0 : index
    %c0_9 = arith.constant 0 : index
    %c0_10 = arith.constant 0 : index
    %22 = vector.load %arg6[%c0_7, %c0_8, %c0_9, %c0_10] : memref<1x8x32x42xf32, #tpu.memory_space<vmem>>, vector<1x1x32x42xf32>
    %23 = vector.shape_cast %22 : vector<1x1x32x42xf32> to vector<32x42xf32>
    %24 = vector.shape_cast %21 : vector<32x42xf32> to vector<1x1x32x42xf32>
    tpu.vector_store %arg6[%c0_7, %c0_8, %c0_9, %c0_10], %24 {strides = array<i32>} : memref<1x8x32x42xf32, #tpu.memory_space<vmem>>, vector<1x1x32x42xf32>,
    %c1_i32_11 = arith.constant 1 : i32
    %25 = arith.addi %0, %c1_i32_11 : i32
    %26 = arith.index_cast %25 : i32 to index
    %27 = memref.load %arg2[%26] : memref<32xi32, #tpu.memory_space<smem>>
    %c1_i32_12 = arith.constant 1 : i32
    %28 = arith.addi %27, %c1_i32_12 : i32
    %c7_i32_13 = arith.constant 7 : i32
    %29 = arith.minsi %28, %c7_i32_13 : i32
    %30 = arith.index_cast %25 : i32 to index
    %31 = memref.load %arg3[%30] : memref<32xf32, #tpu.memory_space<smem>>
    %c0_14 = arith.constant 0 : index
    %32 = arith.index_cast %27 : i32 to index
    %c0_15 = arith.constant 0 : index
    %c0_16 = arith.constant 0 : index
    %33 = vector.load %arg4[%c0_14, %32, %c0_15, %c0_16] : memref<1x8x8x42xbf16, #tpu.memory_space<vmem>>, vector<1x1x8x42xbf16>
    %34 = vector.shape_cast %33 : vector<1x1x8x42xbf16> to vector<8x42xbf16>
    %35 = arith.extf %34 : vector<8x42xbf16> to vector<8x42xf32>
    %c0_17 = arith.constant 0 : index
    %36 = arith.index_cast %29 : i32 to index
    %c0_18 = arith.constant 0 : index
    %c0_19 = arith.constant 0 : index
    %37 = vector.load %arg4[%c0_17, %36, %c0_18, %c0_19] : memref<1x8x8x42xbf16, #tpu.memory_space<vmem>>, vector<1x1x8x42xbf16>
    %38 = vector.shape_cast %37 : vector<1x1x8x42xbf16> to vector<8x42xbf16>
    %39 = arith.extf %38 : vector<8x42xbf16> to vector<8x42xf32>
    %40 = arith.subf %39, %35 : vector<8x42xf32>
    %41 = vector.broadcast %31 : f32 to vector<8x42xf32>
    %42 = arith.mulf %40, %41 : vector<8x42xf32>
    %43 = arith.addf %35, %42 : vector<8x42xf32>
    %cst_20 = arith.constant dense<0.000000e+00> : vector<32x42xf32>
    %44 = tpu.matmul %1, %43, %cst_20 {dimension_numbers = #tpu.dot_dimension_numbers<[1], [0], [0], [1], [0, 0, 1, 1], [], []>} : vector<32x8xf32>, vector<8x42xf32>, vector<32x42xf32> -> vector<32x42xf32>
    %c0_21 = arith.constant 0 : index
    %c1 = arith.constant 1 : index
    %c0_22 = arith.constant 0 : index
    %c0_23 = arith.constant 0 : index
    %45 = vector.load %arg6[%c0_21, %c1, %c0_22, %c0_23] : memref<1x8x32x42xf32, #tpu.memory_space<vmem>>, vector<1x1x32x42xf32>
    %46 = vector.shape_cast %45 : vector<1x1x32x42xf32> to vector<32x42xf32>
    %47 = vector.shape_cast %44 : vector<32x42xf32> to vector<1x1x32x42xf32>
    tpu.vector_store %arg6[%c0_21, %c1, %c0_22, %c0_23], %47 {strides = array<i32>} : memref<1x8x32x42xf32, #tpu.memory_space<vmem>>, vector<1x1x32x42xf32>,
    %c2_i32 = arith.constant 2 : i32
    %48 = arith.addi %0, %c2_i32 : i32
    %49 = arith.index_cast %48 : i32 to index
    %50 = memref.load %arg2[%49] : memref<32xi32, #tpu.memory_space<smem>>
    %c1_i32_24 = arith.constant 1 : i32
    %51 = arith.addi %50, %c1_i32_24 : i32
    %c7_i32_25 = arith.constant 7 : i32
    %52 = arith.minsi %51, %c7_i32_25 : i32
    %53 = arith.index_cast %48 : i32 to index
    %54 = memref.load %arg3[%53] : memref<32xf32, #tpu.memory_space<smem>>
    %c0_26 = arith.constant 0 : index
    %55 = arith.index_cast %50 : i32 to index
    %c0_27 = arith.constant 0 : index
    %c0_28 = arith.constant 0 : index
    %56 = vector.load %arg4[%c0_26, %55, %c0_27, %c0_28] : memref<1x8x8x42xbf16, #tpu.memory_space<vmem>>, vector<1x1x8x42xbf16>
    %57 = vector.shape_cast %56 : vector<1x1x8x42xbf16> to vector<8x42xbf16>
    %58 = arith.extf %57 : vector<8x42xbf16> to vector<8x42xf32>
    %c0_29 = arith.constant 0 : index
    %59 = arith.index_cast %52 : i32 to index
    %c0_30 = arith.constant 0 : index
    %c0_31 = arith.constant 0 : index
    %60 = vector.load %arg4[%c0_29, %59, %c0_30, %c0_31] : memref<1x8x8x42xbf16, #tpu.memory_space<vmem>>, vector<1x1x8x42xbf16>
    %61 = vector.shape_cast %60 : vector<1x1x8x42xbf16> to vector<8x42xbf16>
    %62 = arith.extf %61 : vector<8x42xbf16> to vector<8x42xf32>
    %63 = arith.subf %62, %58 : vector<8x42xf32>
    %64 = vector.broadcast %54 : f32 to vector<8x42xf32>
    %65 = arith.mulf %63, %64 : vector<8x42xf32>
    %66 = arith.addf %58, %65 : vector<8x42xf32>
    %cst_32 = arith.constant dense<0.000000e+00> : vector<32x42xf32>
    %67 = tpu.matmul %1, %66, %cst_32 {dimension_numbers = #tpu.dot_dimension_numbers<[1], [0], [0], [1], [0, 0, 1, 1], [], []>} : vector<32x8xf32>, vector<8x42xf32>, vector<32x42xf32> -> vector<32x42xf32>
    %c0_33 = arith.constant 0 : index
    %c2 = arith.constant 2 : index
    %c0_34 = arith.constant 0 : index
    %c0_35 = arith.constant 0 : index
    %68 = vector.load %arg6[%c0_33, %c2, %c0_34, %c0_35] : memref<1x8x32x42xf32, #tpu.memory_space<vmem>>, vector<1x1x32x42xf32>
    %69 = vector.shape_cast %68 : vector<1x1x32x42xf32> to vector<32x42xf32>
    %70 = vector.shape_cast %67 : vector<32x42xf32> to vector<1x1x32x42xf32>
    tpu.vector_store %arg6[%c0_33, %c2, %c0_34, %c0_35], %70 {strides = array<i32>} : memref<1x8x32x42xf32, #tpu.memory_space<vmem>>, vector<1x1x32x42xf32>,
    %c3_i32 = arith.constant 3 : i32
    %71 = arith.addi %0, %c3_i32 : i32
    %72 = arith.index_cast %71 : i32 to index
    %73 = memref.load %arg2[%72] : memref<32xi32, #tpu.memory_space<smem>>
    %c1_i32_36 = arith.constant 1 : i32
    %74 = arith.addi %73, %c1_i32_36 : i32
    %c7_i32_37 = arith.constant 7 : i32
    %75 = arith.minsi %74, %c7_i32_37 : i32
    %76 = arith.index_cast %71 : i32 to index
    %77 = memref.load %arg3[%76] : memref<32xf32, #tpu.memory_space<smem>>
    %c0_38 = arith.constant 0 : index
    %78 = arith.index_cast %73 : i32 to index
    %c0_39 = arith.constant 0 : index
    %c0_40 = arith.constant 0 : index
    %79 = vector.load %arg4[%c0_38, %78, %c0_39, %c0_40] : memref<1x8x8x42xbf16, #tpu.memory_space<vmem>>, vector<1x1x8x42xbf16>
    %80 = vector.shape_cast %79 : vector<1x1x8x42xbf16> to vector<8x42xbf16>
    %81 = arith.extf %80 : vector<8x42xbf16> to vector<8x42xf32>
    %c0_41 = arith.constant 0 : index
    %82 = arith.index_cast %75 : i32 to index
    %c0_42 = arith.constant 0 : index
    %c0_43 = arith.constant 0 : index
    %83 = vector.load %arg4[%c0_41, %82, %c0_42, %c0_43] : memref<1x8x8x42xbf16, #tpu.memory_space<vmem>>, vector<1x1x8x42xbf16>
    %84 = vector.shape_cast %83 : vector<1x1x8x42xbf16> to vector<8x42xbf16>
    %85 = arith.extf %84 : vector<8x42xbf16> to vector<8x42xf32>
    %86 = arith.subf %85, %81 : vector<8x42xf32>
    %87 = vector.broadcast %77 : f32 to vector<8x42xf32>
    %88 = arith.mulf %86, %87 : vector<8x42xf32>
    %89 = arith.addf %81, %88 : vector<8x42xf32>
    %cst_44 = arith.constant dense<0.000000e+00> : vector<32x42xf32>
    %90 = tpu.matmul %1, %89, %cst_44 {dimension_numbers = #tpu.dot_dimension_numbers<[1], [0], [0], [1], [0, 0, 1, 1], [], []>} : vector<32x8xf32>, vector<8x42xf32>, vector<32x42xf32> -> vector<32x42xf32>
    %c0_45 = arith.constant 0 : index
    %c3 = arith.constant 3 : index
    %c0_46 = arith.constant 0 : index
    %c0_47 = arith.constant 0 : index
    %91 = vector.load %arg6[%c0_45, %c3, %c0_46, %c0_47] : memref<1x8x32x42xf32, #tpu.memory_space<vmem>>, vector<1x1x32x42xf32>
    %92 = vector.shape_cast %91 : vector<1x1x32x42xf32> to vector<32x42xf32>
    %93 = vector.shape_cast %90 : vector<32x42xf32> to vector<1x1x32x42xf32>
    tpu.vector_store %arg6[%c0_45, %c3, %c0_46, %c0_47], %93 {strides = array<i32>} : memref<1x8x32x42xf32, #tpu.memory_space<vmem>>, vector<1x1x32x42xf32>,
    %c4_i32 = arith.constant 4 : i32
    %94 = arith.addi %0, %c4_i32 : i32
    %95 = arith.index_cast %94 : i32 to index
    %96 = memref.load %arg2[%95] : memref<32xi32, #tpu.memory_space<smem>>
    %c1_i32_48 = arith.constant 1 : i32
    %97 = arith.addi %96, %c1_i32_48 : i32
    %c7_i32_49 = arith.constant 7 : i32
    %98 = arith.minsi %97, %c7_i32_49 : i32
    %99 = arith.index_cast %94 : i32 to index
    %100 = memref.load %arg3[%99] : memref<32xf32, #tpu.memory_space<smem>>
    %c0_50 = arith.constant 0 : index
    %101 = arith.index_cast %96 : i32 to index
    %c0_51 = arith.constant 0 : index
    %c0_52 = arith.constant 0 : index
    %102 = vector.load %arg4[%c0_50, %101, %c0_51, %c0_52] : memref<1x8x8x42xbf16, #tpu.memory_space<vmem>>, vector<1x1x8x42xbf16>
    %103 = vector.shape_cast %102 : vector<1x1x8x42xbf16> to vector<8x42xbf16>
    %104 = arith.extf %103 : vector<8x42xbf16> to vector<8x42xf32>
    %c0_53 = arith.constant 0 : index
    %105 = arith.index_cast %98 : i32 to index
    %c0_54 = arith.constant 0 : index
    %c0_55 = arith.constant 0 : index
    %106 = vector.load %arg4[%c0_53, %105, %c0_54, %c0_55] : memref<1x8x8x42xbf16, #tpu.memory_space<vmem>>, vector<1x1x8x42xbf16>
    %107 = vector.shape_cast %106 : vector<1x1x8x42xbf16> to vector<8x42xbf16>
    %108 = arith.extf %107 : vector<8x42xbf16> to vector<8x42xf32>
    %109 = arith.subf %108, %104 : vector<8x42xf32>
    %110 = vector.broadcast %100 : f32 to vector<8x42xf32>
    %111 = arith.mulf %109, %110 : vector<8x42xf32>
    %112 = arith.addf %104, %111 : vector<8x42xf32>
    %cst_56 = arith.constant dense<0.000000e+00> : vector<32x42xf32>
    %113 = tpu.matmul %1, %112, %cst_56 {dimension_numbers = #tpu.dot_dimension_numbers<[1], [0], [0], [1], [0, 0, 1, 1], [], []>} : vector<32x8xf32>, vector<8x42xf32>, vector<32x42xf32> -> vector<32x42xf32>
    %c0_57 = arith.constant 0 : index
    %c4 = arith.constant 4 : index
    %c0_58 = arith.constant 0 : index
    %c0_59 = arith.constant 0 : index
    %114 = vector.load %arg6[%c0_57, %c4, %c0_58, %c0_59] : memref<1x8x32x42xf32, #tpu.memory_space<vmem>>, vector<1x1x32x42xf32>
    %115 = vector.shape_cast %114 : vector<1x1x32x42xf32> to vector<32x42xf32>
    %116 = vector.shape_cast %113 : vector<32x42xf32> to vector<1x1x32x42xf32>
    tpu.vector_store %arg6[%c0_57, %c4, %c0_58, %c0_59], %116 {strides = array<i32>} : memref<1x8x32x42xf32, #tpu.memory_space<vmem>>, vector<1x1x32x42xf32>,
    %c5_i32 = arith.constant 5 : i32
    %117 = arith.addi %0, %c5_i32 : i32
    %118 = arith.index_cast %117 : i32 to index
    %119 = memref.load %arg2[%118] : memref<32xi32, #tpu.memory_space<smem>>
    %c1_i32_60 = arith.constant 1 : i32
    %120 = arith.addi %119, %c1_i32_60 : i32
    %c7_i32_61 = arith.constant 7 : i32
    %121 = arith.minsi %120, %c7_i32_61 : i32
    %122 = arith.index_cast %117 : i32 to index
    %123 = memref.load %arg3[%122] : memref<32xf32, #tpu.memory_space<smem>>
    %c0_62 = arith.constant 0 : index
    %124 = arith.index_cast %119 : i32 to index
    %c0_63 = arith.constant 0 : index
    %c0_64 = arith.constant 0 : index
    %125 = vector.load %arg4[%c0_62, %124, %c0_63, %c0_64] : memref<1x8x8x42xbf16, #tpu.memory_space<vmem>>, vector<1x1x8x42xbf16>
    %126 = vector.shape_cast %125 : vector<1x1x8x42xbf16> to vector<8x42xbf16>
    %127 = arith.extf %126 : vector<8x42xbf16> to vector<8x42xf32>
    %c0_65 = arith.constant 0 : index
    %128 = arith.index_cast %121 : i32 to index
    %c0_66 = arith.constant 0 : index
    %c0_67 = arith.constant 0 : index
    %129 = vector.load %arg4[%c0_65, %128, %c0_66, %c0_67] : memref<1x8x8x42xbf16, #tpu.memory_space<vmem>>, vector<1x1x8x42xbf16>
    %130 = vector.shape_cast %129 : vector<1x1x8x42xbf16> to vector<8x42xbf16>
    %131 = arith.extf %130 : vector<8x42xbf16> to vector<8x42xf32>
    %132 = arith.subf %131, %127 : vector<8x42xf32>
    %133 = vector.broadcast %123 : f32 to vector<8x42xf32>
    %134 = arith.mulf %132, %133 : vector<8x42xf32>
    %135 = arith.addf %127, %134 : vector<8x42xf32>
    %cst_68 = arith.constant dense<0.000000e+00> : vector<32x42xf32>
    %136 = tpu.matmul %1, %135, %cst_68 {dimension_numbers = #tpu.dot_dimension_numbers<[1], [0], [0], [1], [0, 0, 1, 1], [], []>} : vector<32x8xf32>, vector<8x42xf32>, vector<32x42xf32> -> vector<32x42xf32>
    %c0_69 = arith.constant 0 : index
    %c5 = arith.constant 5 : index
    %c0_70 = arith.constant 0 : index
    %c0_71 = arith.constant 0 : index
    %137 = vector.load %arg6[%c0_69, %c5, %c0_70, %c0_71] : memref<1x8x32x42xf32, #tpu.memory_space<vmem>>, vector<1x1x32x42xf32>
    %138 = vector.shape_cast %137 : vector<1x1x32x42xf32> to vector<32x42xf32>
    %139 = vector.shape_cast %136 : vector<32x42xf32> to vector<1x1x32x42xf32>
    tpu.vector_store %arg6[%c0_69, %c5, %c0_70, %c0_71], %139 {strides = array<i32>} : memref<1x8x32x42xf32, #tpu.memory_space<vmem>>, vector<1x1x32x42xf32>,
    %c6_i32 = arith.constant 6 : i32
    %140 = arith.addi %0, %c6_i32 : i32
    %141 = arith.index_cast %140 : i32 to index
    %142 = memref.load %arg2[%141] : memref<32xi32, #tpu.memory_space<smem>>
    %c1_i32_72 = arith.constant 1 : i32
    %143 = arith.addi %142, %c1_i32_72 : i32
    %c7_i32_73 = arith.constant 7 : i32
    %144 = arith.minsi %143, %c7_i32_73 : i32
    %145 = arith.index_cast %140 : i32 to index
    %146 = memref.load %arg3[%145] : memref<32xf32, #tpu.memory_space<smem>>
    %c0_74 = arith.constant 0 : index
    %147 = arith.index_cast %142 : i32 to index
    %c0_75 = arith.constant 0 : index
    %c0_76 = arith.constant 0 : index
    %148 = vector.load %arg4[%c0_74, %147, %c0_75, %c0_76] : memref<1x8x8x42xbf16, #tpu.memory_space<vmem>>, vector<1x1x8x42xbf16>
    %149 = vector.shape_cast %148 : vector<1x1x8x42xbf16> to vector<8x42xbf16>
    %150 = arith.extf %149 : vector<8x42xbf16> to vector<8x42xf32>
    %c0_77 = arith.constant 0 : index
    %151 = arith.index_cast %144 : i32 to index
    %c0_78 = arith.constant 0 : index
    %c0_79 = arith.constant 0 : index
    %152 = vector.load %arg4[%c0_77, %151, %c0_78, %c0_79] : memref<1x8x8x42xbf16, #tpu.memory_space<vmem>>, vector<1x1x8x42xbf16>
    %153 = vector.shape_cast %152 : vector<1x1x8x42xbf16> to vector<8x42xbf16>
    %154 = arith.extf %153 : vector<8x42xbf16> to vector<8x42xf32>
    %155 = arith.subf %154, %150 : vector<8x42xf32>
    %156 = vector.broadcast %146 : f32 to vector<8x42xf32>
    %157 = arith.mulf %155, %156 : vector<8x42xf32>
    %158 = arith.addf %150, %157 : vector<8x42xf32>
    %cst_80 = arith.constant dense<0.000000e+00> : vector<32x42xf32>
    %159 = tpu.matmul %1, %158, %cst_80 {dimension_numbers = #tpu.dot_dimension_numbers<[1], [0], [0], [1], [0, 0, 1, 1], [], []>} : vector<32x8xf32>, vector<8x42xf32>, vector<32x42xf32> -> vector<32x42xf32>
    %c0_81 = arith.constant 0 : index
    %c6 = arith.constant 6 : index
    %c0_82 = arith.constant 0 : index
    %c0_83 = arith.constant 0 : index
    %160 = vector.load %arg6[%c0_81, %c6, %c0_82, %c0_83] : memref<1x8x32x42xf32, #tpu.memory_space<vmem>>, vector<1x1x32x42xf32>
    %161 = vector.shape_cast %160 : vector<1x1x32x42xf32> to vector<32x42xf32>
    %162 = vector.shape_cast %159 : vector<32x42xf32> to vector<1x1x32x42xf32>
    tpu.vector_store %arg6[%c0_81, %c6, %c0_82, %c0_83], %162 {strides = array<i32>} : memref<1x8x32x42xf32, #tpu.memory_space<vmem>>, vector<1x1x32x42xf32>,
    %c7_i32_84 = arith.constant 7 : i32
    %163 = arith.addi %0, %c7_i32_84 : i32
    %164 = arith.index_cast %163 : i32 to index
    %165 = memref.load %arg2[%164] : memref<32xi32, #tpu.memory_space<smem>>
    %c1_i32_85 = arith.constant 1 : i32
    %166 = arith.addi %165, %c1_i32_85 : i32
    %c7_i32_86 = arith.constant 7 : i32
    %167 = arith.minsi %166, %c7_i32_86 : i32
    %168 = arith.index_cast %163 : i32 to index
    %169 = memref.load %arg3[%168] : memref<32xf32, #tpu.memory_space<smem>>
    %c0_87 = arith.constant 0 : index
    %170 = arith.index_cast %165 : i32 to index
    %c0_88 = arith.constant 0 : index
    %c0_89 = arith.constant 0 : index
    %171 = vector.load %arg4[%c0_87, %170, %c0_88, %c0_89] : memref<1x8x8x42xbf16, #tpu.memory_space<vmem>>, vector<1x1x8x42xbf16>
    %172 = vector.shape_cast %171 : vector<1x1x8x42xbf16> to vector<8x42xbf16>
    %173 = arith.extf %172 : vector<8x42xbf16> to vector<8x42xf32>
    %c0_90 = arith.constant 0 : index
    %174 = arith.index_cast %167 : i32 to index
    %c0_91 = arith.constant 0 : index
    %c0_92 = arith.constant 0 : index
    %175 = vector.load %arg4[%c0_90, %174, %c0_91, %c0_92] : memref<1x8x8x42xbf16, #tpu.memory_space<vmem>>, vector<1x1x8x42xbf16>
    %176 = vector.shape_cast %175 : vector<1x1x8x42xbf16> to vector<8x42xbf16>
    %177 = arith.extf %176 : vector<8x42xbf16> to vector<8x42xf32>
    %178 = arith.subf %177, %173 : vector<8x42xf32>
    %179 = vector.broadcast %169 : f32 to vector<8x42xf32>
    %180 = arith.mulf %178, %179 : vector<8x42xf32>
    %181 = arith.addf %173, %180 : vector<8x42xf32>
    %cst_93 = arith.constant dense<0.000000e+00> : vector<32x42xf32>
    %182 = tpu.matmul %1, %181, %cst_93 {dimension_numbers = #tpu.dot_dimension_numbers<[1], [0], [0], [1], [0, 0, 1, 1], [], []>} : vector<32x8xf32>, vector<8x42xf32>, vector<32x42xf32> -> vector<32x42xf32>
    %c0_94 = arith.constant 0 : index
    %c7 = arith.constant 7 : index
    %c0_95 = arith.constant 0 : index
    %c0_96 = arith.constant 0 : index
    %183 = vector.load %arg6[%c0_94, %c7, %c0_95, %c0_96] : memref<1x8x32x42xf32, #tpu.memory_space<vmem>>, vector<1x1x32x42xf32>
    %184 = vector.shape_cast %183 : vector<1x1x32x42xf32> to vector<32x42xf32>
    %185 = vector.shape_cast %182 : vector<32x42xf32> to vector<1x1x32x42xf32>
    tpu.vector_store %arg6[%c0_94, %c7, %c0_95, %c0_96], %185 {strides = array<i32>} : memref<1x8x32x42xf32, #tpu.memory_space<vmem>>, vector<1x1x32x42xf32>,
    return
  }
  func.func @transform_0(%arg0: i32, %arg1: i32) -> i32 {
    %c0_i32 = arith.constant 0 : i32
    %c0_i32_0 = arith.constant 0 : i32
    return %c0_i32 : i32
  }
  func.func @transform_1(%arg0: i32, %arg1: i32) -> i32 {
    %c0_i32 = arith.constant 0 : i32
    %c0_i32_0 = arith.constant 0 : i32
    return %c0_i32 : i32
  }
  func.func @transform_2(%arg0: i32, %arg1: i32) -> (i32, i32, i32, i32) {
    %c0_i32 = arith.constant 0 : i32
    %c0_i32_0 = arith.constant 0 : i32
    %c0_i32_1 = arith.constant 0 : i32
    %c0_i32_2 = arith.constant 0 : i32
    return %arg0, %c0_i32, %c0_i32_0, %c0_i32_1 : i32, i32, i32, i32
  }
  func.func @transform_3(%arg0: i32, %arg1: i32) -> (i32, i32) {
    %c0_i32 = arith.constant 0 : i32
    %c0_i32_0 = arith.constant 0 : i32
    %c0_i32_1 = arith.constant 0 : i32
    return %c0_i32, %c0_i32_0 : i32, i32
  }
  func.func @transform_4(%arg0: i32, %arg1: i32) -> (i32, i32, i32, i32) {
    %c0_i32 = arith.constant 0 : i32
    %c0_i32_0 = arith.constant 0 : i32
    %c0_i32_1 = arith.constant 0 : i32
    return %arg0, %arg1, %c0_i32, %c0_i32_0 : i32, i32, i32, i32
  }
}

</mosaic_0001>

<llo_original>
// kernel: deeplab_forward.8
$region0: #{deeplab_forward.8}
  #allocation0 [shape = 'u32[]', space=smem, size = 0x4, offset = 0x4, fixed_abs, tag = 'smem constant byte address 0x4 - core index']
  #allocation1 [shape = 'u32[144,128]{1,0:T(1,128)}', space=vmem, size = 0x12000, scoped, tag = 'internal scratch']
  %s0 = inlined_call_operand.vmem [shape: bf16[512,27], index: 0, kind: input, shape index: {}]
  %s1 = inlined_call_operand.vmem [shape: bf16[27,16], index: 1, kind: input, shape index: {}]
  %s2 = inlined_call_operand.vmem [shape: f32[2,16], index: 2, kind: input, shape index: {}]
  %s3 = inlined_call_operand.vmem [shape: bf16[512,16], index: 3, kind: output, shape index: {}]
  %s4 = sld [smem:[#allocation0]]
  $region45: #{deeplab_forward.8} parent=0
    _
  %s6 = ssub.s32 1, %s4
  %s7 = scalar_select 0, %s6, %s4
  loop: start=0, step=1, limit=4
  $region2: #{deeplab_forward.8} parent=0 // loop_pre_header
    _
  $region3: #{deeplab_forward.8} parent=0 // loop_header
    %s9 = sphi 0, %s13
    %p10 = scmp.ge.s32.totalorder %s9, 4
    %s19 = sphi 0, %s21
    %s22 = sphi 0, %s19
    %s23 = sphi 0, %s22
    %s39 = sphi 0, %s23
    %s43 = sphi 0, %s43
    %s45 = sphi 0, %s43
    %s46 = sphi 0, %s45
    %s60 = sphi 0, %s46
    %s64 = sphi 0, %s64
    %s66 = sphi 0, %s64
    %s67 = sphi 0, %s66
    %s81 = sphi 0, %s67
    %s87 = sphi 0, %s89
    %s90 = sphi 0, %s87
    %s91 = sphi 0, %s90
    %s107 = sphi 0, %s91
  $region4: #{deeplab_forward.8} parent=0 // loop_header_branch
    %12 = sbr.rel (%p10) target = $region8
  $region5: #{deeplab_forward.8} parent=0 // loop_body
    %s14 = ssub.s32 %s9, 1
    %s15 = ssub.s32 %s9, 2
    %s16 = sadd.s32 %s9, 1
    %s17 = ssub.s32 %s9, %s16
    %p18 = scmp.eq.s32.totalorder %s17, 0
    %s20 = sadd.s32 %s19, 1
    %s21 = scalar_select %p18, %s19, %s20
    %p24 = pneg %p18
    %p25 = scmp.eq.s32.totalorder %s9, 1
    %p26 = por %p24, %p25
    %p27 = scmp.ne.s32.totalorder %s19, %s22
    %p28 = scmp.eq.s32.totalorder %s9, 0
    %p29 = por %p27, %p28
    %p30 = scmp.ne.s32.totalorder %s19, %s22
    %p31 = scmp.eq.s32.totalorder %s14, 1
    %p32 = por %p30, %p31
    %p33 = scmp.ne.s32.totalorder %s22, %s23
    %p34 = scmp.eq.s32.totalorder %s14, 0
    %p35 = por %p33, %p34
    %p36 = scmp.ne.s32.totalorder %s22, %s23
    %p37 = scmp.eq.s32.totalorder %s15, 1
    %p38 = por %p36, %p37
    %p40 = scmp.ne.s32.totalorder %s23, %s39
    %p41 = scmp.eq.s32.totalorder %s15, 0
    %p42 = por %p40, %p41
    %s44 = sadd.s32 %s43, 1
    %p47 = scmp.eq.s32.totalorder %s9, 1
    %p48 = scmp.ne.s32.totalorder %s43, %s45
    %p49 = scmp.eq.s32.totalorder %s9, 0
    %p50 = por %p48, %p49
    %p51 = scmp.ne.s32.totalorder %s43, %s45
    %p52 = scmp.eq.s32.totalorder %s14, 1
    %p53 = por %p51, %p52
    %p54 = scmp.ne.s32.totalorder %s45, %s46
    %p55 = scmp.eq.s32.totalorder %s14, 0
    %p56 = por %p54, %p55
    %p57 = scmp.ne.s32.totalorder %s45, %s46
    %p58 = scmp.eq.s32.totalorder %s15, 1
    %p59 = por %p57, %p58
    %p61 = scmp.ne.s32.totalorder %s46, %s60
    %p62 = scmp.eq.s32.totalorder %s15, 0
    %p63 = por %p61, %p62
    %s65 = sadd.s32 %s64, 1
    %p68 = scmp.eq.s32.totalorder %s9, 1
    %p69 = scmp.ne.s32.totalorder %s64, %s66
    %p70 = scmp.eq.s32.totalorder %s9, 0
    %p71 = por %p69, %p70
    %p72 = scmp.ne.s32.totalorder %s64, %s66
    %p73 = scmp.eq.s32.totalorder %s14, 1
    %p74 = por %p72, %p73
    %p75 = scmp.ne.s32.totalorder %s66, %s67
    %p76 = scmp.eq.s32.totalorder %s14, 0
    %p77 = por %p75, %p76
    %p78 = scmp.ne.s32.totalorder %s66, %s67
    %p79 = scmp.eq.s32.totalorder %s15, 1
    %p80 = por %p78, %p79
    %p82 = scmp.ne.s32.totalorder %s67, %s81
    %p83 = scmp.eq.s32.totalorder %s15, 0
    %p84 = por %p82, %p83
    %s85 = ssub.s32 %s9, %s16
    %p86 = scmp.eq.s32.totalorder %s85, 0
    %s88 = sadd.s32 %s87, 1
    %s89 = scalar_select %p86, %s87, %s88
    %p92 = pneg %p86
    %p93 = scmp.eq.s32.totalorder %s9, 1
    %p94 = por %p92, %p93
    %p95 = scmp.ne.s32.totalorder %s87, %s90
    %p96 = scmp.eq.s32.totalorder %s9, 0
    %p97 = por %p95, %p96
    %p98 = scmp.ne.s32.totalorder %s87, %s90
    %p99 = scmp.eq.s32.totalorder %s14, 1
    %p100 = por %p98, %p99
    %p101 = scmp.ne.s32.totalorder %s90, %s91
    %p102 = scmp.eq.s32.totalorder %s14, 0
    %p103 = por %p101, %p102
    %p104 = scmp.ne.s32.totalorder %s90, %s91
    %p105 = scmp.eq.s32.totalorder %s15, 1
    %p106 = por %p104, %p105
    %p108 = scmp.ne.s32.totalorder %s91, %s107
    %p109 = scmp.eq.s32.totalorder %s15, 0
    %p110 = por %p108, %p109
    %p111 = scmp.le.s32.totalorder 1, %s9
    %p112 = scmp.lt.s32.totalorder %s9, 3
    %p113 = pnand %p111, %p112
    %p114 = pneg %p113
    // Predicated region
    $region9: #{deeplab_forward.8} parent=5 // pred_check
      _
    $region10: #{deeplab_forward.8} parent=5 // pred_check_branch
      %116 = sbr.rel (%p113) target = $region12
    $region11: #{deeplab_forward.8} parent=5 // pred_region
      %s117 = ssub.s32 %s9, 1
      // Predicated region
      $region13: #{deeplab_forward.8} parent=11 // pred_check
        %p118 = pneg %p56
      $region14: #{deeplab_forward.8} parent=11 // pred_check_branch
        %120 = sbr.rel (%p118) target = $region16
      $region15: #{deeplab_forward.8} parent=11 // pred_region
        _
      $region16: #{deeplab_forward.8} parent=11 // pred_fallthru
        _
      // Predicated region
      $region17: #{deeplab_forward.8} parent=11 // pred_check
        %p121 = pneg %p77
      $region18: #{deeplab_forward.8} parent=11 // pred_check_branch
        %123 = sbr.rel (%p121) target = $region20
      $region19: #{deeplab_forward.8} parent=11 // pred_region
        _
      $region20: #{deeplab_forward.8} parent=11 // pred_fallthru
        _
    $region12: #{deeplab_forward.8} parent=5 // pred_fallthru
      _
    %p124 = scmp.lt.s32.totalorder %s9, 2
    // Predicated region
    $region21: #{deeplab_forward.8} parent=5 // pred_check
      %p125 = pneg %p124
    $region22: #{deeplab_forward.8} parent=5 // pred_check_branch
      %127 = sbr.rel (%p125) target = $region24
    $region23: #{deeplab_forward.8} parent=5 // pred_region
      // Predicated region
      $region25: #{deeplab_forward.8} parent=23 // pred_check
        %p128 = pneg %p29
      $region26: #{deeplab_forward.8} parent=23 // pred_check_branch
        %130 = sbr.rel (%p128) target = $region28
      $region27: #{deeplab_forward.8} parent=23 // pred_region
        %s131 = smul.u32 32, %s9
        %p132 = scmp.lt.s32.totalorder %s131, 63
        %s133 = scalar_select %p132, %s131, 63
        %s134 = smul.addr %s133, 4
        %s135 = scalar_lea.vmem %s0, %s134
        %s136 = smul.u32 32, %s9
      $region28: #{deeplab_forward.8} parent=23 // pred_fallthru
        _
    $region24: #{deeplab_forward.8} parent=5 // pred_fallthru
      _
    %p137 = scmp.le.s32.totalorder 1, %s9
    %p138 = scmp.lt.s32.totalorder %s9, 3
    %p139 = pnand %p137, %p138
    %p140 = pneg %p139
    // Predicated region
    $region29: #{deeplab_forward.8} parent=5 // pred_check
      _
    $region30: #{deeplab_forward.8} parent=5 // pred_check_branch
      %142 = sbr.rel (%p139) target = $region32
    $region31: #{deeplab_forward.8} parent=5 // pred_region
      %s143 = ssub.s32 %s9, 1
      %s144 = smul.u32 32, %s14
      %p145 = scmp.lt.s32.totalorder %s144, 63
      %s146 = scalar_select %p145, %s144, 63
      %s147 = smul.addr %s146, 4
      %s148 = scalar_lea.vmem %s0, %s147
      %p149 = pneg %p35
      %p150 = pneg %p32
      %p151 = pneg %p56
      %p152 = pneg %p53
      %p153 = pneg %p77
      %p154 = pneg %p74
      %p155 = pneg %p103
      %p156 = pneg %p100
      %s157 = smul.u32 32, %s14
      %p158 = scmp.lt.s32.totalorder %s157, 63
      %s159 = scalar_select %p158, %s157, 63
      %s160 = smul.addr %s159, 4
      %s161 = scalar_lea.vmem %s3, %s160
      %s162 = smul.u32 32, %s14
      %p163 = scmp.lt.s32.totalorder %s162, 63
      %s164 = scalar_select %p163, %s162, 63
      %s165 = smul.addr %s164, 4
      %s166 = scalar_lea.vmem %s0, %s165
      %s167 = smul.u32 32, %s14
      %s168 = smul.u32 32, %s14
      %p169 = scmp.lt.s32.totalorder %s168, 63
      %s170 = scalar_select %p169, %s168, 63
      %s171 = smul.addr %s170, 4
      %s172 = scalar_lea.vmem %s3, %s171
      %s173 = smul.u32 32, %s14
      %v175 = vld [vmem:[%s166] sm:$0xf]
      %v176 = vld [vmem:[%s166 + $0x4] sm:$0xf]
      %v177 = vld [vmem:[%s166 + $0x8] sm:$0xf]
      %v178 = vld [vmem:[%s166 + $0xc] sm:$0xf]
      %v179 = vld [vmem:[%s166 + $0x10] sm:$0xf]
      %v180 = vld [vmem:[%s166 + $0x14] sm:$0xf]
      %v181 = vld [vmem:[%s166 + $0x18] sm:$0xf]
      %v182 = vld [vmem:[%s166 + $0x1c] sm:$0xf]
      %v183 = vld [vmem:[%s166 + $0x20] sm:$0xf]
      %v184 = vld [vmem:[%s166 + $0x24] sm:$0xf]
      %v185 = vld [vmem:[%s166 + $0x28] sm:$0xf]
      %v186 = vld [vmem:[%s166 + $0x2c] sm:$0xf]
      %v187 = vld [vmem:[%s166 + $0x30] sm:$0xf]
      %v188 = vld [vmem:[%s166 + $0x34] sm:$0xf]
      %v189 = vld [vmem:[%s166 + $0x38] sm:$0xf]
      %v190 = vld [vmem:[%s166 + $0x3c] sm:$0xf]
      %v191 = vld [vmem:[%s166 + $0x40] sm:$0xf]
      %v192 = vld [vmem:[%s166 + $0x44] sm:$0xf]
      %v193 = vld [vmem:[%s166 + $0x48] sm:$0xf]
      %v194 = vld [vmem:[%s166 + $0x4c] sm:$0xf]
      %v195 = vld [vmem:[%s166 + $0x50] sm:$0xf]
      %v196 = vld [vmem:[%s166 + $0x54] sm:$0xf]
      %v197 = vld [vmem:[%s166 + $0x58] sm:$0xf]
      %v198 = vld [vmem:[%s166 + $0x5c] sm:$0xf]
      %v199 = vld [vmem:[%s166 + $0x60] sm:$0xf]
      %v200 = vld [vmem:[%s166 + $0x64] sm:$0xf]
      %v201 = vld [vmem:[%s166 + $0x68] sm:$0xf]
      %v202 = vld [vmem:[%s166 + $0x6c] sm:$0xf]
      %v203 = vld [vmem:[%s166 + $0x70] sm:$0xf]
      %v204 = vld [vmem:[%s166 + $0x74] sm:$0xf]
      %v205 = vld [vmem:[%s166 + $0x78] sm:$0xf]
      %v206 = vld [vmem:[%s166 + $0x7c] sm:$0xf]
      %v207 = vld [vmem:[%s1] sm:$0xf]
      %v208 = vld [vmem:[%s1 + $0x4] sm:$0xf]
      %v209 = vld [vmem:[%s1 + $0x8] sm:$0xf]
      %v210 = vld [vmem:[%s1 + $0xc] sm:$0x3]
      %v243 = vunpack.c.l.b16 %v175
      %v244 = vunpack.c.l.b16 %v176
      %v245 = vunpack.c.l.b16 %v177
      %v246 = vunpack.c.l.b16 %v178
      %v247 = vunpack.c.l.b16 %v179
      %v248 = vunpack.c.l.b16 %v180
      %v249 = vunpack.c.l.b16 %v181
      %v250 = vunpack.c.l.b16 %v182
      %v251 = vunpack.c.l.b16 %v183
      %v252 = vunpack.c.l.b16 %v184
      %v253 = vunpack.c.l.b16 %v185
      %v254 = vunpack.c.l.b16 %v186
      %v255 = vunpack.c.l.b16 %v187
      %v256 = vunpack.c.l.b16 %v188
      %v257 = vunpack.c.l.b16 %v189
      %v258 = vunpack.c.l.b16 %v190
      %v259 = vunpack.c.l.b16 %v191
      %v260 = vunpack.c.l.b16 %v192
      %v261 = vunpack.c.l.b16 %v193
      %v262 = vunpack.c.l.b16 %v194
      %v263 = vunpack.c.l.b16 %v195
      %v264 = vunpack.c.l.b16 %v196
      %v265 = vunpack.c.l.b16 %v197
      %v266 = vunpack.c.l.b16 %v198
      %v267 = vunpack.c.l.b16 %v199
      %v268 = vunpack.c.l.b16 %v200
      %v269 = vunpack.c.l.b16 %v201
      %v270 = vunpack.c.l.b16 %v202
      %v271 = vunpack.c.l.b16 %v203
      %v272 = vunpack.c.l.b16 %v204
      %v273 = vunpack.c.l.b16 %v205
      %v274 = vunpack.c.l.b16 %v206
      %v275 = vpack.c.b16 %v244, %v243
      %v276 = vpack.c.b16 %v246, %v245
      %v277 = vpack.c.b16 %v248, %v247
      %v278 = vpack.c.b16 %v250, %v249
      %v279 = vpack.c.b16 %v252, %v251
      %v280 = vpack.c.b16 %v254, %v253
      %v281 = vpack.c.b16 %v256, %v255
      %v282 = vpack.c.b16 %v258, %v257
      %v283 = vpack.c.b16 %v260, %v259
      %v284 = vpack.c.b16 %v262, %v261
      %v285 = vpack.c.b16 %v264, %v263
      %v286 = vpack.c.b16 %v266, %v265
      %v287 = vpack.c.b16 %v268, %v267
      %v288 = vpack.c.b16 %v270, %v269
      %v289 = vpack.c.b16 %v272, %v271
      %v290 = vpack.c.b16 %v274, %v273
      %v295 = vunpack.c.l.b16 %v207
      %v296 = vunpack.c.l.b16 %v208
      %v297 = vunpack.c.l.b16 %v209
      %v298 = vunpack.c.l.b16 %v210
      %v299 = vpack.c.b16 %v296, %v295
      %v300 = vpack.c.b16 %v298, %v297
      %vm302 = vcmask 220160
      %v304 = vsel %vm302, %v275, 0
      %v307 = vsel %vm302, %v276, 0
      %v310 = vsel %vm302, %v277, 0
      %v313 = vsel %vm302, %v278, 0
      %v316 = vsel %vm302, %v279, 0
      %v319 = vsel %vm302, %v280, 0
      %v322 = vsel %vm302, %v281, 0
      %v325 = vsel %vm302, %v282, 0
      %v328 = vsel %vm302, %v283, 0
      %v331 = vsel %vm302, %v284, 0
      %v334 = vsel %vm302, %v285, 0
      %v337 = vsel %vm302, %v286, 0
      %v340 = vsel %vm302, %v287, 0
      %v343 = vsel %vm302, %v288, 0
      %v346 = vsel %vm302, %v289, 0
      %v349 = vsel %vm302, %v290, 0
      %vm351 = vcmask 1044480
      %vm352 = vcmask 1045504
      %v353 = vsel %vm351, 4294967295, 65535
      %v354 = vsel %vm352, %v353, 0
      %v356 = vand.u32 %v300, %v354
      %358 = vmatprep.subr.bf16.mxu0 0
      %359 = vmatpush1.bf16.msra.mxu0 %v299
      %360 = vmatprep.subr.bf16.mxu0 0
      %361 = vmatpush1.bf16.msra.mxu0 %v356
      %362 = vmatprep.subr.bf16.mxu0 0
      %363 = vmatpush1.bf16.msra.mxu0 0
      %364 = vmatprep.subr.bf16.mxu0 0
      %365 = vmatpush1.bf16.msra.mxu0 0
      %366 = vmatprep.subr.bf16.mxu0 0
      %367 = vmatpush1.bf16.msra.mxu0 0
      %368 = vmatprep.subr.bf16.mxu0 0
      %369 = vmatpush1.bf16.msra.mxu0 0
      %370 = vmatprep.subr.bf16.mxu0 0
      %371 = vmatpush1.bf16.msra.mxu0 0
      %372 = vmatprep.subr.bf16.mxu0 0
      %373 = vmatpush1.bf16.msra.mxu0 0
      %374 = vmatprep.subr.bf16.mxu0 0
      %375 = vmatpush1.bf16.msra.mxu0 0
      %376 = vmatprep.subr.bf16.mxu0 0
      %377 = vmatpush1.bf16.msra.mxu0 0
      %378 = vmatprep.subr.bf16.mxu0 0
      %379 = vmatpush1.bf16.msra.mxu0 0
      %380 = vmatprep.subr.bf16.mxu0 0
      %381 = vmatpush1.bf16.msra.mxu0 0
      %382 = vmatprep.subr.bf16.mxu0 0
      %383 = vmatpush1.bf16.msra.mxu0 0
      %384 = vmatprep.subr.bf16.mxu0 0
      %385 = vmatpush1.bf16.msra.mxu0 0
      %386 = vmatprep.subr.bf16.mxu0 0
      %387 = vmatpush1.bf16.msra.mxu0 0
      %388 = vmatprep.subr.bf16.mxu0 0
      %389 = vmatpush1.bf16.msra.mxu0 0
      %390 = vmatprep.mubr.bf16.mxu0 0
      %391 = vmatmul.mubr.bf16.gmra.mrb[0].mxu0 %v304
      %v392 = vpop.f32.mrb[0].mxu0
      %v393 = vadd.f32 0.0, %v392
      %v394 = vpop.f32.mrb[0].mxu0
      %v395 = vpop.f32.mrb[0].mxu0
      %v396 = vadd.f32 0.0, %v395
      %v397 = vpop.f32.mrb[0].mxu0
      %398 = vmatprep.mubr.bf16.mxu0 0
      %399 = vmatmul.mubr.bf16.gmra.mrb[0].mxu0 %v307
      %v400 = vpop.f32.mrb[0].mxu0
      %v401 = vadd.f32 0.0, %v400
      %v402 = vpop.f32.mrb[0].mxu0
      %v403 = vpop.f32.mrb[0].mxu0
      %v404 = vadd.f32 0.0, %v403
      %v405 = vpop.f32.mrb[0].mxu0
      %406 = vmatprep.mubr.bf16.mxu0 0
      %407 = vmatmul.mubr.bf16.gmra.mrb[0].mxu0 %v310
      %v408 = vpop.f32.mrb[0].mxu0
      %v409 = vadd.f32 0.0, %v408
      %v410 = vpop.f32.mrb[0].mxu0
      %v411 = vpop.f32.mrb[0].mxu0
      %v412 = vadd.f32 0.0, %v411
      %v413 = vpop.f32.mrb[0].mxu0
      %414 = vmatprep.mubr.bf16.mxu0 0
      %415 = vmatmul.mubr.bf16.gmra.mrb[0].mxu0 %v313
      %v416 = vpop.f32.mrb[0].mxu0
      %v417 = vadd.f32 0.0, %v416
      %v418 = vpop.f32.mrb[0].mxu0
      %v419 = vpop.f32.mrb[0].mxu0
      %v420 = vadd.f32 0.0, %v419
      %v421 = vpop.f32.mrb[0].mxu0
      %422 = vmatprep.mubr.bf16.mxu0 0
      %423 = vmatmul.mubr.bf16.gmra.mrb[0].mxu0 %v316
      %v424 = vpop.f32.mrb[0].mxu0
      %v425 = vadd.f32 0.0, %v424
      %v426 = vpop.f32.mrb[0].mxu0
      %v427 = vpop.f32.mrb[0].mxu0
      %v428 = vadd.f32 0.0, %v427
      %v429 = vpop.f32.mrb[0].mxu0
      %430 = vmatprep.mubr.bf16.mxu0 0
      %431 = vmatmul.mubr.bf16.gmra.mrb[0].mxu0 %v319
      %v432 = vpop.f32.mrb[0].mxu0
      %v433 = vadd.f32 0.0, %v432
      %v434 = vpop.f32.mrb[0].mxu0
      %v435 = vpop.f32.mrb[0].mxu0
      %v436 = vadd.f32 0.0, %v435
      %v437 = vpop.f32.mrb[0].mxu0
      %438 = vmatprep.mubr.bf16.mxu0 0
      %439 = vmatmul.mubr.bf16.gmra.mrb[0].mxu0 %v322
      %v440 = vpop.f32.mrb[0].mxu0
      %v441 = vadd.f32 0.0, %v440
      %v442 = vpop.f32.mrb[0].mxu0
      %v443 = vpop.f32.mrb[0].mxu0
      %v444 = vadd.f32 0.0, %v443
      %v445 = vpop.f32.mrb[0].mxu0
      %446 = vmatprep.mubr.bf16.mxu0 0
      %447 = vmatmul.mubr.bf16.gmra.mrb[0].mxu0 %v325
      %v448 = vpop.f32.mrb[0].mxu0
      %v449 = vadd.f32 0.0, %v448
      %v450 = vpop.f32.mrb[0].mxu0
      %v451 = vpop.f32.mrb[0].mxu0
      %v452 = vadd.f32 0.0, %v451
      %v453 = vpop.f32.mrb[0].mxu0
      %454 = vmatprep.mubr.bf16.mxu0 0
      %455 = vmatmul.mubr.bf16.gmra.mrb[0].mxu0 %v328
      %v456 = vpop.f32.mrb[0].mxu0
      %v457 = vadd.f32 0.0, %v456
      %v458 = vpop.f32.mrb[0].mxu0
      %v459 = vpop.f32.mrb[0].mxu0
      %v460 = vadd.f32 0.0, %v459
      %v461 = vpop.f32.mrb[0].mxu0
      %462 = vmatprep.mubr.bf16.mxu0 0
      %463 = vmatmul.mubr.bf16.gmra.mrb[0].mxu0 %v331
      %v464 = vpop.f32.mrb[0].mxu0
      %v465 = vadd.f32 0.0, %v464
      %v466 = vpop.f32.mrb[0].mxu0
      %v467 = vpop.f32.mrb[0].mxu0
      %v468 = vadd.f32 0.0, %v467
      %v469 = vpop.f32.mrb[0].mxu0
      %470 = vmatprep.mubr.bf16.mxu0 0
      %471 = vmatmul.mubr.bf16.gmra.mrb[0].mxu0 %v334
      %v472 = vpop.f32.mrb[0].mxu0
      %v473 = vadd.f32 0.0, %v472
      %v474 = vpop.f32.mrb[0].mxu0
      %v475 = vpop.f32.mrb[0].mxu0
      %v476 = vadd.f32 0.0, %v475
      %v477 = vpop.f32.mrb[0].mxu0
      %478 = vmatprep.mubr.bf16.mxu0 0
      %479 = vmatmul.mubr.bf16.gmra.mrb[0].mxu0 %v337
      %v480 = vpop.f32.mrb[0].mxu0
      %v481 = vadd.f32 0.0, %v480
      %v482 = vpop.f32.mrb[0].mxu0
      %v483 = vpop.f32.mrb[0].mxu0
      %v484 = vadd.f32 0.0, %v483
      %v485 = vpop.f32.mrb[0].mxu0
      %486 = vmatprep.mubr.bf16.mxu0 0
      %487 = vmatmul.mubr.bf16.gmra.mrb[0].mxu0 %v340
      %v488 = vpop.f32.mrb[0].mxu0
      %v489 = vadd.f32 0.0, %v488
      %v490 = vpop.f32.mrb[0].mxu0
      %v491 = vpop.f32.mrb[0].mxu0
      %v492 = vadd.f32 0.0, %v491
      %v493 = vpop.f32.mrb[0].mxu0
      %494 = vmatprep.mubr.bf16.mxu0 0
      %495 = vmatmul.mubr.bf16.gmra.mrb[0].mxu0 %v343
      %v496 = vpop.f32.mrb[0].mxu0
      %v497 = vadd.f32 0.0, %v496
      %v498 = vpop.f32.mrb[0].mxu0
      %v499 = vpop.f32.mrb[0].mxu0
      %v500 = vadd.f32 0.0, %v499
      %v501 = vpop.f32.mrb[0].mxu0
      %502 = vmatprep.mubr.bf16.mxu0 0
      %503 = vmatmul.mubr.bf16.gmra.mrb[0].mxu0 %v346
      %v504 = vpop.f32.mrb[0].mxu0
      %v505 = vadd.f32 0.0, %v504
      %v506 = vpop.f32.mrb[0].mxu0
      %v507 = vpop.f32.mrb[0].mxu0
      %v508 = vadd.f32 0.0, %v507
      %v509 = vpop.f32.mrb[0].mxu0
      %510 = vmatprep.mubr.bf16.mxu0 0
      %511 = vmatmul.mubr.bf16.gmra.mrb[0].mxu0 %v349
      %v512 = vpop.f32.mrb[0].mxu0
      %v513 = vadd.f32 0.0, %v512
      %v514 = vpop.f32.mrb[0].mxu0
      %v515 = vpop.f32.mrb[0].mxu0
      %v516 = vadd.f32 0.0, %v515
      %v517 = vpop.f32.mrb[0].mxu0
      %518 = vdwg.mxu0
      %v519 = vld [vmem:[%s2] sm:$0x1]
      %v520 = vlaneseq
      %v521 = vshrl.u32 %v520, 7
      %v522 = vsub.s32 0, %v521
      %v523 = vrot.slane %v519, %v522
      %v524 = vmul.f32 %v393, %v523
      %v525 = vmul.f32 %v396, %v523
      %v526 = vmul.f32 %v401, %v523
      %v527 = vmul.f32 %v404, %v523
      %v528 = vmul.f32 %v409, %v523
      %v529 = vmul.f32 %v412, %v523
      %v530 = vmul.f32 %v417, %v523
      %v531 = vmul.f32 %v420, %v523
      %v532 = vmul.f32 %v425, %v523
      %v533 = vmul.f32 %v428, %v523
      %v534 = vmul.f32 %v433, %v523
      %v535 = vmul.f32 %v436, %v523
      %v536 = vmul.f32 %v441, %v523
      %v537 = vmul.f32 %v444, %v523
      %v538 = vmul.f32 %v449, %v523
      %v539 = vmul.f32 %v452, %v523
      %v540 = vmul.f32 %v457, %v523
      %v541 = vmul.f32 %v460, %v523
      %v542 = vmul.f32 %v465, %v523
      %v543 = vmul.f32 %v468, %v523
      %v544 = vmul.f32 %v473, %v523
      %v545 = vmul.f32 %v476, %v523
      %v546 = vmul.f32 %v481, %v523
      %v547 = vmul.f32 %v484, %v523
      %v548 = vmul.f32 %v489, %v523
      %v549 = vmul.f32 %v492, %v523
      %v550 = vmul.f32 %v497, %v523
      %v551 = vmul.f32 %v500, %v523
      %v552 = vmul.f32 %v505, %v523
      %v553 = vmul.f32 %v508, %v523
      %v554 = vmul.f32 %v513, %v523
      %v555 = vmul.f32 %v516, %v523
      %v556 = vld [vmem:[%s2 + $0x1] sm:$0x1]
      %v557 = vlaneseq
      %v558 = vshrl.u32 %v557, 7
      %v559 = vsub.s32 0, %v558
      %v560 = vrot.slane %v556, %v559
      %v561 = vadd.f32 %v524, %v560
      %v562 = vadd.f32 %v525, %v560
      %v563 = vadd.f32 %v526, %v560
      %v564 = vadd.f32 %v527, %v560
      %v565 = vadd.f32 %v528, %v560
      %v566 = vadd.f32 %v529, %v560
      %v567 = vadd.f32 %v530, %v560
      %v568 = vadd.f32 %v531, %v560
      %v569 = vadd.f32 %v532, %v560
      %v570 = vadd.f32 %v533, %v560
      %v571 = vadd.f32 %v534, %v560
      %v572 = vadd.f32 %v535, %v560
      %v573 = vadd.f32 %v536, %v560
      %v574 = vadd.f32 %v537, %v560
      %v575 = vadd.f32 %v538, %v560
      %v576 = vadd.f32 %v539, %v560
      %v577 = vadd.f32 %v540, %v560
      %v578 = vadd.f32 %v541, %v560
      %v579 = vadd.f32 %v542, %v560
      %v580 = vadd.f32 %v543, %v560
      %v581 = vadd.f32 %v544, %v560
      %v582 = vadd.f32 %v545, %v560
      %v583 = vadd.f32 %v546, %v560
      %v584 = vadd.f32 %v547, %v560
      %v585 = vadd.f32 %v548, %v560
      %v586 = vadd.f32 %v549, %v560
      %v587 = vadd.f32 %v550, %v560
      %v588 = vadd.f32 %v551, %v560
      %v589 = vadd.f32 %v552, %v560
      %v590 = vadd.f32 %v553, %v560
      %v591 = vadd.f32 %v554, %v560
      %v592 = vadd.f32 %v555, %v560
      %v593 = vmax.f32 %v561, 0.0
      %v594 = vmax.f32 %v562, 0.0
      %v595 = vmax.f32 %v563, 0.0
      %v596 = vmax.f32 %v564, 0.0
      %v597 = vmax.f32 %v565, 0.0
      %v598 = vmax.f32 %v566, 0.0
      %v599 = vmax.f32 %v567, 0.0
      %v600 = vmax.f32 %v568, 0.0
      %v601 = vmax.f32 %v569, 0.0
      %v602 = vmax.f32 %v570, 0.0
      %v603 = vmax.f32 %v571, 0.0
      %v604 = vmax.f32 %v572, 0.0
      %v605 = vmax.f32 %v573, 0.0
      %v606 = vmax.f32 %v574, 0.0
      %v607 = vmax.f32 %v575, 0.0
      %v608 = vmax.f32 %v576, 0.0
      %v609 = vmax.f32 %v577, 0.0
      %v610 = vmax.f32 %v578, 0.0
      %v611 = vmax.f32 %v579, 0.0
      %v612 = vmax.f32 %v580, 0.0
      %v613 = vmax.f32 %v581, 0.0
      %v614 = vmax.f32 %v582, 0.0
      %v615 = vmax.f32 %v583, 0.0
      %v616 = vmax.f32 %v584, 0.0
      %v617 = vmax.f32 %v585, 0.0
      %v618 = vmax.f32 %v586, 0.0
      %v619 = vmax.f32 %v587, 0.0
      %v620 = vmax.f32 %v588, 0.0
      %v621 = vmax.f32 %v589, 0.0
      %v622 = vmax.f32 %v590, 0.0
      %v623 = vmax.f32 %v591, 0.0
      %v624 = vmax.f32 %v592, 0.0
      %v625 = vpack.c.bf16 %v594, %v593
      %v626 = vpack.c.bf16 %v596, %v595
      %v627 = vpack.c.bf16 %v598, %v597
      %v628 = vpack.c.bf16 %v600, %v599
      %v629 = vpack.c.bf16 %v602, %v601
      %v630 = vpack.c.bf16 %v604, %v603
      %v631 = vpack.c.bf16 %v606, %v605
      %v632 = vpack.c.bf16 %v608, %v607
      %v633 = vpack.c.bf16 %v610, %v609
      %v634 = vpack.c.bf16 %v612, %v611
      %v635 = vpack.c.bf16 %v614, %v613
      %v636 = vpack.c.bf16 %v616, %v615
      %v637 = vpack.c.bf16 %v618, %v617
      %v638 = vpack.c.bf16 %v620, %v619
      %v639 = vpack.c.bf16 %v622, %v621
      %v640 = vpack.c.bf16 %v624, %v623
      %v657 = vunpack.c.l.b16 %v625
      %v658 = vunpack.c.h.b16 %v625
      %v659 = vunpack.c.l.b16 %v626
      %v660 = vunpack.c.h.b16 %v626
      %v661 = vunpack.c.l.b16 %v627
      %v662 = vunpack.c.h.b16 %v627
      %v663 = vunpack.c.l.b16 %v628
      %v664 = vunpack.c.h.b16 %v628
      %v665 = vunpack.c.l.b16 %v629
      %v666 = vunpack.c.h.b16 %v629
      %v667 = vunpack.c.l.b16 %v630
      %v668 = vunpack.c.h.b16 %v630
      %v669 = vunpack.c.l.b16 %v631
      %v670 = vunpack.c.h.b16 %v631
      %v671 = vunpack.c.l.b16 %v632
      %v672 = vunpack.c.h.b16 %v632
      %v673 = vunpack.c.l.b16 %v633
      %v674 = vunpack.c.h.b16 %v633
      %v675 = vunpack.c.l.b16 %v634
      %v676 = vunpack.c.h.b16 %v634
      %v677 = vunpack.c.l.b16 %v635
      %v678 = vunpack.c.h.b16 %v635
      %v679 = vunpack.c.l.b16 %v636
      %v680 = vunpack.c.h.b16 %v636
      %v681 = vunpack.c.l.b16 %v637
      %v682 = vunpack.c.h.b16 %v637
      %v683 = vunpack.c.l.b16 %v638
      %v684 = vunpack.c.h.b16 %v638
      %v685 = vunpack.c.l.b16 %v639
      %v686 = vunpack.c.h.b16 %v639
      %v687 = vunpack.c.l.b16 %v640
      %v688 = vunpack.c.h.b16 %v640
      %v689 = vpack.c.b16 %v657, %v657
      %v690 = vpack.c.b16 %v658, %v658
      %v691 = vpack.c.b16 %v659, %v659
      %v692 = vpack.c.b16 %v660, %v660
      %v693 = vpack.c.b16 %v661, %v661
      %v694 = vpack.c.b16 %v662, %v662
      %v695 = vpack.c.b16 %v663, %v663
      %v696 = vpack.c.b16 %v664, %v664
      %v697 = vpack.c.b16 %v665, %v665
      %v698 = vpack.c.b16 %v666, %v666
      %v699 = vpack.c.b16 %v667, %v667
      %v700 = vpack.c.b16 %v668, %v668
      %v701 = vpack.c.b16 %v669, %v669
      %v702 = vpack.c.b16 %v670, %v670
      %v703 = vpack.c.b16 %v671, %v671
      %v704 = vpack.c.b16 %v672, %v672
      %v705 = vpack.c.b16 %v673, %v673
      %v706 = vpack.c.b16 %v674, %v674
      %v707 = vpack.c.b16 %v675, %v675
      %v708 = vpack.c.b16 %v676, %v676
      %v709 = vpack.c.b16 %v677, %v677
      %v710 = vpack.c.b16 %v678, %v678
      %v711 = vpack.c.b16 %v679, %v679
      %v712 = vpack.c.b16 %v680, %v680
      %v713 = vpack.c.b16 %v681, %v681
      %v714 = vpack.c.b16 %v682, %v682
      %v715 = vpack.c.b16 %v683, %v683
      %v716 = vpack.c.b16 %v684, %v684
      %v717 = vpack.c.b16 %v685, %v685
      %v718 = vpack.c.b16 %v686, %v686
      %v719 = vpack.c.b16 %v687, %v687
      %v720 = vpack.c.b16 %v688, %v688
      %vm753 = vcmask 125952
      %754 = vst.msk [vmem:[%s172] sm:$0xf] %vm753, %v689
      %755 = vst.msk [vmem:[%s172 + $0x4] sm:$0xf] %vm753, %v690
      %756 = vst.msk [vmem:[%s172 + $0x8] sm:$0xf] %vm753, %v691
      %757 = vst.msk [vmem:[%s172 + $0xc] sm:$0xf] %vm753, %v692
      %758 = vst.msk [vmem:[%s172 + $0x10] sm:$0xf] %vm753, %v693
      %759 = vst.msk [vmem:[%s172 + $0x14] sm:$0xf] %vm753, %v694
      %760 = vst.msk [vmem:[%s172 + $0x18] sm:$0xf] %vm753, %v695
      %761 = vst.msk [vmem:[%s172 + $0x1c] sm:$0xf] %vm753, %v696
      %762 = vst.msk [vmem:[%s172 + $0x20] sm:$0xf] %vm753, %v697
      %763 = vst.msk [vmem:[%s172 + $0x24] sm:$0xf] %vm753, %v698
      %764 = vst.msk [vmem:[%s172 + $0x28] sm:$0xf] %vm753, %v699
      %765 = vst.msk [vmem:[%s172 + $0x2c] sm:$0xf] %vm753, %v700
      %766 = vst.msk [vmem:[%s172 + $0x30] sm:$0xf] %vm753, %v701
      %767 = vst.msk [vmem:[%s172 + $0x34] sm:$0xf] %vm753, %v702
      %768 = vst.msk [vmem:[%s172 + $0x38] sm:$0xf] %vm753, %v703
      %769 = vst.msk [vmem:[%s172 + $0x3c] sm:$0xf] %vm753, %v704
      %770 = vst.msk [vmem:[%s172 + $0x40] sm:$0xf] %vm753, %v705
      %771 = vst.msk [vmem:[%s172 + $0x44] sm:$0xf] %vm753, %v706
      %772 = vst.msk [vmem:[%s172 + $0x48] sm:$0xf] %vm753, %v707
      %773 = vst.msk [vmem:[%s172 + $0x4c] sm:$0xf] %vm753, %v708
      %774 = vst.msk [vmem:[%s172 + $0x50] sm:$0xf] %vm753, %v709
      %775 = vst.msk [vmem:[%s172 + $0x54] sm:$0xf] %vm753, %v710
      %776 = vst.msk [vmem:[%s172 + $0x58] sm:$0xf] %vm753, %v711
      %777 = vst.msk [vmem:[%s172 + $0x5c] sm:$0xf] %vm753, %v712
      %778 = vst.msk [vmem:[%s172 + $0x60] sm:$0xf] %vm753, %v713
      %779 = vst.msk [vmem:[%s172 + $0x64] sm:$0xf] %vm753, %v714
      %780 = vst.msk [vmem:[%s172 + $0x68] sm:$0xf] %vm753, %v715
      %781 = vst.msk [vmem:[%s172 + $0x6c] sm:$0xf] %vm753, %v716
      %782 = vst.msk [vmem:[%s172 + $0x70] sm:$0xf] %vm753, %v717
      %783 = vst.msk [vmem:[%s172 + $0x74] sm:$0xf] %vm753, %v718
      %784 = vst.msk [vmem:[%s172 + $0x78] sm:$0xf] %vm753, %v719
      %785 = vst.msk [vmem:[%s172 + $0x7c] sm:$0xf] %vm753, %v720
      %s786 = smul.u32 32, %s14
      %p787 = scmp.lt.s32.totalorder %s786, 63
      %s788 = scalar_select %p787, %s786, 63
      %s789 = smul.addr %s788, 4
      %s790 = scalar_lea.vmem %s3, %s789
      // Predicated region
      $region33: #{deeplab_forward.8} parent=31 // pred_check
        %p791 = pneg %p100
      $region34: #{deeplab_forward.8} parent=31 // pred_check_branch
        %793 = sbr.rel (%p791) target = $region36
      $region35: #{deeplab_forward.8} parent=31 // pred_region
        %s794 = smul.u32 32, %s14
      $region36: #{deeplab_forward.8} parent=31 // pred_fallthru
        _
    $region32: #{deeplab_forward.8} parent=5 // pred_fallthru
      _
    %p795 = scmp.le.s32.totalorder 2, %s9
    // Predicated region
    $region37: #{deeplab_forward.8} parent=5 // pred_check
      %p796 = pneg %p795
    $region38: #{deeplab_forward.8} parent=5 // pred_check_branch
      %798 = sbr.rel (%p796) target = $region40
    $region39: #{deeplab_forward.8} parent=5 // pred_region
      %s799 = ssub.s32 %s9, 2
      // Predicated region
      $region41: #{deeplab_forward.8} parent=39 // pred_check
        %p800 = pneg %p106
      $region42: #{deeplab_forward.8} parent=39 // pred_check_branch
        %802 = sbr.rel (%p800) target = $region44
      $region43: #{deeplab_forward.8} parent=39 // pred_region
        %s803 = smul.u32 32, %s15
        %p804 = scmp.lt.s32.totalorder %s803, 63
        %s805 = scalar_select %p804, %s803, 63
        %s806 = smul.addr %s805, 4
        %s807 = scalar_lea.vmem %s3, %s806
      $region44: #{deeplab_forward.8} parent=39 // pred_fallthru
        _
    $region40: #{deeplab_forward.8} parent=5 // pred_fallthru
      _
  $region6: #{deeplab_forward.8} parent=0 // loop_footer
    %s13 = sadd.s32 1, %s9
  $region7: #{deeplab_forward.8} parent=0 // loop_footer_branch
    %8 = sbr.rel target = $region3
  $region8: #{deeplab_forward.8} parent=0 // loop_exit
    _

// kernel: deeplab_forward.9
$region0: #{deeplab_forward.9}
  #allocation0 [shape = 'u32[]', space=smem, size = 0x4, offset = 0x4, fixed_abs, tag = 'smem constant byte address 0x4 - core index']
  #allocation1 [shape = 'u32[144,128]{1,0:T(1,128)}', space=vmem, size = 0x12000, scoped, tag = 'internal scratch']
  %s0 = inlined_call_operand.vmem [shape: bf16[128,144], index: 0, kind: input, shape index: {}]
  %s1 = inlined_call_operand.vmem [shape: bf16[144,24], index: 1, kind: input, shape index: {}]
  %s2 = inlined_call_operand.vmem [shape: f32[2,24], index: 2, kind: input, shape index: {}]
  %s3 = inlined_call_operand.vmem [shape: bf16[128,24], index: 3, kind: output, shape index: {}]
  %s4 = sld [smem:[#allocation0]]
  $region45: #{deeplab_forward.9} parent=0
    _
  %s6 = ssub.s32 1, %s4
  %s7 = scalar_select 0, %s6, %s4
  loop: start=0, step=1, limit=4
  $region2: #{deeplab_forward.9} parent=0 // loop_pre_header
    _
  $region3: #{deeplab_forward.9} parent=0 // loop_header
    %s9 = sphi 0, %s13
    %p10 = scmp.ge.s32.totalorder %s9, 4
    %s19 = sphi 0, %s21
    %s22 = sphi 0, %s19
    %s23 = sphi 0, %s22
    %s39 = sphi 0, %s23
    %s43 = sphi 0, %s43
    %s45 = sphi 0, %s43
    %s46 = sphi 0, %s45
    %s60 = sphi 0, %s46
    %s64 = sphi 0, %s64
    %s66 = sphi 0, %s64
    %s67 = sphi 0, %s66
    %s81 = sphi 0, %s67
    %s87 = sphi 0, %s89
    %s90 = sphi 0, %s87
    %s91 = sphi 0, %s90
    %s107 = sphi 0, %s91
  $region4: #{deeplab_forward.9} parent=0 // loop_header_branch
    %12 = sbr.rel (%p10) target = $region8
  $region5: #{deeplab_forward.9} parent=0 // loop_body
    %s14 = ssub.s32 %s9, 1
    %s15 = ssub.s32 %s9, 2
    %s16 = sadd.s32 %s9, 1
    %s17 = ssub.s32 %s9, %s16
    %p18 = scmp.eq.s32.totalorder %s17, 0
    %s20 = sadd.s32 %s19, 1
    %s21 = scalar_select %p18, %s19, %s20
    %p24 = pneg %p18
    %p25 = scmp.eq.s32.totalorder %s9, 1
    %p26 = por %p24, %p25
    %p27 = scmp.ne.s32.totalorder %s19, %s22
    %p28 = scmp.eq.s32.totalorder %s9, 0
    %p29 = por %p27, %p28
    %p30 = scmp.ne.s32.totalorder %s19, %s22
    %p31 = scmp.eq.s32.totalorder %s14, 1
    %p32 = por %p30, %p31
    %p33 = scmp.ne.s32.totalorder %s22, %s23
    %p34 = scmp.eq.s32.totalorder %s14, 0
    %p35 = por %p33, %p34
    %p36 = scmp.ne.s32.totalorder %s22, %s23
    %p37 = scmp.eq.s32.totalorder %s15, 1
    %p38 = por %p36, %p37
    %p40 = scmp.ne.s32.totalorder %s23, %s39
    %p41 = scmp.eq.s32.totalorder %s15, 0
    %p42 = por %p40, %p41
    %s44 = sadd.s32 %s43, 1
    %p47 = scmp.eq.s32.totalorder %s9, 1
    %p48 = scmp.ne.s32.totalorder %s43, %s45
    %p49 = scmp.eq.s32.totalorder %s9, 0
    %p50 = por %p48, %p49
    %p51 = scmp.ne.s32.totalorder %s43, %s45
    %p52 = scmp.eq.s32.totalorder %s14, 1
    %p53 = por %p51, %p52
    %p54 = scmp.ne.s32.totalorder %s45, %s46
    %p55 = scmp.eq.s32.totalorder %s14, 0
    %p56 = por %p54, %p55
    %p57 = scmp.ne.s32.totalorder %s45, %s46
    %p58 = scmp.eq.s32.totalorder %s15, 1
    %p59 = por %p57, %p58
    %p61 = scmp.ne.s32.totalorder %s46, %s60
    %p62 = scmp.eq.s32.totalorder %s15, 0
    %p63 = por %p61, %p62
    %s65 = sadd.s32 %s64, 1
    %p68 = scmp.eq.s32.totalorder %s9, 1
    %p69 = scmp.ne.s32.totalorder %s64, %s66
    %p70 = scmp.eq.s32.totalorder %s9, 0
    %p71 = por %p69, %p70
    %p72 = scmp.ne.s32.totalorder %s64, %s66
    %p73 = scmp.eq.s32.totalorder %s14, 1
    %p74 = por %p72, %p73
    %p75 = scmp.ne.s32.totalorder %s66, %s67
    %p76 = scmp.eq.s32.totalorder %s14, 0
    %p77 = por %p75, %p76
    %p78 = scmp.ne.s32.totalorder %s66, %s67
    %p79 = scmp.eq.s32.totalorder %s15, 1
    %p80 = por %p78, %p79
    %p82 = scmp.ne.s32.totalorder %s67, %s81
    %p83 = scmp.eq.s32.totalorder %s15, 0
    %p84 = por %p82, %p83
    %s85 = ssub.s32 %s9, %s16
    %p86 = scmp.eq.s32.totalorder %s85, 0
    %s88 = sadd.s32 %s87, 1
    %s89 = scalar_select %p86, %s87, %s88
    %p92 = pneg %p86
    %p93 = scmp.eq.s32.totalorder %s9, 1
    %p94 = por %p92, %p93
    %p95 = scmp.ne.s32.totalorder %s87, %s90
    %p96 = scmp.eq.s32.totalorder %s9, 0
    %p97 = por %p95, %p96
    %p98 = scmp.ne.s32.totalorder %s87, %s90
    %p99 = scmp.eq.s32.totalorder %s14, 1
    %p100 = por %p98, %p99
    %p101 = scmp.ne.s32.totalorder %s90, %s91
    %p102 = scmp.eq.s32.totalorder %s14, 0
    %p103 = por %p101, %p102
    %p104 = scmp.ne.s32.totalorder %s90, %s91
    %p105 = scmp.eq.s32.totalorder %s15, 1
    %p106 = por %p104, %p105
    %p108 = scmp.ne.s32.totalorder %s91, %s107
    %p109 = scmp.eq.s32.totalorder %s15, 0
    %p110 = por %p108, %p109
    %p111 = scmp.le.s32.totalorder 1, %s9
    %p112 = scmp.lt.s32.totalorder %s9, 3
    %p113 = pnand %p111, %p112
    %p114 = pneg %p113
    // Predicated region
    $region9: #{deeplab_forward.9} parent=5 // pred_check
      _
    $region10: #{deeplab_forward.9} parent=5 // pred_check_branch
      %116 = sbr.rel (%p113) target = $region12
    $region11: #{deeplab_forward.9} parent=5 // pred_region
      %s117 = ssub.s32 %s9, 1
      // Predicated region
      $region13: #{deeplab_forward.9} parent=11 // pred_check
        %p118 = pneg %p56
      $region14: #{deeplab_forward.9} parent=11 // pred_check_branch
        %120 = sbr.rel (%p118) target = $region16
      $region15: #{deeplab_forward.9} parent=11 // pred_region
        _
      $region16: #{deeplab_forward.9} parent=11 // pred_fallthru
        _
      // Predicated region
      $region17: #{deeplab_forward.9} parent=11 // pred_check
        %p121 = pneg %p77
      $region18: #{deeplab_forward.9} parent=11 // pred_check_branch
        %123 = sbr.rel (%p121) target = $region20
      $region19: #{deeplab_forward.9} parent=11 // pred_region
        _
      $region20: #{deeplab_forward.9} parent=11 // pred_fallthru
        _
    $region12: #{deeplab_forward.9} parent=5 // pred_fallthru
      _
    %p124 = scmp.lt.s32.totalorder %s9, 2
    // Predicated region
    $region21: #{deeplab_forward.9} parent=5 // pred_check
      %p125 = pneg %p124
    $region22: #{deeplab_forward.9} parent=5 // pred_check_branch
      %127 = sbr.rel (%p125) target = $region24
    $region23: #{deeplab_forward.9} parent=5 // pred_region
      // Predicated region
      $region25: #{deeplab_forward.9} parent=23 // pred_check
        %p128 = pneg %p29
      $region26: #{deeplab_forward.9} parent=23 // pred_check_branch
        %130 = sbr.rel (%p128) target = $region28
      $region27: #{deeplab_forward.9} parent=23 // pred_region
        %s131 = smul.u32 8, %s9
        %p132 = scmp.lt.s32.totalorder %s131, 15
        %s133 = scalar_select %p132, %s131, 15
        %s134 = smul.addr %s133, 2
        %s135 = smul.addr %s134, 4
        %s136 = scalar_lea.vmem %s0, %s135
        %s137 = smul.u32 8, %s9
      $region28: #{deeplab_forward.9} parent=23 // pred_fallthru
        _
    $region24: #{deeplab_forward.9} parent=5 // pred_fallthru
      _
    %p138 = scmp.le.s32.totalorder 1, %s9
    %p139 = scmp.lt.s32.totalorder %s9, 3
    %p140 = pnand %p138, %p139
    %p141 = pneg %p140
    // Predicated region
    $region29: #{deeplab_forward.9} parent=5 // pred_check
      _
    $region30: #{deeplab_forward.9} parent=5 // pred_check_branch
      %143 = sbr.rel (%p140) target = $region32
    $region31: #{deeplab_forward.9} parent=5 // pred_region
      %s144 = ssub.s32 %s9, 1
      %s145 = smul.u32 8, %s14
      %p146 = scmp.lt.s32.totalorder %s145, 15
      %s147 = scalar_select %p146, %s145, 15
      %s148 = smul.addr %s147, 2
      %s149 = smul.addr %s148, 4
      %s150 = scalar_lea.vmem %s0, %s149
      %p151 = pneg %p35
      %p152 = pneg %p32
      %p153 = pneg %p56
      %p154 = pneg %p53
      %p155 = pneg %p77
      %p156 = pneg %p74
      %p157 = pneg %p103
      %p158 = pneg %p100
      %s159 = smul.u32 8, %s14
      %p160 = scmp.lt.s32.totalorder %s159, 15
      %s161 = scalar_select %p160, %s159, 15
      %s162 = smul.addr %s161, 4
      %s163 = scalar_lea.vmem %s3, %s162
      %s164 = smul.u32 8, %s14
      %p165 = scmp.lt.s32.totalorder %s164, 15
      %s166 = scalar_select %p165, %s164, 15
      %s167 = smul.addr %s166, 2
      %s168 = smul.addr %s167, 4
      %s169 = scalar_lea.vmem %s0, %s168
      %s170 = smul.u32 8, %s14
      %s171 = smul.u32 8, %s14
      %p172 = scmp.lt.s32.totalorder %s171, 15
      %s173 = scalar_select %p172, %s171, 15
      %s174 = smul.addr %s173, 4
      %s175 = scalar_lea.vmem %s3, %s174
      %s176 = smul.u32 8, %s14
      %v178 = vld [vmem:[%s169] sm:$0xff]
      %v179 = vld [vmem:[%s169 + $0x8] sm:$0xff]
      %v180 = vld [vmem:[%s169 + $0x10] sm:$0xff]
      %v181 = vld [vmem:[%s169 + $0x18] sm:$0xff]
      %v182 = vld [vmem:[%s169 + $0x20] sm:$0xff]
      %v183 = vld [vmem:[%s169 + $0x28] sm:$0xff]
      %v184 = vld [vmem:[%s169 + $0x30] sm:$0xff]
      %v185 = vld [vmem:[%s169 + $0x38] sm:$0xff]
      %v186 = vld [vmem:[%s1] sm:$0xf]
      %v187 = vld [vmem:[%s1 + $0x4] sm:$0xf]
      %v188 = vld [vmem:[%s1 + $0x8] sm:$0xf]
      %v189 = vld [vmem:[%s1 + $0xc] sm:$0xf]
      %v190 = vld [vmem:[%s1 + $0x10] sm:$0xf]
      %v191 = vld [vmem:[%s1 + $0x14] sm:$0xf]
      %v192 = vld [vmem:[%s1 + $0x18] sm:$0xf]
      %v193 = vld [vmem:[%s1 + $0x1c] sm:$0xf]
      %v194 = vld [vmem:[%s1 + $0x20] sm:$0xf]
      %v195 = vld [vmem:[%s1 + $0x24] sm:$0xf]
      %v196 = vld [vmem:[%s1 + $0x28] sm:$0xf]
      %v197 = vld [vmem:[%s1 + $0x2c] sm:$0xf]
      %v198 = vld [vmem:[%s1 + $0x30] sm:$0xf]
      %v199 = vld [vmem:[%s1 + $0x34] sm:$0xf]
      %v200 = vld [vmem:[%s1 + $0x38] sm:$0xf]
      %v201 = vld [vmem:[%s1 + $0x3c] sm:$0xf]
      %v202 = vld [vmem:[%s1 + $0x40] sm:$0xf]
      %v203 = vld [vmem:[%s1 + $0x44] sm:$0xf]
      %v212 = vunpack.c.l.b16 %v178
      %v213 = vunpack.c.h.b16 %v178
      %v214 = vunpack.c.l.b16 %v179
      %v215 = vunpack.c.h.b16 %v179
      %v216 = vunpack.c.l.b16 %v180
      %v217 = vunpack.c.h.b16 %v180
      %v218 = vunpack.c.l.b16 %v181
      %v219 = vunpack.c.h.b16 %v181
      %v220 = vunpack.c.l.b16 %v182
      %v221 = vunpack.c.h.b16 %v182
      %v222 = vunpack.c.l.b16 %v183
      %v223 = vunpack.c.h.b16 %v183
      %v224 = vunpack.c.l.b16 %v184
      %v225 = vunpack.c.h.b16 %v184
      %v226 = vunpack.c.l.b16 %v185
      %v227 = vunpack.c.h.b16 %v185
      %v228 = vpack.c.b16 %v214, %v212
      %v229 = vpack.c.b16 %v215, %v213
      %v230 = vpack.c.b16 %v218, %v216
      %v231 = vpack.c.b16 %v219, %v217
      %v232 = vpack.c.b16 %v222, %v220
      %v233 = vpack.c.b16 %v223, %v221
      %v234 = vpack.c.b16 %v226, %v224
      %v235 = vpack.c.b16 %v227, %v225
      %v258 = vunpack.c.l.b16 %v186
      %v259 = vunpack.c.l.b16 %v187
      %v260 = vunpack.c.l.b16 %v188
      %v261 = vunpack.c.l.b16 %v189
      %v262 = vunpack.c.l.b16 %v190
      %v263 = vunpack.c.l.b16 %v191
      %v264 = vunpack.c.l.b16 %v192
      %v265 = vunpack.c.l.b16 %v193
      %v266 = vunpack.c.l.b16 %v194
      %v267 = vunpack.c.l.b16 %v195
      %v268 = vunpack.c.l.b16 %v196
      %v269 = vunpack.c.l.b16 %v197
      %v270 = vunpack.c.l.b16 %v198
      %v271 = vunpack.c.l.b16 %v199
      %v272 = vunpack.c.l.b16 %v200
      %v273 = vunpack.c.l.b16 %v201
      %v274 = vunpack.c.l.b16 %v202
      %v275 = vunpack.c.l.b16 %v203
      %v276 = vpack.c.b16 %v259, %v258
      %v277 = vpack.c.b16 %v261, %v260
      %v278 = vpack.c.b16 %v263, %v262
      %v279 = vpack.c.b16 %v265, %v264
      %v280 = vpack.c.b16 %v267, %v266
      %v281 = vpack.c.b16 %v269, %v268
      %v282 = vpack.c.b16 %v271, %v270
      %v283 = vpack.c.b16 %v273, %v272
      %v284 = vpack.c.b16 %v275, %v274
      %vm294 = vcmask 130048
      %v296 = vsel %vm294, %v229, 0
      %v299 = vsel %vm294, %v231, 0
      %v302 = vsel %vm294, %v233, 0
      %v305 = vsel %vm294, %v235, 0
      %307 = vmatprep.subr.bf16.mxu0 0
      %308 = vmatpush1.bf16.msra.mxu0 %v276
      %309 = vmatprep.subr.bf16.mxu0 0
      %310 = vmatpush1.bf16.msra.mxu0 %v277
      %311 = vmatprep.subr.bf16.mxu0 0
      %312 = vmatpush1.bf16.msra.mxu0 %v278
      %313 = vmatprep.subr.bf16.mxu0 0
      %314 = vmatpush1.bf16.msra.mxu0 %v279
      %315 = vmatprep.subr.bf16.mxu0 0
      %316 = vmatpush1.bf16.msra.mxu0 %v280
      %317 = vmatprep.subr.bf16.mxu0 0
      %318 = vmatpush1.bf16.msra.mxu0 %v281
      %319 = vmatprep.subr.bf16.mxu0 0
      %320 = vmatpush1.bf16.msra.mxu0 %v282
      %321 = vmatprep.subr.bf16.mxu0 0
      %322 = vmatpush1.bf16.msra.mxu0 %v283
      %323 = vmatprep.subr.bf16.mxu0 0
      %324 = vmatpush1.bf16.msra.mxu0 %v284
      %325 = vmatprep.subr.bf16.mxu0 0
      %326 = vmatpush1.bf16.msra.mxu0 0
      %327 = vmatprep.subr.bf16.mxu0 0
      %328 = vmatpush1.bf16.msra.mxu0 0
      %329 = vmatprep.subr.bf16.mxu0 0
      %330 = vmatpush1.bf16.msra.mxu0 0
      %331 = vmatprep.subr.bf16.mxu0 0
      %332 = vmatpush1.bf16.msra.mxu0 0
      %333 = vmatprep.subr.bf16.mxu0 0
      %334 = vmatpush1.bf16.msra.mxu0 0
      %335 = vmatprep.subr.bf16.mxu0 0
      %336 = vmatpush1.bf16.msra.mxu0 0
      %337 = vmatprep.subr.bf16.mxu0 0
      %338 = vmatpush1.bf16.msra.mxu0 0
      %339 = vmatprep.mubr.bf16.mxu0 %v296
      %340 = vmatmul.mubr.bf16.gmra.mrb[0].mxu0 %v228
      %v341 = vpop.f32.mrb[0].mxu0
      %v342 = vadd.f32 0.0, %v341
      %v343 = vpop.f32.mrb[0].mxu0
      %v344 = vpop.f32.mrb[0].mxu0
      %v345 = vadd.f32 0.0, %v344
      %v346 = vpop.f32.mrb[0].mxu0
      %347 = vmatprep.mubr.bf16.mxu0 %v299
      %348 = vmatmul.mubr.bf16.gmra.mrb[0].mxu0 %v230
      %v349 = vpop.f32.mrb[0].mxu0
      %v350 = vadd.f32 0.0, %v349
      %v351 = vpop.f32.mrb[0].mxu0
      %v352 = vpop.f32.mrb[0].mxu0
      %v353 = vadd.f32 0.0, %v352
      %v354 = vpop.f32.mrb[0].mxu0
      %355 = vmatprep.mubr.bf16.mxu0 %v302
      %356 = vmatmul.mubr.bf16.gmra.mrb[0].mxu0 %v232
      %v357 = vpop.f32.mrb[0].mxu0
      %v358 = vadd.f32 0.0, %v357
      %v359 = vpop.f32.mrb[0].mxu0
      %v360 = vpop.f32.mrb[0].mxu0
      %v361 = vadd.f32 0.0, %v360
      %v362 = vpop.f32.mrb[0].mxu0
      %363 = vmatprep.mubr.bf16.mxu0 %v305
      %364 = vmatmul.mubr.bf16.gmra.mrb[0].mxu0 %v234
      %v365 = vpop.f32.mrb[0].mxu0
      %v366 = vadd.f32 0.0, %v365
      %v367 = vpop.f32.mrb[0].mxu0
      %v368 = vpop.f32.mrb[0].mxu0
      %v369 = vadd.f32 0.0, %v368
      %v370 = vpop.f32.mrb[0].mxu0
      %371 = vdwg.mxu0
      %v372 = vld [vmem:[%s2] sm:$0x1]
      %v373 = vlaneseq
      %v374 = vshrl.u32 %v373, 7
      %v375 = vsub.s32 0, %v374
      %v376 = vrot.slane %v372, %v375
      %v377 = vmul.f32 %v342, %v376
      %v378 = vmul.f32 %v345, %v376
      %v379 = vmul.f32 %v350, %v376
      %v380 = vmul.f32 %v353, %v376
      %v381 = vmul.f32 %v358, %v376
      %v382 = vmul.f32 %v361, %v376
      %v383 = vmul.f32 %v366, %v376
      %v384 = vmul.f32 %v369, %v376
      %v385 = vld [vmem:[%s2 + $0x1] sm:$0x1]
      %v386 = vlaneseq
      %v387 = vshrl.u32 %v386, 7
      %v388 = vsub.s32 0, %v387
      %v389 = vrot.slane %v385, %v388
      %v390 = vadd.f32 %v377, %v389
      %v391 = vadd.f32 %v378, %v389
      %v392 = vadd.f32 %v379, %v389
      %v393 = vadd.f32 %v380, %v389
      %v394 = vadd.f32 %v381, %v389
      %v395 = vadd.f32 %v382, %v389
      %v396 = vadd.f32 %v383, %v389
      %v397 = vadd.f32 %v384, %v389
      %v398 = vmax.f32 %v390, 0.0
      %v399 = vmax.f32 %v391, 0.0
      %v400 = vmax.f32 %v392, 0.0
      %v401 = vmax.f32 %v393, 0.0
      %v402 = vmax.f32 %v394, 0.0
      %v403 = vmax.f32 %v395, 0.0
      %v404 = vmax.f32 %v396, 0.0
      %v405 = vmax.f32 %v397, 0.0
      %v406 = vpack.c.bf16 %v399, %v398
      %v407 = vpack.c.bf16 %v401, %v400
      %v408 = vpack.c.bf16 %v403, %v402
      %v409 = vpack.c.bf16 %v405, %v404
      %v414 = vunpack.c.l.b16 %v406
      %v415 = vunpack.c.h.b16 %v406
      %v416 = vunpack.c.l.b16 %v407
      %v417 = vunpack.c.h.b16 %v407
      %v418 = vunpack.c.l.b16 %v408
      %v419 = vunpack.c.h.b16 %v408
      %v420 = vunpack.c.l.b16 %v409
      %v421 = vunpack.c.h.b16 %v409
      %v422 = vpack.c.b16 %v414, %v414
      %v423 = vpack.c.b16 %v415, %v415
      %v424 = vpack.c.b16 %v416, %v416
      %v425 = vpack.c.b16 %v417, %v417
      %v426 = vpack.c.b16 %v418, %v418
      %v427 = vpack.c.b16 %v419, %v419
      %v428 = vpack.c.b16 %v420, %v420
      %v429 = vpack.c.b16 %v421, %v421
      %vm438 = vcmask 191488
      %439 = vst.msk [vmem:[%s175] sm:$0xf] %vm438, %v422
      %440 = vst.msk [vmem:[%s175 + $0x4] sm:$0xf] %vm438, %v423
      %441 = vst.msk [vmem:[%s175 + $0x8] sm:$0xf] %vm438, %v424
      %442 = vst.msk [vmem:[%s175 + $0xc] sm:$0xf] %vm438, %v425
      %443 = vst.msk [vmem:[%s175 + $0x10] sm:$0xf] %vm438, %v426
      %444 = vst.msk [vmem:[%s175 + $0x14] sm:$0xf] %vm438, %v427
      %445 = vst.msk [vmem:[%s175 + $0x18] sm:$0xf] %vm438, %v428
      %446 = vst.msk [vmem:[%s175 + $0x1c] sm:$0xf] %vm438, %v429
      %s447 = smul.u32 8, %s14
      %p448 = scmp.lt.s32.totalorder %s447, 15
      %s449 = scalar_select %p448, %s447, 15
      %s450 = smul.addr %s449, 4
      %s451 = scalar_lea.vmem %s3, %s450
      // Predicated region
      $region33: #{deeplab_forward.9} parent=31 // pred_check
        %p452 = pneg %p100
      $region34: #{deeplab_forward.9} parent=31 // pred_check_branch
        %454 = sbr.rel (%p452) target = $region36
      $region35: #{deeplab_forward.9} parent=31 // pred_region
        %s455 = smul.u32 8, %s14
      $region36: #{deeplab_forward.9} parent=31 // pred_fallthru
        _
    $region32: #{deeplab_forward.9} parent=5 // pred_fallthru
      _
    %p456 = scmp.le.s32.totalorder 2, %s9
    // Predicated region
    $region37: #{deeplab_forward.9} parent=5 // pred_check
      %p457 = pneg %p456
    $region38: #{deeplab_forward.9} parent=5 // pred_check_branch
      %459 = sbr.rel (%p457) target = $region40
    $region39: #{deeplab_forward.9} parent=5 // pred_region
      %s460 = ssub.s32 %s9, 2
      // Predicated region
      $region41: #{deeplab_forward.9} parent=39 // pred_check
        %p461 = pneg %p106
      $region42: #{deeplab_forward.9} parent=39 // pred_check_branch
        %463 = sbr.rel (%p461) target = $region44
      $region43: #{deeplab_forward.9} parent=39 // pred_region
        %s464 = smul.u32 8, %s15
        %p465 = scmp.lt.s32.totalorder %s464, 15
        %s466 = scalar_select %p465, %s464, 15
        %s467 = smul.addr %s466, 4
        %s468 = scalar_lea.vmem %s3, %s467
      $region44: #{deeplab_forward.9} parent=39 // pred_fallthru
        _
    $region40: #{deeplab_forward.9} parent=5 // pred_fallthru
      _
  $region6: #{deeplab_forward.9} parent=0 // loop_footer
    %s13 = sadd.s32 1, %s9
  $region7: #{deeplab_forward.9} parent=0 // loop_footer_branch
    %8 = sbr.rel target = $region3
  $region8: #{deeplab_forward.9} parent=0 // loop_exit
    _

// kernel: deeplab_forward.10
$region0: #{deeplab_forward.10}
  #allocation0 [shape = 'u32[]', space=smem, size = 0x4, offset = 0x4, fixed_abs, tag = 'smem constant byte address 0x4 - core index']
  #allocation1 [shape = 'u32[144,128]{1,0:T(1,128)}', space=vmem, size = 0x12000, scoped, tag = 'internal scratch']
  %s0 = inlined_call_operand.vmem [shape: bf16[128,24], index: 0, kind: input, shape index: {}]
  %s1 = inlined_call_operand.vmem [shape: bf16[24,16], index: 1, kind: input, shape index: {}]
  %s2 = inlined_call_operand.vmem [shape: f32[2,16], index: 2, kind: input, shape index: {}]
  %s3 = inlined_call_operand.vmem [shape: bf16[128,16], index: 3, kind: output, shape index: {}]
  %s4 = sld [smem:[#allocation0]]
  $region45: #{deeplab_forward.10} parent=0
    _
  %s6 = ssub.s32 1, %s4
  %s7 = scalar_select 0, %s6, %s4
  loop: start=0, step=1, limit=4
  $region2: #{deeplab_forward.10} parent=0 // loop_pre_header
    _
  $region3: #{deeplab_forward.10} parent=0 // loop_header
    %s9 = sphi 0, %s13
    %p10 = scmp.ge.s32.totalorder %s9, 4
    %s19 = sphi 0, %s21
    %s22 = sphi 0, %s19
    %s23 = sphi 0, %s22
    %s39 = sphi 0, %s23
    %s43 = sphi 0, %s43
    %s45 = sphi 0, %s43
    %s46 = sphi 0, %s45
    %s60 = sphi 0, %s46
    %s64 = sphi 0, %s64
    %s66 = sphi 0, %s64
    %s67 = sphi 0, %s66
    %s81 = sphi 0, %s67
    %s87 = sphi 0, %s89
    %s90 = sphi 0, %s87
    %s91 = sphi 0, %s90
    %s107 = sphi 0, %s91
  $region4: #{deeplab_forward.10} parent=0 // loop_header_branch
    %12 = sbr.rel (%p10) target = $region8
  $region5: #{deeplab_forward.10} parent=0 // loop_body
    %s14 = ssub.s32 %s9, 1
    %s15 = ssub.s32 %s9, 2
    %s16 = sadd.s32 %s9, 1
    %s17 = ssub.s32 %s9, %s16
    %p18 = scmp.eq.s32.totalorder %s17, 0
    %s20 = sadd.s32 %s19, 1
    %s21 = scalar_select %p18, %s19, %s20
    %p24 = pneg %p18
    %p25 = scmp.eq.s32.totalorder %s9, 1
    %p26 = por %p24, %p25
    %p27 = scmp.ne.s32.totalorder %s19, %s22
    %p28 = scmp.eq.s32.totalorder %s9, 0
    %p29 = por %p27, %p28
    %p30 = scmp.ne.s32.totalorder %s19, %s22
    %p31 = scmp.eq.s32.totalorder %s14, 1
    %p32 = por %p30, %p31
    %p33 = scmp.ne.s32.totalorder %s22, %s23
    %p34 = scmp.eq.s32.totalorder %s14, 0
    %p35 = por %p33, %p34
    %p36 = scmp.ne.s32.totalorder %s22, %s23
    %p37 = scmp.eq.s32.totalorder %s15, 1
    %p38 = por %p36, %p37
    %p40 = scmp.ne.s32.totalorder %s23, %s39
    %p41 = scmp.eq.s32.totalorder %s15, 0
    %p42 = por %p40, %p41
    %s44 = sadd.s32 %s43, 1
    %p47 = scmp.eq.s32.totalorder %s9, 1
    %p48 = scmp.ne.s32.totalorder %s43, %s45
    %p49 = scmp.eq.s32.totalorder %s9, 0
    %p50 = por %p48, %p49
    %p51 = scmp.ne.s32.totalorder %s43, %s45
    %p52 = scmp.eq.s32.totalorder %s14, 1
    %p53 = por %p51, %p52
    %p54 = scmp.ne.s32.totalorder %s45, %s46
    %p55 = scmp.eq.s32.totalorder %s14, 0
    %p56 = por %p54, %p55
    %p57 = scmp.ne.s32.totalorder %s45, %s46
    %p58 = scmp.eq.s32.totalorder %s15, 1
    %p59 = por %p57, %p58
    %p61 = scmp.ne.s32.totalorder %s46, %s60
    %p62 = scmp.eq.s32.totalorder %s15, 0
    %p63 = por %p61, %p62
    %s65 = sadd.s32 %s64, 1
    %p68 = scmp.eq.s32.totalorder %s9, 1
    %p69 = scmp.ne.s32.totalorder %s64, %s66
    %p70 = scmp.eq.s32.totalorder %s9, 0
    %p71 = por %p69, %p70
    %p72 = scmp.ne.s32.totalorder %s64, %s66
    %p73 = scmp.eq.s32.totalorder %s14, 1
    %p74 = por %p72, %p73
    %p75 = scmp.ne.s32.totalorder %s66, %s67
    %p76 = scmp.eq.s32.totalorder %s14, 0
    %p77 = por %p75, %p76
    %p78 = scmp.ne.s32.totalorder %s66, %s67
    %p79 = scmp.eq.s32.totalorder %s15, 1
    %p80 = por %p78, %p79
    %p82 = scmp.ne.s32.totalorder %s67, %s81
    %p83 = scmp.eq.s32.totalorder %s15, 0
    %p84 = por %p82, %p83
    %s85 = ssub.s32 %s9, %s16
    %p86 = scmp.eq.s32.totalorder %s85, 0
    %s88 = sadd.s32 %s87, 1
    %s89 = scalar_select %p86, %s87, %s88
    %p92 = pneg %p86
    %p93 = scmp.eq.s32.totalorder %s9, 1
    %p94 = por %p92, %p93
    %p95 = scmp.ne.s32.totalorder %s87, %s90
    %p96 = scmp.eq.s32.totalorder %s9, 0
    %p97 = por %p95, %p96
    %p98 = scmp.ne.s32.totalorder %s87, %s90
    %p99 = scmp.eq.s32.totalorder %s14, 1
    %p100 = por %p98, %p99
    %p101 = scmp.ne.s32.totalorder %s90, %s91
    %p102 = scmp.eq.s32.totalorder %s14, 0
    %p103 = por %p101, %p102
    %p104 = scmp.ne.s32.totalorder %s90, %s91
    %p105 = scmp.eq.s32.totalorder %s15, 1
    %p106 = por %p104, %p105
    %p108 = scmp.ne.s32.totalorder %s91, %s107
    %p109 = scmp.eq.s32.totalorder %s15, 0
    %p110 = por %p108, %p109
    %p111 = scmp.le.s32.totalorder 1, %s9
    %p112 = scmp.lt.s32.totalorder %s9, 3
    %p113 = pnand %p111, %p112
    %p114 = pneg %p113
    // Predicated region
    $region9: #{deeplab_forward.10} parent=5 // pred_check
      _
    $region10: #{deeplab_forward.10} parent=5 // pred_check_branch
      %116 = sbr.rel (%p113) target = $region12
    $region11: #{deeplab_forward.10} parent=5 // pred_region
      %s117 = ssub.s32 %s9, 1
      // Predicated region
      $region13: #{deeplab_forward.10} parent=11 // pred_check
        %p118 = pneg %p56
      $region14: #{deeplab_forward.10} parent=11 // pred_check_branch
        %120 = sbr.rel (%p118) target = $region16
      $region15: #{deeplab_forward.10} parent=11 // pred_region
        _
      $region16: #{deeplab_forward.10} parent=11 // pred_fallthru
        _
      // Predicated region
      $region17: #{deeplab_forward.10} parent=11 // pred_check
        %p121 = pneg %p77
      $region18: #{deeplab_forward.10} parent=11 // pred_check_branch
        %123 = sbr.rel (%p121) target = $region20
      $region19: #{deeplab_forward.10} parent=11 // pred_region
        _
      $region20: #{deeplab_forward.10} parent=11 // pred_fallthru
        _
    $region12: #{deeplab_forward.10} parent=5 // pred_fallthru
      _
    %p124 = scmp.lt.s32.totalorder %s9, 2
    // Predicated region
    $region21: #{deeplab_forward.10} parent=5 // pred_check
      %p125 = pneg %p124
    $region22: #{deeplab_forward.10} parent=5 // pred_check_branch
      %127 = sbr.rel (%p125) target = $region24
    $region23: #{deeplab_forward.10} parent=5 // pred_region
      // Predicated region
      $region25: #{deeplab_forward.10} parent=23 // pred_check
        %p128 = pneg %p29
      $region26: #{deeplab_forward.10} parent=23 // pred_check_branch
        %130 = sbr.rel (%p128) target = $region28
      $region27: #{deeplab_forward.10} parent=23 // pred_region
        %s131 = smul.u32 8, %s9
        %p132 = scmp.lt.s32.totalorder %s131, 15
        %s133 = scalar_select %p132, %s131, 15
        %s134 = smul.addr %s133, 4
        %s135 = scalar_lea.vmem %s0, %s134
        %s136 = smul.u32 8, %s9
      $region28: #{deeplab_forward.10} parent=23 // pred_fallthru
        _
    $region24: #{deeplab_forward.10} parent=5 // pred_fallthru
      _
    %p137 = scmp.le.s32.totalorder 1, %s9
    %p138 = scmp.lt.s32.totalorder %s9, 3
    %p139 = pnand %p137, %p138
    %p140 = pneg %p139
    // Predicated region
    $region29: #{deeplab_forward.10} parent=5 // pred_check
      _
    $region30: #{deeplab_forward.10} parent=5 // pred_check_branch
      %142 = sbr.rel (%p139) target = $region32
    $region31: #{deeplab_forward.10} parent=5 // pred_region
      %s143 = ssub.s32 %s9, 1
      %s144 = smul.u32 8, %s14
      %p145 = scmp.lt.s32.totalorder %s144, 15
      %s146 = scalar_select %p145, %s144, 15
      %s147 = smul.addr %s146, 4
      %s148 = scalar_lea.vmem %s0, %s147
      %p149 = pneg %p35
      %p150 = pneg %p32
      %p151 = pneg %p56
      %p152 = pneg %p53
      %p153 = pneg %p77
      %p154 = pneg %p74
      %p155 = pneg %p103
      %p156 = pneg %p100
      %s157 = smul.u32 8, %s14
      %p158 = scmp.lt.s32.totalorder %s157, 15
      %s159 = scalar_select %p158, %s157, 15
      %s160 = smul.addr %s159, 4
      %s161 = scalar_lea.vmem %s3, %s160
      %s162 = smul.u32 8, %s14
      %p163 = scmp.lt.s32.totalorder %s162, 15
      %s164 = scalar_select %p163, %s162, 15
      %s165 = smul.addr %s164, 4
      %s166 = scalar_lea.vmem %s0, %s165
      %s167 = smul.u32 8, %s14
      %s168 = smul.u32 8, %s14
      %p169 = scmp.lt.s32.totalorder %s168, 15
      %s170 = scalar_select %p169, %s168, 15
      %s171 = smul.addr %s170, 4
      %s172 = scalar_lea.vmem %s3, %s171
      %s173 = smul.u32 8, %s14
      %v175 = vld [vmem:[%s166] sm:$0xf]
      %v176 = vld [vmem:[%s166 + $0x4] sm:$0xf]
      %v177 = vld [vmem:[%s166 + $0x8] sm:$0xf]
      %v178 = vld [vmem:[%s166 + $0xc] sm:$0xf]
      %v179 = vld [vmem:[%s166 + $0x10] sm:$0xf]
      %v180 = vld [vmem:[%s166 + $0x14] sm:$0xf]
      %v181 = vld [vmem:[%s166 + $0x18] sm:$0xf]
      %v182 = vld [vmem:[%s166 + $0x1c] sm:$0xf]
      %v183 = vld [vmem:[%s1] sm:$0xf]
      %v184 = vld [vmem:[%s1 + $0x4] sm:$0xf]
      %v185 = vld [vmem:[%s1 + $0x8] sm:$0xf]
      %v194 = vunpack.c.l.b16 %v175
      %v195 = vunpack.c.l.b16 %v176
      %v196 = vunpack.c.l.b16 %v177
      %v197 = vunpack.c.l.b16 %v178
      %v198 = vunpack.c.l.b16 %v179
      %v199 = vunpack.c.l.b16 %v180
      %v200 = vunpack.c.l.b16 %v181
      %v201 = vunpack.c.l.b16 %v182
      %v202 = vpack.c.b16 %v195, %v194
      %v203 = vpack.c.b16 %v197, %v196
      %v204 = vpack.c.b16 %v199, %v198
      %v205 = vpack.c.b16 %v201, %v200
      %v209 = vunpack.c.l.b16 %v183
      %v210 = vunpack.c.l.b16 %v184
      %v211 = vunpack.c.l.b16 %v185
      %v212 = vpack.c.b16 %v210, %v209
      %v213 = vpack.c.b16 %v211, %v211
      %vm215 = vcmask 195584
      %v217 = vsel %vm215, %v202, 0
      %v220 = vsel %vm215, %v203, 0
      %v223 = vsel %vm215, %v204, 0
      %v226 = vsel %vm215, %v205, 0
      %vm228 = vcmask 1043456
      %v230 = vsel %vm228, %v213, 0
      %232 = vmatprep.subr.bf16.mxu0 0
      %233 = vmatpush1.bf16.msra.mxu0 %v212
      %234 = vmatprep.subr.bf16.mxu0 0
      %235 = vmatpush1.bf16.msra.mxu0 %v230
      %236 = vmatprep.subr.bf16.mxu0 0
      %237 = vmatpush1.bf16.msra.mxu0 0
      %238 = vmatprep.subr.bf16.mxu0 0
      %239 = vmatpush1.bf16.msra.mxu0 0
      %240 = vmatprep.subr.bf16.mxu0 0
      %241 = vmatpush1.bf16.msra.mxu0 0
      %242 = vmatprep.subr.bf16.mxu0 0
      %243 = vmatpush1.bf16.msra.mxu0 0
      %244 = vmatprep.subr.bf16.mxu0 0
      %245 = vmatpush1.bf16.msra.mxu0 0
      %246 = vmatprep.subr.bf16.mxu0 0
      %247 = vmatpush1.bf16.msra.mxu0 0
      %248 = vmatprep.subr.bf16.mxu0 0
      %249 = vmatpush1.bf16.msra.mxu0 0
      %250 = vmatprep.subr.bf16.mxu0 0
      %251 = vmatpush1.bf16.msra.mxu0 0
      %252 = vmatprep.subr.bf16.mxu0 0
      %253 = vmatpush1.bf16.msra.mxu0 0
      %254 = vmatprep.subr.bf16.mxu0 0
      %255 = vmatpush1.bf16.msra.mxu0 0
      %256 = vmatprep.subr.bf16.mxu0 0
      %257 = vmatpush1.bf16.msra.mxu0 0
      %258 = vmatprep.subr.bf16.mxu0 0
      %259 = vmatpush1.bf16.msra.mxu0 0
      %260 = vmatprep.subr.bf16.mxu0 0
      %261 = vmatpush1.bf16.msra.mxu0 0
      %262 = vmatprep.subr.bf16.mxu0 0
      %263 = vmatpush1.bf16.msra.mxu0 0
      %264 = vmatprep.mubr.bf16.mxu0 0
      %265 = vmatmul.mubr.bf16.gmra.mrb[0].mxu0 %v217
      %v266 = vpop.f32.mrb[0].mxu0
      %v267 = vadd.f32 0.0, %v266
      %v268 = vpop.f32.mrb[0].mxu0
      %v269 = vpop.f32.mrb[0].mxu0
      %v270 = vadd.f32 0.0, %v269
      %v271 = vpop.f32.mrb[0].mxu0
      %272 = vmatprep.mubr.bf16.mxu0 0
      %273 = vmatmul.mubr.bf16.gmra.mrb[0].mxu0 %v220
      %v274 = vpop.f32.mrb[0].mxu0
      %v275 = vadd.f32 0.0, %v274
      %v276 = vpop.f32.mrb[0].mxu0
      %v277 = vpop.f32.mrb[0].mxu0
      %v278 = vadd.f32 0.0, %v277
      %v279 = vpop.f32.mrb[0].mxu0
      %280 = vmatprep.mubr.bf16.mxu0 0
      %281 = vmatmul.mubr.bf16.gmra.mrb[0].mxu0 %v223
      %v282 = vpop.f32.mrb[0].mxu0
      %v283 = vadd.f32 0.0, %v282
      %v284 = vpop.f32.mrb[0].mxu0
      %v285 = vpop.f32.mrb[0].mxu0
      %v286 = vadd.f32 0.0, %v285
      %v287 = vpop.f32.mrb[0].mxu0
      %288 = vmatprep.mubr.bf16.mxu0 0
      %289 = vmatmul.mubr.bf16.gmra.mrb[0].mxu0 %v226
      %v290 = vpop.f32.mrb[0].mxu0
      %v291 = vadd.f32 0.0, %v290
      %v292 = vpop.f32.mrb[0].mxu0
      %v293 = vpop.f32.mrb[0].mxu0
      %v294 = vadd.f32 0.0, %v293
      %v295 = vpop.f32.mrb[0].mxu0
      %296 = vdwg.mxu0
      %v297 = vld [vmem:[%s2] sm:$0x1]
      %v298 = vlaneseq
      %v299 = vshrl.u32 %v298, 7
      %v300 = vsub.s32 0, %v299
      %v301 = vrot.slane %v297, %v300
      %v302 = vmul.f32 %v267, %v301
      %v303 = vmul.f32 %v270, %v301
      %v304 = vmul.f32 %v275, %v301
      %v305 = vmul.f32 %v278, %v301
      %v306 = vmul.f32 %v283, %v301
      %v307 = vmul.f32 %v286, %v301
      %v308 = vmul.f32 %v291, %v301
      %v309 = vmul.f32 %v294, %v301
      %v310 = vld [vmem:[%s2 + $0x1] sm:$0x1]
      %v311 = vlaneseq
      %v312 = vshrl.u32 %v311, 7
      %v313 = vsub.s32 0, %v312
      %v314 = vrot.slane %v310, %v313
      %v315 = vadd.f32 %v302, %v314
      %v316 = vadd.f32 %v303, %v314
      %v317 = vadd.f32 %v304, %v314
      %v318 = vadd.f32 %v305, %v314
      %v319 = vadd.f32 %v306, %v314
      %v320 = vadd.f32 %v307, %v314
      %v321 = vadd.f32 %v308, %v314
      %v322 = vadd.f32 %v309, %v314
      %v323 = vmax.f32 %v315, 0.0
      %v324 = vmax.f32 %v316, 0.0
      %v325 = vmax.f32 %v317, 0.0
      %v326 = vmax.f32 %v318, 0.0
      %v327 = vmax.f32 %v319, 0.0
      %v328 = vmax.f32 %v320, 0.0
      %v329 = vmax.f32 %v321, 0.0
      %v330 = vmax.f32 %v322, 0.0
      %v331 = vpack.c.bf16 %v324, %v323
      %v332 = vpack.c.bf16 %v326, %v325
      %v333 = vpack.c.bf16 %v328, %v327
      %v334 = vpack.c.bf16 %v330, %v329
      %v339 = vunpack.c.l.b16 %v331
      %v340 = vunpack.c.h.b16 %v331
      %v341 = vunpack.c.l.b16 %v332
      %v342 = vunpack.c.h.b16 %v332
      %v343 = vunpack.c.l.b16 %v333
      %v344 = vunpack.c.h.b16 %v333
      %v345 = vunpack.c.l.b16 %v334
      %v346 = vunpack.c.h.b16 %v334
      %v347 = vpack.c.b16 %v339, %v339
      %v348 = vpack.c.b16 %v340, %v340
      %v349 = vpack.c.b16 %v341, %v341
      %v350 = vpack.c.b16 %v342, %v342
      %v351 = vpack.c.b16 %v343, %v343
      %v352 = vpack.c.b16 %v344, %v344
      %v353 = vpack.c.b16 %v345, %v345
      %v354 = vpack.c.b16 %v346, %v346
      %vm363 = vcmask 125952
      %364 = vst.msk [vmem:[%s172] sm:$0xf] %vm363, %v347
      %365 = vst.msk [vmem:[%s172 + $0x4] sm:$0xf] %vm363, %v348
      %366 = vst.msk [vmem:[%s172 + $0x8] sm:$0xf] %vm363, %v349
      %367 = vst.msk [vmem:[%s172 + $0xc] sm:$0xf] %vm363, %v350
      %368 = vst.msk [vmem:[%s172 + $0x10] sm:$0xf] %vm363, %v351
      %369 = vst.msk [vmem:[%s172 + $0x14] sm:$0xf] %vm363, %v352
      %370 = vst.msk [vmem:[%s172 + $0x18] sm:$0xf] %vm363, %v353
      %371 = vst.msk [vmem:[%s172 + $0x1c] sm:$0xf] %vm363, %v354
      %s372 = smul.u32 8, %s14
      %p373 = scmp.lt.s32.totalorder %s372, 15
      %s374 = scalar_select %p373, %s372, 15
      %s375 = smul.addr %s374, 4
      %s376 = scalar_lea.vmem %s3, %s375
      // Predicated region
      $region33: #{deeplab_forward.10} parent=31 // pred_check
        %p377 = pneg %p100
      $region34: #{deeplab_forward.10} parent=31 // pred_check_branch
        %379 = sbr.rel (%p377) target = $region36
      $region35: #{deeplab_forward.10} parent=31 // pred_region
        %s380 = smul.u32 8, %s14
      $region36: #{deeplab_forward.10} parent=31 // pred_fallthru
        _
    $region32: #{deeplab_forward.10} parent=5 // pred_fallthru
      _
    %p381 = scmp.le.s32.totalorder 2, %s9
    // Predicated region
    $region37: #{deeplab_forward.10} parent=5 // pred_check
      %p382 = pneg %p381
    $region38: #{deeplab_forward.10} parent=5 // pred_check_branch
      %384 = sbr.rel (%p382) target = $region40
    $region39: #{deeplab_forward.10} parent=5 // pred_region
      %s385 = ssub.s32 %s9, 2
      // Predicated region
      $region41: #{deeplab_forward.10} parent=39 // pred_check
        %p386 = pneg %p106
      $region42: #{deeplab_forward.10} parent=39 // pred_check_branch
        %388 = sbr.rel (%p386) target = $region44
      $region43: #{deeplab_forward.10} parent=39 // pred_region
        %s389 = smul.u32 8, %s15
        %p390 = scmp.lt.s32.totalorder %s389, 15
        %s391 = scalar_select %p390, %s389, 15
        %s392 = smul.addr %s391, 4
        %s393 = scalar_lea.vmem %s3, %s392
      $region44: #{deeplab_forward.10} parent=39 // pred_fallthru
        _
    $region40: #{deeplab_forward.10} parent=5 // pred_fallthru
      _
  $region6: #{deeplab_forward.10} parent=0 // loop_footer
    %s13 = sadd.s32 1, %s9
  $region7: #{deeplab_forward.10} parent=0 // loop_footer_branch
    %8 = sbr.rel target = $region3
  $region8: #{deeplab_forward.10} parent=0 // loop_exit
    _

// kernel: deeplab_forward.13
$region0: #{deeplab_forward.13}
  #allocation0 [shape = 'u32[]', space=smem, size = 0x4, offset = 0x4, fixed_abs, tag = 'smem constant byte address 0x4 - core index']
  #allocation1 [shape = 'u32[144,128]{1,0:T(1,128)}', space=vmem, size = 0x12000, scoped, tag = 'internal scratch']
  %s0 = inlined_call_operand.vmem [shape: bf16[128,32], index: 0, kind: input, shape index: {}]
  %s1 = inlined_call_operand.vmem [shape: bf16[32,21], index: 1, kind: input, shape index: {}]
  %s2 = inlined_call_operand.vmem [shape: f32[2,21], index: 2, kind: input, shape index: {}]
  %s3 = inlined_call_operand.vmem [shape: bf16[128,21], index: 3, kind: output, shape index: {}]
  %s4 = sld [smem:[#allocation0]]
  $region45: #{deeplab_forward.13} parent=0
    _
  %s6 = ssub.s32 1, %s4
  %s7 = scalar_select 0, %s6, %s4
  loop: start=0, step=1, limit=4
  $region2: #{deeplab_forward.13} parent=0 // loop_pre_header
    _
  $region3: #{deeplab_forward.13} parent=0 // loop_header
    %s9 = sphi 0, %s13
    %p10 = scmp.ge.s32.totalorder %s9, 4
    %s19 = sphi 0, %s21
    %s22 = sphi 0, %s19
    %s23 = sphi 0, %s22
    %s39 = sphi 0, %s23
    %s43 = sphi 0, %s43
    %s45 = sphi 0, %s43
    %s46 = sphi 0, %s45
    %s60 = sphi 0, %s46
    %s64 = sphi 0, %s64
    %s66 = sphi 0, %s64
    %s67 = sphi 0, %s66
    %s81 = sphi 0, %s67
    %s87 = sphi 0, %s89
    %s90 = sphi 0, %s87
    %s91 = sphi 0, %s90
    %s107 = sphi 0, %s91
  $region4: #{deeplab_forward.13} parent=0 // loop_header_branch
    %12 = sbr.rel (%p10) target = $region8
  $region5: #{deeplab_forward.13} parent=0 // loop_body
    %s14 = ssub.s32 %s9, 1
    %s15 = ssub.s32 %s9, 2
    %s16 = sadd.s32 %s9, 1
    %s17 = ssub.s32 %s9, %s16
    %p18 = scmp.eq.s32.totalorder %s17, 0
    %s20 = sadd.s32 %s19, 1
    %s21 = scalar_select %p18, %s19, %s20
    %p24 = pneg %p18
    %p25 = scmp.eq.s32.totalorder %s9, 1
    %p26 = por %p24, %p25
    %p27 = scmp.ne.s32.totalorder %s19, %s22
    %p28 = scmp.eq.s32.totalorder %s9, 0
    %p29 = por %p27, %p28
    %p30 = scmp.ne.s32.totalorder %s19, %s22
    %p31 = scmp.eq.s32.totalorder %s14, 1
    %p32 = por %p30, %p31
    %p33 = scmp.ne.s32.totalorder %s22, %s23
    %p34 = scmp.eq.s32.totalorder %s14, 0
    %p35 = por %p33, %p34
    %p36 = scmp.ne.s32.totalorder %s22, %s23
    %p37 = scmp.eq.s32.totalorder %s15, 1
    %p38 = por %p36, %p37
    %p40 = scmp.ne.s32.totalorder %s23, %s39
    %p41 = scmp.eq.s32.totalorder %s15, 0
    %p42 = por %p40, %p41
    %s44 = sadd.s32 %s43, 1
    %p47 = scmp.eq.s32.totalorder %s9, 1
    %p48 = scmp.ne.s32.totalorder %s43, %s45
    %p49 = scmp.eq.s32.totalorder %s9, 0
    %p50 = por %p48, %p49
    %p51 = scmp.ne.s32.totalorder %s43, %s45
    %p52 = scmp.eq.s32.totalorder %s14, 1
    %p53 = por %p51, %p52
    %p54 = scmp.ne.s32.totalorder %s45, %s46
    %p55 = scmp.eq.s32.totalorder %s14, 0
    %p56 = por %p54, %p55
    %p57 = scmp.ne.s32.totalorder %s45, %s46
    %p58 = scmp.eq.s32.totalorder %s15, 1
    %p59 = por %p57, %p58
    %p61 = scmp.ne.s32.totalorder %s46, %s60
    %p62 = scmp.eq.s32.totalorder %s15, 0
    %p63 = por %p61, %p62
    %s65 = sadd.s32 %s64, 1
    %p68 = scmp.eq.s32.totalorder %s9, 1
    %p69 = scmp.ne.s32.totalorder %s64, %s66
    %p70 = scmp.eq.s32.totalorder %s9, 0
    %p71 = por %p69, %p70
    %p72 = scmp.ne.s32.totalorder %s64, %s66
    %p73 = scmp.eq.s32.totalorder %s14, 1
    %p74 = por %p72, %p73
    %p75 = scmp.ne.s32.totalorder %s66, %s67
    %p76 = scmp.eq.s32.totalorder %s14, 0
    %p77 = por %p75, %p76
    %p78 = scmp.ne.s32.totalorder %s66, %s67
    %p79 = scmp.eq.s32.totalorder %s15, 1
    %p80 = por %p78, %p79
    %p82 = scmp.ne.s32.totalorder %s67, %s81
    %p83 = scmp.eq.s32.totalorder %s15, 0
    %p84 = por %p82, %p83
    %s85 = ssub.s32 %s9, %s16
    %p86 = scmp.eq.s32.totalorder %s85, 0
    %s88 = sadd.s32 %s87, 1
    %s89 = scalar_select %p86, %s87, %s88
    %p92 = pneg %p86
    %p93 = scmp.eq.s32.totalorder %s9, 1
    %p94 = por %p92, %p93
    %p95 = scmp.ne.s32.totalorder %s87, %s90
    %p96 = scmp.eq.s32.totalorder %s9, 0
    %p97 = por %p95, %p96
    %p98 = scmp.ne.s32.totalorder %s87, %s90
    %p99 = scmp.eq.s32.totalorder %s14, 1
    %p100 = por %p98, %p99
    %p101 = scmp.ne.s32.totalorder %s90, %s91
    %p102 = scmp.eq.s32.totalorder %s14, 0
    %p103 = por %p101, %p102
    %p104 = scmp.ne.s32.totalorder %s90, %s91
    %p105 = scmp.eq.s32.totalorder %s15, 1
    %p106 = por %p104, %p105
    %p108 = scmp.ne.s32.totalorder %s91, %s107
    %p109 = scmp.eq.s32.totalorder %s15, 0
    %p110 = por %p108, %p109
    %p111 = scmp.le.s32.totalorder 1, %s9
    %p112 = scmp.lt.s32.totalorder %s9, 3
    %p113 = pnand %p111, %p112
    %p114 = pneg %p113
    // Predicated region
    $region9: #{deeplab_forward.13} parent=5 // pred_check
      _
    $region10: #{deeplab_forward.13} parent=5 // pred_check_branch
      %116 = sbr.rel (%p113) target = $region12
    $region11: #{deeplab_forward.13} parent=5 // pred_region
      %s117 = ssub.s32 %s9, 1
      // Predicated region
      $region13: #{deeplab_forward.13} parent=11 // pred_check
        %p118 = pneg %p56
      $region14: #{deeplab_forward.13} parent=11 // pred_check_branch
        %120 = sbr.rel (%p118) target = $region16
      $region15: #{deeplab_forward.13} parent=11 // pred_region
        _
      $region16: #{deeplab_forward.13} parent=11 // pred_fallthru
        _
      // Predicated region
      $region17: #{deeplab_forward.13} parent=11 // pred_check
        %p121 = pneg %p77
      $region18: #{deeplab_forward.13} parent=11 // pred_check_branch
        %123 = sbr.rel (%p121) target = $region20
      $region19: #{deeplab_forward.13} parent=11 // pred_region
        _
      $region20: #{deeplab_forward.13} parent=11 // pred_fallthru
        _
    $region12: #{deeplab_forward.13} parent=5 // pred_fallthru
      _
    %p124 = scmp.lt.s32.totalorder %s9, 2
    // Predicated region
    $region21: #{deeplab_forward.13} parent=5 // pred_check
      %p125 = pneg %p124
    $region22: #{deeplab_forward.13} parent=5 // pred_check_branch
      %127 = sbr.rel (%p125) target = $region24
    $region23: #{deeplab_forward.13} parent=5 // pred_region
      // Predicated region
      $region25: #{deeplab_forward.13} parent=23 // pred_check
        %p128 = pneg %p29
      $region26: #{deeplab_forward.13} parent=23 // pred_check_branch
        %130 = sbr.rel (%p128) target = $region28
      $region27: #{deeplab_forward.13} parent=23 // pred_region
        %s131 = smul.u32 8, %s9
        %p132 = scmp.lt.s32.totalorder %s131, 15
        %s133 = scalar_select %p132, %s131, 15
        %s134 = smul.addr %s133, 4
        %s135 = scalar_lea.vmem %s0, %s134
        %s136 = smul.u32 8, %s9
      $region28: #{deeplab_forward.13} parent=23 // pred_fallthru
        _
    $region24: #{deeplab_forward.13} parent=5 // pred_fallthru
      _
    %p137 = scmp.le.s32.totalorder 1, %s9
    %p138 = scmp.lt.s32.totalorder %s9, 3
    %p139 = pnand %p137, %p138
    %p140 = pneg %p139
    // Predicated region
    $region29: #{deeplab_forward.13} parent=5 // pred_check
      _
    $region30: #{deeplab_forward.13} parent=5 // pred_check_branch
      %142 = sbr.rel (%p139) target = $region32
    $region31: #{deeplab_forward.13} parent=5 // pred_region
      %s143 = ssub.s32 %s9, 1
      %s144 = smul.u32 8, %s14
      %p145 = scmp.lt.s32.totalorder %s144, 15
      %s146 = scalar_select %p145, %s144, 15
      %s147 = smul.addr %s146, 4
      %s148 = scalar_lea.vmem %s0, %s147
      %p149 = pneg %p35
      %p150 = pneg %p32
      %p151 = pneg %p56
      %p152 = pneg %p53
      %p153 = pneg %p77
      %p154 = pneg %p74
      %p155 = pneg %p103
      %p156 = pneg %p100
      %s157 = smul.u32 8, %s14
      %p158 = scmp.lt.s32.totalorder %s157, 15
      %s159 = scalar_select %p158, %s157, 15
      %s160 = smul.addr %s159, 4
      %s161 = scalar_lea.vmem %s3, %s160
      %s162 = smul.u32 8, %s14
      %p163 = scmp.lt.s32.totalorder %s162, 15
      %s164 = scalar_select %p163, %s162, 15
      %s165 = smul.addr %s164, 4
      %s166 = scalar_lea.vmem %s0, %s165
      %s167 = smul.u32 8, %s14
      %s168 = smul.u32 8, %s14
      %p169 = scmp.lt.s32.totalorder %s168, 15
      %s170 = scalar_select %p169, %s168, 15
      %s171 = smul.addr %s170, 4
      %s172 = scalar_lea.vmem %s3, %s171
      %s173 = smul.u32 8, %s14
      %v175 = vld [vmem:[%s166] sm:$0xf]
      %v176 = vld [vmem:[%s166 + $0x4] sm:$0xf]
      %v177 = vld [vmem:[%s166 + $0x8] sm:$0xf]
      %v178 = vld [vmem:[%s166 + $0xc] sm:$0xf]
      %v179 = vld [vmem:[%s166 + $0x10] sm:$0xf]
      %v180 = vld [vmem:[%s166 + $0x14] sm:$0xf]
      %v181 = vld [vmem:[%s166 + $0x18] sm:$0xf]
      %v182 = vld [vmem:[%s166 + $0x1c] sm:$0xf]
      %v183 = vld [vmem:[%s1] sm:$0xf]
      %v184 = vld [vmem:[%s1 + $0x4] sm:$0xf]
      %v185 = vld [vmem:[%s1 + $0x8] sm:$0xf]
      %v186 = vld [vmem:[%s1 + $0xc] sm:$0xf]
      %v195 = vunpack.c.l.b16 %v175
      %v196 = vunpack.c.l.b16 %v176
      %v197 = vunpack.c.l.b16 %v177
      %v198 = vunpack.c.l.b16 %v178
      %v199 = vunpack.c.l.b16 %v179
      %v200 = vunpack.c.l.b16 %v180
      %v201 = vunpack.c.l.b16 %v181
      %v202 = vunpack.c.l.b16 %v182
      %v203 = vpack.c.b16 %v196, %v195
      %v204 = vpack.c.b16 %v198, %v197
      %v205 = vpack.c.b16 %v200, %v199
      %v206 = vpack.c.b16 %v202, %v201
      %v211 = vunpack.c.l.b16 %v183
      %v212 = vunpack.c.l.b16 %v184
      %v213 = vunpack.c.l.b16 %v185
      %v214 = vunpack.c.l.b16 %v186
      %v215 = vpack.c.b16 %v212, %v211
      %v216 = vpack.c.b16 %v214, %v213
      %vm219 = vcmask 261120
      %v221 = vsel %vm219, %v203, 0
      %v224 = vsel %vm219, %v204, 0
      %v227 = vsel %vm219, %v205, 0
      %v230 = vsel %vm219, %v206, 0
      %232 = vmatprep.subr.bf16.mxu0 0
      %233 = vmatpush1.bf16.msra.mxu0 %v215
      %234 = vmatprep.subr.bf16.mxu0 0
      %235 = vmatpush1.bf16.msra.mxu0 %v216
      %236 = vmatprep.subr.bf16.mxu0 0
      %237 = vmatpush1.bf16.msra.mxu0 0
      %238 = vmatprep.subr.bf16.mxu0 0
      %239 = vmatpush1.bf16.msra.mxu0 0
      %240 = vmatprep.subr.bf16.mxu0 0
      %241 = vmatpush1.bf16.msra.mxu0 0
      %242 = vmatprep.subr.bf16.mxu0 0
      %243 = vmatpush1.bf16.msra.mxu0 0
      %244 = vmatprep.subr.bf16.mxu0 0
      %245 = vmatpush1.bf16.msra.mxu0 0
      %246 = vmatprep.subr.bf16.mxu0 0
      %247 = vmatpush1.bf16.msra.mxu0 0
      %248 = vmatprep.subr.bf16.mxu0 0
      %249 = vmatpush1.bf16.msra.mxu0 0
      %250 = vmatprep.subr.bf16.mxu0 0
      %251 = vmatpush1.bf16.msra.mxu0 0
      %252 = vmatprep.subr.bf16.mxu0 0
      %253 = vmatpush1.bf16.msra.mxu0 0
      %254 = vmatprep.subr.bf16.mxu0 0
      %255 = vmatpush1.bf16.msra.mxu0 0
      %256 = vmatprep.subr.bf16.mxu0 0
      %257 = vmatpush1.bf16.msra.mxu0 0
      %258 = vmatprep.subr.bf16.mxu0 0
      %259 = vmatpush1.bf16.msra.mxu0 0
      %260 = vmatprep.subr.bf16.mxu0 0
      %261 = vmatpush1.bf16.msra.mxu0 0
      %262 = vmatprep.subr.bf16.mxu0 0
      %263 = vmatpush1.bf16.msra.mxu0 0
      %264 = vmatprep.mubr.bf16.mxu0 0
      %265 = vmatmul.mubr.bf16.gmra.mrb[0].mxu0 %v221
      %v266 = vpop.f32.mrb[0].mxu0
      %v267 = vadd.f32 0.0, %v266
      %v268 = vpop.f32.mrb[0].mxu0
      %v269 = vpop.f32.mrb[0].mxu0
      %v270 = vadd.f32 0.0, %v269
      %v271 = vpop.f32.mrb[0].mxu0
      %272 = vmatprep.mubr.bf16.mxu0 0
      %273 = vmatmul.mubr.bf16.gmra.mrb[0].mxu0 %v224
      %v274 = vpop.f32.mrb[0].mxu0
      %v275 = vadd.f32 0.0, %v274
      %v276 = vpop.f32.mrb[0].mxu0
      %v277 = vpop.f32.mrb[0].mxu0
      %v278 = vadd.f32 0.0, %v277
      %v279 = vpop.f32.mrb[0].mxu0
      %280 = vmatprep.mubr.bf16.mxu0 0
      %281 = vmatmul.mubr.bf16.gmra.mrb[0].mxu0 %v227
      %v282 = vpop.f32.mrb[0].mxu0
      %v283 = vadd.f32 0.0, %v282
      %v284 = vpop.f32.mrb[0].mxu0
      %v285 = vpop.f32.mrb[0].mxu0
      %v286 = vadd.f32 0.0, %v285
      %v287 = vpop.f32.mrb[0].mxu0
      %288 = vmatprep.mubr.bf16.mxu0 0
      %289 = vmatmul.mubr.bf16.gmra.mrb[0].mxu0 %v230
      %v290 = vpop.f32.mrb[0].mxu0
      %v291 = vadd.f32 0.0, %v290
      %v292 = vpop.f32.mrb[0].mxu0
      %v293 = vpop.f32.mrb[0].mxu0
      %v294 = vadd.f32 0.0, %v293
      %v295 = vpop.f32.mrb[0].mxu0
      %296 = vdwg.mxu0
      %v297 = vld [vmem:[%s2] sm:$0x1]
      %v298 = vlaneseq
      %v299 = vshrl.u32 %v298, 7
      %v300 = vsub.s32 0, %v299
      %v301 = vrot.slane %v297, %v300
      %v302 = vmul.f32 %v267, %v301
      %v303 = vmul.f32 %v270, %v301
      %v304 = vmul.f32 %v275, %v301
      %v305 = vmul.f32 %v278, %v301
      %v306 = vmul.f32 %v283, %v301
      %v307 = vmul.f32 %v286, %v301
      %v308 = vmul.f32 %v291, %v301
      %v309 = vmul.f32 %v294, %v301
      %v310 = vld [vmem:[%s2 + $0x1] sm:$0x1]
      %v311 = vlaneseq
      %v312 = vshrl.u32 %v311, 7
      %v313 = vsub.s32 0, %v312
      %v314 = vrot.slane %v310, %v313
      %v315 = vadd.f32 %v302, %v314
      %v316 = vadd.f32 %v303, %v314
      %v317 = vadd.f32 %v304, %v314
      %v318 = vadd.f32 %v305, %v314
      %v319 = vadd.f32 %v306, %v314
      %v320 = vadd.f32 %v307, %v314
      %v321 = vadd.f32 %v308, %v314
      %v322 = vadd.f32 %v309, %v314
      %v323 = vpack.c.bf16 %v316, %v315
      %v324 = vpack.c.bf16 %v318, %v317
      %v325 = vpack.c.bf16 %v320, %v319
      %v326 = vpack.c.bf16 %v322, %v321
      %v331 = vunpack.c.l.b16 %v323
      %v332 = vunpack.c.h.b16 %v323
      %v333 = vunpack.c.l.b16 %v324
      %v334 = vunpack.c.h.b16 %v324
      %v335 = vunpack.c.l.b16 %v325
      %v336 = vunpack.c.h.b16 %v325
      %v337 = vunpack.c.l.b16 %v326
      %v338 = vunpack.c.h.b16 %v326
      %v339 = vpack.c.b16 %v331, %v331
      %v340 = vpack.c.b16 %v332, %v332
      %v341 = vpack.c.b16 %v333, %v333
      %v342 = vpack.c.b16 %v334, %v334
      %v343 = vpack.c.b16 %v335, %v335
      %v344 = vpack.c.b16 %v336, %v336
      %v345 = vpack.c.b16 %v337, %v337
      %v346 = vpack.c.b16 %v338, %v338
      %vm355 = vcmask 166912
      %356 = vst.msk [vmem:[%s172] sm:$0xf] %vm355, %v339
      %357 = vst.msk [vmem:[%s172 + $0x4] sm:$0xf] %vm355, %v340
      %358 = vst.msk [vmem:[%s172 + $0x8] sm:$0xf] %vm355, %v341
      %359 = vst.msk [vmem:[%s172 + $0xc] sm:$0xf] %vm355, %v342
      %360 = vst.msk [vmem:[%s172 + $0x10] sm:$0xf] %vm355, %v343
      %361 = vst.msk [vmem:[%s172 + $0x14] sm:$0xf] %vm355, %v344
      %362 = vst.msk [vmem:[%s172 + $0x18] sm:$0xf] %vm355, %v345
      %363 = vst.msk [vmem:[%s172 + $0x1c] sm:$0xf] %vm355, %v346
      %s364 = smul.u32 8, %s14
      %p365 = scmp.lt.s32.totalorder %s364, 15
      %s366 = scalar_select %p365, %s364, 15
      %s367 = smul.addr %s366, 4
      %s368 = scalar_lea.vmem %s3, %s367
      // Predicated region
      $region33: #{deeplab_forward.13} parent=31 // pred_check
        %p369 = pneg %p100
      $region34: #{deeplab_forward.13} parent=31 // pred_check_branch
        %371 = sbr.rel (%p369) target = $region36
      $region35: #{deeplab_forward.13} parent=31 // pred_region
        %s372 = smul.u32 8, %s14
      $region36: #{deeplab_forward.13} parent=31 // pred_fallthru
        _
    $region32: #{deeplab_forward.13} parent=5 // pred_fallthru
      _
    %p373 = scmp.le.s32.totalorder 2, %s9
    // Predicated region
    $region37: #{deeplab_forward.13} parent=5 // pred_check
      %p374 = pneg %p373
    $region38: #{deeplab_forward.13} parent=5 // pred_check_branch
      %376 = sbr.rel (%p374) target = $region40
    $region39: #{deeplab_forward.13} parent=5 // pred_region
      %s377 = ssub.s32 %s9, 2
      // Predicated region
      $region41: #{deeplab_forward.13} parent=39 // pred_check
        %p378 = pneg %p106
      $region42: #{deeplab_forward.13} parent=39 // pred_check_branch
        %380 = sbr.rel (%p378) target = $region44
      $region43: #{deeplab_forward.13} parent=39 // pred_region
        %s381 = smul.u32 8, %s15
        %p382 = scmp.lt.s32.totalorder %s381, 15
        %s383 = scalar_select %p382, %s381, 15
        %s384 = smul.addr %s383, 4
        %s385 = scalar_lea.vmem %s3, %s384
      $region44: #{deeplab_forward.13} parent=39 // pred_fallthru
        _
    $region40: #{deeplab_forward.13} parent=5 // pred_fallthru
      _
  $region6: #{deeplab_forward.13} parent=0 // loop_footer
    %s13 = sadd.s32 1, %s9
  $region7: #{deeplab_forward.13} parent=0 // loop_footer_branch
    %8 = sbr.rel target = $region3
  $region8: #{deeplab_forward.13} parent=0 // loop_exit
    _

// kernel: deeplab_forward.11
$region0: #{deeplab_forward.11}
  #allocation0 [shape = 'u32[]', space=smem, size = 0x4, offset = 0x4, fixed_abs, tag = 'smem constant byte address 0x4 - core index']
  #allocation1 [shape = 'u32[144,128]{1,0:T(1,128)}', space=vmem, size = 0x12000, scoped, tag = 'internal scratch']
  %s0 = inlined_call_operand.vmem [shape: bf16[128,432], index: 0, kind: input, shape index: {}]
  %s1 = inlined_call_operand.vmem [shape: bf16[432,32], index: 1, kind: input, shape index: {}]
  %s2 = inlined_call_operand.vmem [shape: f32[2,32], index: 2, kind: input, shape index: {}]
  %s3 = inlined_call_operand.vmem [shape: bf16[128,32], index: 3, kind: output, shape index: {}]
  %s4 = sld [smem:[#allocation0]]
  $region45: #{deeplab_forward.11} parent=0
    _
  %s6 = ssub.s32 1, %s4
  %s7 = scalar_select 0, %s6, %s4
  loop: start=0, step=1, limit=4
  $region2: #{deeplab_forward.11} parent=0 // loop_pre_header
    _
  $region3: #{deeplab_forward.11} parent=0 // loop_header
    %s9 = sphi 0, %s13
    %p10 = scmp.ge.s32.totalorder %s9, 4
    %s19 = sphi 0, %s21
    %s22 = sphi 0, %s19
    %s23 = sphi 0, %s22
    %s39 = sphi 0, %s23
    %s43 = sphi 0, %s43
    %s45 = sphi 0, %s43
    %s46 = sphi 0, %s45
    %s60 = sphi 0, %s46
    %s64 = sphi 0, %s64
    %s66 = sphi 0, %s64
    %s67 = sphi 0, %s66
    %s81 = sphi 0, %s67
    %s87 = sphi 0, %s89
    %s90 = sphi 0, %s87
    %s91 = sphi 0, %s90
    %s107 = sphi 0, %s91
  $region4: #{deeplab_forward.11} parent=0 // loop_header_branch
    %12 = sbr.rel (%p10) target = $region8
  $region5: #{deeplab_forward.11} parent=0 // loop_body
    %s14 = ssub.s32 %s9, 1
    %s15 = ssub.s32 %s9, 2
    %s16 = sadd.s32 %s9, 1
    %s17 = ssub.s32 %s9, %s16
    %p18 = scmp.eq.s32.totalorder %s17, 0
    %s20 = sadd.s32 %s19, 1
    %s21 = scalar_select %p18, %s19, %s20
    %p24 = pneg %p18
    %p25 = scmp.eq.s32.totalorder %s9, 1
    %p26 = por %p24, %p25
    %p27 = scmp.ne.s32.totalorder %s19, %s22
    %p28 = scmp.eq.s32.totalorder %s9, 0
    %p29 = por %p27, %p28
    %p30 = scmp.ne.s32.totalorder %s19, %s22
    %p31 = scmp.eq.s32.totalorder %s14, 1
    %p32 = por %p30, %p31
    %p33 = scmp.ne.s32.totalorder %s22, %s23
    %p34 = scmp.eq.s32.totalorder %s14, 0
    %p35 = por %p33, %p34
    %p36 = scmp.ne.s32.totalorder %s22, %s23
    %p37 = scmp.eq.s32.totalorder %s15, 1
    %p38 = por %p36, %p37
    %p40 = scmp.ne.s32.totalorder %s23, %s39
    %p41 = scmp.eq.s32.totalorder %s15, 0
    %p42 = por %p40, %p41
    %s44 = sadd.s32 %s43, 1
    %p47 = scmp.eq.s32.totalorder %s9, 1
    %p48 = scmp.ne.s32.totalorder %s43, %s45
    %p49 = scmp.eq.s32.totalorder %s9, 0
    %p50 = por %p48, %p49
    %p51 = scmp.ne.s32.totalorder %s43, %s45
    %p52 = scmp.eq.s32.totalorder %s14, 1
    %p53 = por %p51, %p52
    %p54 = scmp.ne.s32.totalorder %s45, %s46
    %p55 = scmp.eq.s32.totalorder %s14, 0
    %p56 = por %p54, %p55
    %p57 = scmp.ne.s32.totalorder %s45, %s46
    %p58 = scmp.eq.s32.totalorder %s15, 1
    %p59 = por %p57, %p58
    %p61 = scmp.ne.s32.totalorder %s46, %s60
    %p62 = scmp.eq.s32.totalorder %s15, 0
    %p63 = por %p61, %p62
    %s65 = sadd.s32 %s64, 1
    %p68 = scmp.eq.s32.totalorder %s9, 1
    %p69 = scmp.ne.s32.totalorder %s64, %s66
    %p70 = scmp.eq.s32.totalorder %s9, 0
    %p71 = por %p69, %p70
    %p72 = scmp.ne.s32.totalorder %s64, %s66
    %p73 = scmp.eq.s32.totalorder %s14, 1
    %p74 = por %p72, %p73
    %p75 = scmp.ne.s32.totalorder %s66, %s67
    %p76 = scmp.eq.s32.totalorder %s14, 0
    %p77 = por %p75, %p76
    %p78 = scmp.ne.s32.totalorder %s66, %s67
    %p79 = scmp.eq.s32.totalorder %s15, 1
    %p80 = por %p78, %p79
    %p82 = scmp.ne.s32.totalorder %s67, %s81
    %p83 = scmp.eq.s32.totalorder %s15, 0
    %p84 = por %p82, %p83
    %s85 = ssub.s32 %s9, %s16
    %p86 = scmp.eq.s32.totalorder %s85, 0
    %s88 = sadd.s32 %s87, 1
    %s89 = scalar_select %p86, %s87, %s88
    %p92 = pneg %p86
    %p93 = scmp.eq.s32.totalorder %s9, 1
    %p94 = por %p92, %p93
    %p95 = scmp.ne.s32.totalorder %s87, %s90
    %p96 = scmp.eq.s32.totalorder %s9, 0
    %p97 = por %p95, %p96
    %p98 = scmp.ne.s32.totalorder %s87, %s90
    %p99 = scmp.eq.s32.totalorder %s14, 1
    %p100 = por %p98, %p99
    %p101 = scmp.ne.s32.totalorder %s90, %s91
    %p102 = scmp.eq.s32.totalorder %s14, 0
    %p103 = por %p101, %p102
    %p104 = scmp.ne.s32.totalorder %s90, %s91
    %p105 = scmp.eq.s32.totalorder %s15, 1
    %p106 = por %p104, %p105
    %p108 = scmp.ne.s32.totalorder %s91, %s107
    %p109 = scmp.eq.s32.totalorder %s15, 0
    %p110 = por %p108, %p109
    %p111 = scmp.le.s32.totalorder 1, %s9
    %p112 = scmp.lt.s32.totalorder %s9, 3
    %p113 = pnand %p111, %p112
    %p114 = pneg %p113
    // Predicated region
    $region9: #{deeplab_forward.11} parent=5 // pred_check
      _
    $region10: #{deeplab_forward.11} parent=5 // pred_check_branch
      %116 = sbr.rel (%p113) target = $region12
    $region11: #{deeplab_forward.11} parent=5 // pred_region
      %s117 = ssub.s32 %s9, 1
      // Predicated region
      $region13: #{deeplab_forward.11} parent=11 // pred_check
        %p118 = pneg %p56
      $region14: #{deeplab_forward.11} parent=11 // pred_check_branch
        %120 = sbr.rel (%p118) target = $region16
      $region15: #{deeplab_forward.11} parent=11 // pred_region
        _
      $region16: #{deeplab_forward.11} parent=11 // pred_fallthru
        _
      // Predicated region
      $region17: #{deeplab_forward.11} parent=11 // pred_check
        %p121 = pneg %p77
      $region18: #{deeplab_forward.11} parent=11 // pred_check_branch
        %123 = sbr.rel (%p121) target = $region20
      $region19: #{deeplab_forward.11} parent=11 // pred_region
        _
      $region20: #{deeplab_forward.11} parent=11 // pred_fallthru
        _
    $region12: #{deeplab_forward.11} parent=5 // pred_fallthru
      _
    %p124 = scmp.lt.s32.totalorder %s9, 2
    // Predicated region
    $region21: #{deeplab_forward.11} parent=5 // pred_check
      %p125 = pneg %p124
    $region22: #{deeplab_forward.11} parent=5 // pred_check_branch
      %127 = sbr.rel (%p125) target = $region24
    $region23: #{deeplab_forward.11} parent=5 // pred_region
      // Predicated region
      $region25: #{deeplab_forward.11} parent=23 // pred_check
        %p128 = pneg %p29
      $region26: #{deeplab_forward.11} parent=23 // pred_check_branch
        %130 = sbr.rel (%p128) target = $region28
      $region27: #{deeplab_forward.11} parent=23 // pred_region
        %s131 = smul.u32 8, %s9
        %p132 = scmp.lt.s32.totalorder %s131, 15
        %s133 = scalar_select %p132, %s131, 15
        %s134 = smul.addr %s133, 4
        %s135 = smul.addr %s134, 4
        %s136 = scalar_lea.vmem %s0, %s135
        %s137 = smul.u32 8, %s9
      $region28: #{deeplab_forward.11} parent=23 // pred_fallthru
        _
    $region24: #{deeplab_forward.11} parent=5 // pred_fallthru
      _
    %p138 = scmp.le.s32.totalorder 1, %s9
    %p139 = scmp.lt.s32.totalorder %s9, 3
    %p140 = pnand %p138, %p139
    %p141 = pneg %p140
    // Predicated region
    $region29: #{deeplab_forward.11} parent=5 // pred_check
      _
    $region30: #{deeplab_forward.11} parent=5 // pred_check_branch
      %143 = sbr.rel (%p140) target = $region32
    $region31: #{deeplab_forward.11} parent=5 // pred_region
      %s144 = ssub.s32 %s9, 1
      %s145 = smul.u32 8, %s14
      %p146 = scmp.lt.s32.totalorder %s145, 15
      %s147 = scalar_select %p146, %s145, 15
      %s148 = smul.addr %s147, 4
      %s149 = smul.addr %s148, 4
      %s150 = scalar_lea.vmem %s0, %s149
      %p151 = pneg %p35
      %p152 = pneg %p32
      %p153 = pneg %p56
      %p154 = pneg %p53
      %p155 = pneg %p77
      %p156 = pneg %p74
      %p157 = pneg %p103
      %p158 = pneg %p100
      %s159 = smul.u32 8, %s14
      %p160 = scmp.lt.s32.totalorder %s159, 15
      %s161 = scalar_select %p160, %s159, 15
      %s162 = smul.addr %s161, 4
      %s163 = scalar_lea.vmem %s3, %s162
      %s164 = smul.u32 8, %s14
      %p165 = scmp.lt.s32.totalorder %s164, 15
      %s166 = scalar_select %p165, %s164, 15
      %s167 = smul.addr %s166, 4
      %s168 = smul.addr %s167, 4
      %s169 = scalar_lea.vmem %s0, %s168
      %s170 = smul.u32 8, %s14
      %s171 = smul.u32 8, %s14
      %p172 = scmp.lt.s32.totalorder %s171, 15
      %s173 = scalar_select %p172, %s171, 15
      %s174 = smul.addr %s173, 4
      %s175 = scalar_lea.vmem %s3, %s174
      %s176 = smul.u32 8, %s14
      %v178 = vld [vmem:[%s169] sm:$0xff]
      %v179 = vld [vmem:[%s169 + $0x8] sm:$0xff]
      %v180 = vld [vmem:[%s169 + $0x10] sm:$0xff]
      %v181 = vld [vmem:[%s169 + $0x18] sm:$0xff]
      %v182 = vld [vmem:[%s169 + $0x20] sm:$0xff]
      %v183 = vld [vmem:[%s169 + $0x28] sm:$0xff]
      %v184 = vld [vmem:[%s169 + $0x30] sm:$0xff]
      %v185 = vld [vmem:[%s169 + $0x38] sm:$0xff]
      %v186 = vld [vmem:[%s169 + $0x40] sm:$0xff]
      %v187 = vld [vmem:[%s169 + $0x48] sm:$0xff]
      %v188 = vld [vmem:[%s169 + $0x50] sm:$0xff]
      %v189 = vld [vmem:[%s169 + $0x58] sm:$0xff]
      %v190 = vld [vmem:[%s169 + $0x60] sm:$0xff]
      %v191 = vld [vmem:[%s169 + $0x68] sm:$0xff]
      %v192 = vld [vmem:[%s169 + $0x70] sm:$0xff]
      %v193 = vld [vmem:[%s169 + $0x78] sm:$0xff]
      %v194 = vld [vmem:[%s1] sm:$0xf]
      %v195 = vld [vmem:[%s1 + $0x4] sm:$0xf]
      %v196 = vld [vmem:[%s1 + $0x8] sm:$0xf]
      %v197 = vld [vmem:[%s1 + $0xc] sm:$0xf]
      %v198 = vld [vmem:[%s1 + $0x10] sm:$0xf]
      %v199 = vld [vmem:[%s1 + $0x14] sm:$0xf]
      %v200 = vld [vmem:[%s1 + $0x18] sm:$0xf]
      %v201 = vld [vmem:[%s1 + $0x1c] sm:$0xf]
      %v202 = vld [vmem:[%s1 + $0x20] sm:$0xf]
      %v203 = vld [vmem:[%s1 + $0x24] sm:$0xf]
      %v204 = vld [vmem:[%s1 + $0x28] sm:$0xf]
      %v205 = vld [vmem:[%s1 + $0x2c] sm:$0xf]
      %v206 = vld [vmem:[%s1 + $0x30] sm:$0xf]
      %v207 = vld [vmem:[%s1 + $0x34] sm:$0xf]
      %v208 = vld [vmem:[%s1 + $0x38] sm:$0xf]
      %v209 = vld [vmem:[%s1 + $0x3c] sm:$0xf]
      %v210 = vld [vmem:[%s1 + $0x40] sm:$0xf]
      %v211 = vld [vmem:[%s1 + $0x44] sm:$0xf]
      %v212 = vld [vmem:[%s1 + $0x48] sm:$0xf]
      %v213 = vld [vmem:[%s1 + $0x4c] sm:$0xf]
      %v214 = vld [vmem:[%s1 + $0x50] sm:$0xf]
      %v215 = vld [vmem:[%s1 + $0x54] sm:$0xf]
      %v216 = vld [vmem:[%s1 + $0x58] sm:$0xf]
      %v217 = vld [vmem:[%s1 + $0x5c] sm:$0xf]
      %v218 = vld [vmem:[%s1 + $0x60] sm:$0xf]
      %v219 = vld [vmem:[%s1 + $0x64] sm:$0xf]
      %v220 = vld [vmem:[%s1 + $0x68] sm:$0xf]
      %v221 = vld [vmem:[%s1 + $0x6c] sm:$0xf]
      %v222 = vld [vmem:[%s1 + $0x70] sm:$0xf]
      %v223 = vld [vmem:[%s1 + $0x74] sm:$0xf]
      %v224 = vld [vmem:[%s1 + $0x78] sm:$0xf]
      %v225 = vld [vmem:[%s1 + $0x7c] sm:$0xf]
      %v226 = vld [vmem:[%s1 + $0x80] sm:$0xf]
      %v227 = vld [vmem:[%s1 + $0x84] sm:$0xf]
      %v228 = vld [vmem:[%s1 + $0x88] sm:$0xf]
      %v229 = vld [vmem:[%s1 + $0x8c] sm:$0xf]
      %v230 = vld [vmem:[%s1 + $0x90] sm:$0xf]
      %v231 = vld [vmem:[%s1 + $0x94] sm:$0xf]
      %v232 = vld [vmem:[%s1 + $0x98] sm:$0xf]
      %v233 = vld [vmem:[%s1 + $0x9c] sm:$0xf]
      %v234 = vld [vmem:[%s1 + $0xa0] sm:$0xf]
      %v235 = vld [vmem:[%s1 + $0xa4] sm:$0xf]
      %v236 = vld [vmem:[%s1 + $0xa8] sm:$0xf]
      %v237 = vld [vmem:[%s1 + $0xac] sm:$0xf]
      %v238 = vld [vmem:[%s1 + $0xb0] sm:$0xf]
      %v239 = vld [vmem:[%s1 + $0xb4] sm:$0xf]
      %v240 = vld [vmem:[%s1 + $0xb8] sm:$0xf]
      %v241 = vld [vmem:[%s1 + $0xbc] sm:$0xf]
      %v242 = vld [vmem:[%s1 + $0xc0] sm:$0xf]
      %v243 = vld [vmem:[%s1 + $0xc4] sm:$0xf]
      %v244 = vld [vmem:[%s1 + $0xc8] sm:$0xf]
      %v245 = vld [vmem:[%s1 + $0xcc] sm:$0xf]
      %v246 = vld [vmem:[%s1 + $0xd0] sm:$0xf]
      %v247 = vld [vmem:[%s1 + $0xd4] sm:$0xf]
      %v264 = vunpack.c.l.b16 %v178
      %v265 = vunpack.c.h.b16 %v178
      %v266 = vunpack.c.l.b16 %v179
      %v267 = vunpack.c.h.b16 %v179
      %v268 = vunpack.c.l.b16 %v180
      %v269 = vunpack.c.h.b16 %v180
      %v270 = vunpack.c.l.b16 %v181
      %v271 = vunpack.c.h.b16 %v181
      %v272 = vunpack.c.l.b16 %v182
      %v273 = vunpack.c.h.b16 %v182
      %v274 = vunpack.c.l.b16 %v183
      %v275 = vunpack.c.h.b16 %v183
      %v276 = vunpack.c.l.b16 %v184
      %v277 = vunpack.c.h.b16 %v184
      %v278 = vunpack.c.l.b16 %v185
      %v279 = vunpack.c.h.b16 %v185
      %v280 = vunpack.c.l.b16 %v186
      %v281 = vunpack.c.h.b16 %v186
      %v282 = vunpack.c.l.b16 %v187
      %v283 = vunpack.c.h.b16 %v187
      %v284 = vunpack.c.l.b16 %v188
      %v285 = vunpack.c.h.b16 %v188
      %v286 = vunpack.c.l.b16 %v189
      %v287 = vunpack.c.h.b16 %v189
      %v288 = vunpack.c.l.b16 %v190
      %v289 = vunpack.c.h.b16 %v190
      %v290 = vunpack.c.l.b16 %v191
      %v291 = vunpack.c.h.b16 %v191
      %v292 = vunpack.c.l.b16 %v192
      %v293 = vunpack.c.h.b16 %v192
      %v294 = vunpack.c.l.b16 %v193
      %v295 = vunpack.c.h.b16 %v193
      %v296 = vpack.c.b16 %v268, %v264
      %v297 = vpack.c.b16 %v269, %v265
      %v298 = vpack.c.b16 %v270, %v266
      %v299 = vpack.c.b16 %v271, %v267
      %v300 = vpack.c.b16 %v276, %v272
      %v301 = vpack.c.b16 %v277, %v273
      %v302 = vpack.c.b16 %v278, %v274
      %v303 = vpack.c.b16 %v279, %v275
      %v304 = vpack.c.b16 %v284, %v280
      %v305 = vpack.c.b16 %v285, %v281
      %v306 = vpack.c.b16 %v286, %v282
      %v307 = vpack.c.b16 %v287, %v283
      %v308 = vpack.c.b16 %v292, %v288
      %v309 = vpack.c.b16 %v293, %v289
      %v310 = vpack.c.b16 %v294, %v290
      %v311 = vpack.c.b16 %v295, %v291
      %v378 = vunpack.c.l.b16 %v194
      %v379 = vunpack.c.l.b16 %v195
      %v380 = vunpack.c.l.b16 %v196
      %v381 = vunpack.c.l.b16 %v197
      %v382 = vunpack.c.l.b16 %v198
      %v383 = vunpack.c.l.b16 %v199
      %v384 = vunpack.c.l.b16 %v200
      %v385 = vunpack.c.l.b16 %v201
      %v386 = vunpack.c.l.b16 %v202
      %v387 = vunpack.c.l.b16 %v203
      %v388 = vunpack.c.l.b16 %v204
      %v389 = vunpack.c.l.b16 %v205
      %v390 = vunpack.c.l.b16 %v206
      %v391 = vunpack.c.l.b16 %v207
      %v392 = vunpack.c.l.b16 %v208
      %v393 = vunpack.c.l.b16 %v209
      %v394 = vunpack.c.l.b16 %v210
      %v395 = vunpack.c.l.b16 %v211
      %v396 = vunpack.c.l.b16 %v212
      %v397 = vunpack.c.l.b16 %v213
      %v398 = vunpack.c.l.b16 %v214
      %v399 = vunpack.c.l.b16 %v215
      %v400 = vunpack.c.l.b16 %v216
      %v401 = vunpack.c.l.b16 %v217
      %v402 = vunpack.c.l.b16 %v218
      %v403 = vunpack.c.l.b16 %v219
      %v404 = vunpack.c.l.b16 %v220
      %v405 = vunpack.c.l.b16 %v221
      %v406 = vunpack.c.l.b16 %v222
      %v407 = vunpack.c.l.b16 %v223
      %v408 = vunpack.c.l.b16 %v224
      %v409 = vunpack.c.l.b16 %v225
      %v410 = vunpack.c.l.b16 %v226
      %v411 = vunpack.c.l.b16 %v227
      %v412 = vunpack.c.l.b16 %v228
      %v413 = vunpack.c.l.b16 %v229
      %v414 = vunpack.c.l.b16 %v230
      %v415 = vunpack.c.l.b16 %v231
      %v416 = vunpack.c.l.b16 %v232
      %v417 = vunpack.c.l.b16 %v233
      %v418 = vunpack.c.l.b16 %v234
      %v419 = vunpack.c.l.b16 %v235
      %v420 = vunpack.c.l.b16 %v236
      %v421 = vunpack.c.l.b16 %v237
      %v422 = vunpack.c.l.b16 %v238
      %v423 = vunpack.c.l.b16 %v239
      %v424 = vunpack.c.l.b16 %v240
      %v425 = vunpack.c.l.b16 %v241
      %v426 = vunpack.c.l.b16 %v242
      %v427 = vunpack.c.l.b16 %v243
      %v428 = vunpack.c.l.b16 %v244
      %v429 = vunpack.c.l.b16 %v245
      %v430 = vunpack.c.l.b16 %v246
      %v431 = vunpack.c.l.b16 %v247
      %v432 = vpack.c.b16 %v379, %v378
      %v433 = vpack.c.b16 %v381, %v380
      %v434 = vpack.c.b16 %v383, %v382
      %v435 = vpack.c.b16 %v385, %v384
      %v436 = vpack.c.b16 %v387, %v386
      %v437 = vpack.c.b16 %v389, %v388
      %v438 = vpack.c.b16 %v391, %v390
      %v439 = vpack.c.b16 %v393, %v392
      %v440 = vpack.c.b16 %v395, %v394
      %v441 = vpack.c.b16 %v397, %v396
      %v442 = vpack.c.b16 %v399, %v398
      %v443 = vpack.c.b16 %v401, %v400
      %v444 = vpack.c.b16 %v403, %v402
      %v445 = vpack.c.b16 %v405, %v404
      %v446 = vpack.c.b16 %v407, %v406
      %v447 = vpack.c.b16 %v409, %v408
      %v448 = vpack.c.b16 %v411, %v410
      %v449 = vpack.c.b16 %v413, %v412
      %v450 = vpack.c.b16 %v415, %v414
      %v451 = vpack.c.b16 %v417, %v416
      %v452 = vpack.c.b16 %v419, %v418
      %v453 = vpack.c.b16 %v421, %v420
      %v454 = vpack.c.b16 %v423, %v422
      %v455 = vpack.c.b16 %v425, %v424
      %v456 = vpack.c.b16 %v427, %v426
      %v457 = vpack.c.b16 %v429, %v428
      %v458 = vpack.c.b16 %v431, %v430
      %vm486 = vcmask 392192
      %v488 = vsel %vm486, %v299, 0
      %v491 = vsel %vm486, %v303, 0
      %v494 = vsel %vm486, %v307, 0
      %v497 = vsel %vm486, %v311, 0
      %499 = vmatprep.subr.bf16.mxu0 0
      %500 = vmatpush1.bf16.msra.mxu0 %v432
      %501 = vmatprep.subr.bf16.mxu0 0
      %502 = vmatpush1.bf16.msra.mxu0 %v433
      %503 = vmatprep.subr.bf16.mxu0 0
      %504 = vmatpush1.bf16.msra.mxu0 %v434
      %505 = vmatprep.subr.bf16.mxu0 0
      %506 = vmatpush1.bf16.msra.mxu0 %v435
      %507 = vmatprep.subr.bf16.mxu0 0
      %508 = vmatpush1.bf16.msra.mxu0 %v436
      %509 = vmatprep.subr.bf16.mxu0 0
      %510 = vmatpush1.bf16.msra.mxu0 %v437
      %511 = vmatprep.subr.bf16.mxu0 0
      %512 = vmatpush1.bf16.msra.mxu0 %v438
      %513 = vmatprep.subr.bf16.mxu0 0
      %514 = vmatpush1.bf16.msra.mxu0 %v439
      %515 = vmatprep.subr.bf16.mxu0 0
      %516 = vmatpush1.bf16.msra.mxu0 %v440
      %517 = vmatprep.subr.bf16.mxu0 0
      %518 = vmatpush1.bf16.msra.mxu0 %v441
      %519 = vmatprep.subr.bf16.mxu0 0
      %520 = vmatpush1.bf16.msra.mxu0 %v442
      %521 = vmatprep.subr.bf16.mxu0 0
      %522 = vmatpush1.bf16.msra.mxu0 %v443
      %523 = vmatprep.subr.bf16.mxu0 0
      %524 = vmatpush1.bf16.msra.mxu0 %v444
      %525 = vmatprep.subr.bf16.mxu0 0
      %526 = vmatpush1.bf16.msra.mxu0 %v445
      %527 = vmatprep.subr.bf16.mxu0 0
      %528 = vmatpush1.bf16.msra.mxu0 %v446
      %529 = vmatprep.subr.bf16.mxu0 0
      %530 = vmatpush1.bf16.msra.mxu0 %v447
      %531 = vmatprep.mubr.bf16.mxu0 %v297
      %532 = vmatmul.mubr.bf16.gmra.mrb[0].mxu0 %v296
      %v533 = vpop.f32.mrb[0].mxu0
      %v534 = vadd.f32 0.0, %v533
      %v535 = vpop.f32.mrb[0].mxu0
      %v536 = vpop.f32.mrb[0].mxu0
      %v537 = vadd.f32 0.0, %v536
      %v538 = vpop.f32.mrb[0].mxu0
      %539 = vmatprep.mubr.bf16.mxu0 %v301
      %540 = vmatmul.mubr.bf16.gmra.mrb[0].mxu0 %v300
      %v541 = vpop.f32.mrb[0].mxu0
      %v542 = vadd.f32 0.0, %v541
      %v543 = vpop.f32.mrb[0].mxu0
      %v544 = vpop.f32.mrb[0].mxu0
      %v545 = vadd.f32 0.0, %v544
      %v546 = vpop.f32.mrb[0].mxu0
      %547 = vmatprep.mubr.bf16.mxu0 %v305
      %548 = vmatmul.mubr.bf16.gmra.mrb[0].mxu0 %v304
      %v549 = vpop.f32.mrb[0].mxu0
      %v550 = vadd.f32 0.0, %v549
      %v551 = vpop.f32.mrb[0].mxu0
      %v552 = vpop.f32.mrb[0].mxu0
      %v553 = vadd.f32 0.0, %v552
      %v554 = vpop.f32.mrb[0].mxu0
      %555 = vmatprep.mubr.bf16.mxu0 %v309
      %556 = vmatmul.mubr.bf16.gmra.mrb[0].mxu0 %v308
      %v557 = vpop.f32.mrb[0].mxu0
      %v558 = vadd.f32 0.0, %v557
      %v559 = vpop.f32.mrb[0].mxu0
      %v560 = vpop.f32.mrb[0].mxu0
      %v561 = vadd.f32 0.0, %v560
      %v562 = vpop.f32.mrb[0].mxu0
      %563 = vdwg.mxu0
      %564 = vmatprep.subr.bf16.mxu0 0
      %565 = vmatpush1.bf16.msra.mxu0 %v448
      %566 = vmatprep.subr.bf16.mxu0 0
      %567 = vmatpush1.bf16.msra.mxu0 %v449
      %568 = vmatprep.subr.bf16.mxu0 0
      %569 = vmatpush1.bf16.msra.mxu0 %v450
      %570 = vmatprep.subr.bf16.mxu0 0
      %571 = vmatpush1.bf16.msra.mxu0 %v451
      %572 = vmatprep.subr.bf16.mxu0 0
      %573 = vmatpush1.bf16.msra.mxu0 %v452
      %574 = vmatprep.subr.bf16.mxu0 0
      %575 = vmatpush1.bf16.msra.mxu0 %v453
      %576 = vmatprep.subr.bf16.mxu0 0
      %577 = vmatpush1.bf16.msra.mxu0 %v454
      %578 = vmatprep.subr.bf16.mxu0 0
      %579 = vmatpush1.bf16.msra.mxu0 %v455
      %580 = vmatprep.subr.bf16.mxu0 0
      %581 = vmatpush1.bf16.msra.mxu0 %v456
      %582 = vmatprep.subr.bf16.mxu0 0
      %583 = vmatpush1.bf16.msra.mxu0 %v457
      %584 = vmatprep.subr.bf16.mxu0 0
      %585 = vmatpush1.bf16.msra.mxu0 %v458
      %586 = vmatprep.subr.bf16.mxu0 0
      %587 = vmatpush1.bf16.msra.mxu0 0
      %588 = vmatprep.subr.bf16.mxu0 0
      %589 = vmatpush1.bf16.msra.mxu0 0
      %590 = vmatprep.subr.bf16.mxu0 0
      %591 = vmatpush1.bf16.msra.mxu0 0
      %592 = vmatprep.subr.bf16.mxu0 0
      %593 = vmatpush1.bf16.msra.mxu0 0
      %594 = vmatprep.subr.bf16.mxu0 0
      %595 = vmatpush1.bf16.msra.mxu0 0
      %596 = vmatprep.mubr.bf16.mxu0 %v488
      %597 = vmatmul.mubr.bf16.gmra.mrb[0].mxu0 %v298
      %v598 = vpop.f32.mrb[0].mxu0
      %v599 = vadd.f32 %v534, %v598
      %v600 = vpop.f32.mrb[0].mxu0
      %v601 = vpop.f32.mrb[0].mxu0
      %v602 = vadd.f32 %v537, %v601
      %v603 = vpop.f32.mrb[0].mxu0
      %604 = vmatprep.mubr.bf16.mxu0 %v491
      %605 = vmatmul.mubr.bf16.gmra.mrb[0].mxu0 %v302
      %v606 = vpop.f32.mrb[0].mxu0
      %v607 = vadd.f32 %v542, %v606
      %v608 = vpop.f32.mrb[0].mxu0
      %v609 = vpop.f32.mrb[0].mxu0
      %v610 = vadd.f32 %v545, %v609
      %v611 = vpop.f32.mrb[0].mxu0
      %612 = vmatprep.mubr.bf16.mxu0 %v494
      %613 = vmatmul.mubr.bf16.gmra.mrb[0].mxu0 %v306
      %v614 = vpop.f32.mrb[0].mxu0
      %v615 = vadd.f32 %v550, %v614
      %v616 = vpop.f32.mrb[0].mxu0
      %v617 = vpop.f32.mrb[0].mxu0
      %v618 = vadd.f32 %v553, %v617
      %v619 = vpop.f32.mrb[0].mxu0
      %620 = vmatprep.mubr.bf16.mxu0 %v497
      %621 = vmatmul.mubr.bf16.gmra.mrb[0].mxu0 %v310
      %v622 = vpop.f32.mrb[0].mxu0
      %v623 = vadd.f32 %v558, %v622
      %v624 = vpop.f32.mrb[0].mxu0
      %v625 = vpop.f32.mrb[0].mxu0
      %v626 = vadd.f32 %v561, %v625
      %v627 = vpop.f32.mrb[0].mxu0
      %628 = vdwg.mxu0
      %v629 = vld [vmem:[%s2] sm:$0x1]
      %v630 = vlaneseq
      %v631 = vshrl.u32 %v630, 7
      %v632 = vsub.s32 0, %v631
      %v633 = vrot.slane %v629, %v632
      %v634 = vmul.f32 %v599, %v633
      %v635 = vmul.f32 %v602, %v633
      %v636 = vmul.f32 %v607, %v633
      %v637 = vmul.f32 %v610, %v633
      %v638 = vmul.f32 %v615, %v633
      %v639 = vmul.f32 %v618, %v633
      %v640 = vmul.f32 %v623, %v633
      %v641 = vmul.f32 %v626, %v633
      %v642 = vld [vmem:[%s2 + $0x1] sm:$0x1]
      %v643 = vlaneseq
      %v644 = vshrl.u32 %v643, 7
      %v645 = vsub.s32 0, %v644
      %v646 = vrot.slane %v642, %v645
      %v647 = vadd.f32 %v634, %v646
      %v648 = vadd.f32 %v635, %v646
      %v649 = vadd.f32 %v636, %v646
      %v650 = vadd.f32 %v637, %v646
      %v651 = vadd.f32 %v638, %v646
      %v652 = vadd.f32 %v639, %v646
      %v653 = vadd.f32 %v640, %v646
      %v654 = vadd.f32 %v641, %v646
      %v655 = vmax.f32 %v647, 0.0
      %v656 = vmax.f32 %v648, 0.0
      %v657 = vmax.f32 %v649, 0.0
      %v658 = vmax.f32 %v650, 0.0
      %v659 = vmax.f32 %v651, 0.0
      %v660 = vmax.f32 %v652, 0.0
      %v661 = vmax.f32 %v653, 0.0
      %v662 = vmax.f32 %v654, 0.0
      %v663 = vpack.c.bf16 %v656, %v655
      %v664 = vpack.c.bf16 %v658, %v657
      %v665 = vpack.c.bf16 %v660, %v659
      %v666 = vpack.c.bf16 %v662, %v661
      %v671 = vunpack.c.l.b16 %v663
      %v672 = vunpack.c.h.b16 %v663
      %v673 = vunpack.c.l.b16 %v664
      %v674 = vunpack.c.h.b16 %v664
      %v675 = vunpack.c.l.b16 %v665
      %v676 = vunpack.c.h.b16 %v665
      %v677 = vunpack.c.l.b16 %v666
      %v678 = vunpack.c.h.b16 %v666
      %v679 = vpack.c.b16 %v671, %v671
      %v680 = vpack.c.b16 %v672, %v672
      %v681 = vpack.c.b16 %v673, %v673
      %v682 = vpack.c.b16 %v674, %v674
      %v683 = vpack.c.b16 %v675, %v675
      %v684 = vpack.c.b16 %v676, %v676
      %v685 = vpack.c.b16 %v677, %v677
      %v686 = vpack.c.b16 %v678, %v678
      %vm695 = vcmask 257024
      %696 = vst.msk [vmem:[%s175] sm:$0xf] %vm695, %v679
      %697 = vst.msk [vmem:[%s175 + $0x4] sm:$0xf] %vm695, %v680
      %698 = vst.msk [vmem:[%s175 + $0x8] sm:$0xf] %vm695, %v681
      %699 = vst.msk [vmem:[%s175 + $0xc] sm:$0xf] %vm695, %v682
      %700 = vst.msk [vmem:[%s175 + $0x10] sm:$0xf] %vm695, %v683
      %701 = vst.msk [vmem:[%s175 + $0x14] sm:$0xf] %vm695, %v684
      %702 = vst.msk [vmem:[%s175 + $0x18] sm:$0xf] %vm695, %v685
      %703 = vst.msk [vmem:[%s175 + $0x1c] sm:$0xf] %vm695, %v686
      %s704 = smul.u32 8, %s14
      %p705 = scmp.lt.s32.totalorder %s704, 15
      %s706 = scalar_select %p705, %s704, 15
      %s707 = smul.addr %s706, 4
      %s708 = scalar_lea.vmem %s3, %s707
      // Predicated region
      $region33: #{deeplab_forward.11} parent=31 // pred_check
        %p709 = pneg %p100
      $region34: #{deeplab_forward.11} parent=31 // pred_check_branch
        %711 = sbr.rel (%p709) target = $region36
      $region35: #{deeplab_forward.11} parent=31 // pred_region
        %s712 = smul.u32 8, %s14
      $region36: #{deeplab_forward.11} parent=31 // pred_fallthru
        _
    $region32: #{deeplab_forward.11} parent=5 // pred_fallthru
      _
    %p713 = scmp.le.s32.totalorder 2, %s9
    // Predicated region
    $region37: #{deeplab_forward.11} parent=5 // pred_check
      %p714 = pneg %p713
    $region38: #{deeplab_forward.11} parent=5 // pred_check_branch
      %716 = sbr.rel (%p714) target = $region40
    $region39: #{deeplab_forward.11} parent=5 // pred_region
      %s717 = ssub.s32 %s9, 2
      // Predicated region
      $region41: #{deeplab_forward.11} parent=39 // pred_check
        %p718 = pneg %p106
      $region42: #{deeplab_forward.11} parent=39 // pred_check_branch
        %720 = sbr.rel (%p718) target = $region44
      $region43: #{deeplab_forward.11} parent=39 // pred_region
        %s721 = smul.u32 8, %s15
        %p722 = scmp.lt.s32.totalorder %s721, 15
        %s723 = scalar_select %p722, %s721, 15
        %s724 = smul.addr %s723, 4
        %s725 = scalar_lea.vmem %s3, %s724
      $region44: #{deeplab_forward.11} parent=39 // pred_fallthru
        _
    $region40: #{deeplab_forward.11} parent=5 // pred_fallthru
      _
  $region6: #{deeplab_forward.11} parent=0 // loop_footer
    %s13 = sadd.s32 1, %s9
  $region7: #{deeplab_forward.11} parent=0 // loop_footer_branch
    %8 = sbr.rel target = $region3
  $region8: #{deeplab_forward.11} parent=0 // loop_exit
    _

// kernel: deeplab_forward.12
$region0: #{deeplab_forward.12}
  #allocation0 [shape = 'u32[]', space=smem, size = 0x4, offset = 0x4, fixed_abs, tag = 'smem constant byte address 0x4 - core index']
  #allocation1 [shape = 'u32[144,128]{1,0:T(1,128)}', space=vmem, size = 0x12000, scoped, tag = 'internal scratch']
  %s0 = inlined_call_operand.vmem [shape: bf16[128,288], index: 0, kind: input, shape index: {}]
  %s1 = inlined_call_operand.vmem [shape: bf16[288,32], index: 1, kind: input, shape index: {}]
  %s2 = inlined_call_operand.vmem [shape: f32[2,32], index: 2, kind: input, shape index: {}]
  %s3 = inlined_call_operand.vmem [shape: bf16[128,32], index: 3, kind: output, shape index: {}]
  %s4 = sld [smem:[#allocation0]]
  $region45: #{deeplab_forward.12} parent=0
    _
  %s6 = ssub.s32 1, %s4
  %s7 = scalar_select 0, %s6, %s4
  loop: start=0, step=1, limit=4
  $region2: #{deeplab_forward.12} parent=0 // loop_pre_header
    _
  $region3: #{deeplab_forward.12} parent=0 // loop_header
    %s9 = sphi 0, %s13
    %p10 = scmp.ge.s32.totalorder %s9, 4
    %s19 = sphi 0, %s21
    %s22 = sphi 0, %s19
    %s23 = sphi 0, %s22
    %s39 = sphi 0, %s23
    %s43 = sphi 0, %s43
    %s45 = sphi 0, %s43
    %s46 = sphi 0, %s45
    %s60 = sphi 0, %s46
    %s64 = sphi 0, %s64
    %s66 = sphi 0, %s64
    %s67 = sphi 0, %s66
    %s81 = sphi 0, %s67
    %s87 = sphi 0, %s89
    %s90 = sphi 0, %s87
    %s91 = sphi 0, %s90
    %s107 = sphi 0, %s91
  $region4: #{deeplab_forward.12} parent=0 // loop_header_branch
    %12 = sbr.rel (%p10) target = $region8
  $region5: #{deeplab_forward.12} parent=0 // loop_body
    %s14 = ssub.s32 %s9, 1
    %s15 = ssub.s32 %s9, 2
    %s16 = sadd.s32 %s9, 1
    %s17 = ssub.s32 %s9, %s16
    %p18 = scmp.eq.s32.totalorder %s17, 0
    %s20 = sadd.s32 %s19, 1
    %s21 = scalar_select %p18, %s19, %s20
    %p24 = pneg %p18
    %p25 = scmp.eq.s32.totalorder %s9, 1
    %p26 = por %p24, %p25
    %p27 = scmp.ne.s32.totalorder %s19, %s22
    %p28 = scmp.eq.s32.totalorder %s9, 0
    %p29 = por %p27, %p28
    %p30 = scmp.ne.s32.totalorder %s19, %s22
    %p31 = scmp.eq.s32.totalorder %s14, 1
    %p32 = por %p30, %p31
    %p33 = scmp.ne.s32.totalorder %s22, %s23
    %p34 = scmp.eq.s32.totalorder %s14, 0
    %p35 = por %p33, %p34
    %p36 = scmp.ne.s32.totalorder %s22, %s23
    %p37 = scmp.eq.s32.totalorder %s15, 1
    %p38 = por %p36, %p37
    %p40 = scmp.ne.s32.totalorder %s23, %s39
    %p41 = scmp.eq.s32.totalorder %s15, 0
    %p42 = por %p40, %p41
    %s44 = sadd.s32 %s43, 1
    %p47 = scmp.eq.s32.totalorder %s9, 1
    %p48 = scmp.ne.s32.totalorder %s43, %s45
    %p49 = scmp.eq.s32.totalorder %s9, 0
    %p50 = por %p48, %p49
    %p51 = scmp.ne.s32.totalorder %s43, %s45
    %p52 = scmp.eq.s32.totalorder %s14, 1
    %p53 = por %p51, %p52
    %p54 = scmp.ne.s32.totalorder %s45, %s46
    %p55 = scmp.eq.s32.totalorder %s14, 0
    %p56 = por %p54, %p55
    %p57 = scmp.ne.s32.totalorder %s45, %s46
    %p58 = scmp.eq.s32.totalorder %s15, 1
    %p59 = por %p57, %p58
    %p61 = scmp.ne.s32.totalorder %s46, %s60
    %p62 = scmp.eq.s32.totalorder %s15, 0
    %p63 = por %p61, %p62
    %s65 = sadd.s32 %s64, 1
    %p68 = scmp.eq.s32.totalorder %s9, 1
    %p69 = scmp.ne.s32.totalorder %s64, %s66
    %p70 = scmp.eq.s32.totalorder %s9, 0
    %p71 = por %p69, %p70
    %p72 = scmp.ne.s32.totalorder %s64, %s66
    %p73 = scmp.eq.s32.totalorder %s14, 1
    %p74 = por %p72, %p73
    %p75 = scmp.ne.s32.totalorder %s66, %s67
    %p76 = scmp.eq.s32.totalorder %s14, 0
    %p77 = por %p75, %p76
    %p78 = scmp.ne.s32.totalorder %s66, %s67
    %p79 = scmp.eq.s32.totalorder %s15, 1
    %p80 = por %p78, %p79
    %p82 = scmp.ne.s32.totalorder %s67, %s81
    %p83 = scmp.eq.s32.totalorder %s15, 0
    %p84 = por %p82, %p83
    %s85 = ssub.s32 %s9, %s16
    %p86 = scmp.eq.s32.totalorder %s85, 0
    %s88 = sadd.s32 %s87, 1
    %s89 = scalar_select %p86, %s87, %s88
    %p92 = pneg %p86
    %p93 = scmp.eq.s32.totalorder %s9, 1
    %p94 = por %p92, %p93
    %p95 = scmp.ne.s32.totalorder %s87, %s90
    %p96 = scmp.eq.s32.totalorder %s9, 0
    %p97 = por %p95, %p96
    %p98 = scmp.ne.s32.totalorder %s87, %s90
    %p99 = scmp.eq.s32.totalorder %s14, 1
    %p100 = por %p98, %p99
    %p101 = scmp.ne.s32.totalorder %s90, %s91
    %p102 = scmp.eq.s32.totalorder %s14, 0
    %p103 = por %p101, %p102
    %p104 = scmp.ne.s32.totalorder %s90, %s91
    %p105 = scmp.eq.s32.totalorder %s15, 1
    %p106 = por %p104, %p105
    %p108 = scmp.ne.s32.totalorder %s91, %s107
    %p109 = scmp.eq.s32.totalorder %s15, 0
    %p110 = por %p108, %p109
    %p111 = scmp.le.s32.totalorder 1, %s9
    %p112 = scmp.lt.s32.totalorder %s9, 3
    %p113 = pnand %p111, %p112
    %p114 = pneg %p113
    // Predicated region
    $region9: #{deeplab_forward.12} parent=5 // pred_check
      _
    $region10: #{deeplab_forward.12} parent=5 // pred_check_branch
      %116 = sbr.rel (%p113) target = $region12
    $region11: #{deeplab_forward.12} parent=5 // pred_region
      %s117 = ssub.s32 %s9, 1
      // Predicated region
      $region13: #{deeplab_forward.12} parent=11 // pred_check
        %p118 = pneg %p56
      $region14: #{deeplab_forward.12} parent=11 // pred_check_branch
        %120 = sbr.rel (%p118) target = $region16
      $region15: #{deeplab_forward.12} parent=11 // pred_region
        _
      $region16: #{deeplab_forward.12} parent=11 // pred_fallthru
        _
      // Predicated region
      $region17: #{deeplab_forward.12} parent=11 // pred_check
        %p121 = pneg %p77
      $region18: #{deeplab_forward.12} parent=11 // pred_check_branch
        %123 = sbr.rel (%p121) target = $region20
      $region19: #{deeplab_forward.12} parent=11 // pred_region
        _
      $region20: #{deeplab_forward.12} parent=11 // pred_fallthru
        _
    $region12: #{deeplab_forward.12} parent=5 // pred_fallthru
      _
    %p124 = scmp.lt.s32.totalorder %s9, 2
    // Predicated region
    $region21: #{deeplab_forward.12} parent=5 // pred_check
      %p125 = pneg %p124
    $region22: #{deeplab_forward.12} parent=5 // pred_check_branch
      %127 = sbr.rel (%p125) target = $region24
    $region23: #{deeplab_forward.12} parent=5 // pred_region
      // Predicated region
      $region25: #{deeplab_forward.12} parent=23 // pred_check
        %p128 = pneg %p29
      $region26: #{deeplab_forward.12} parent=23 // pred_check_branch
        %130 = sbr.rel (%p128) target = $region28
      $region27: #{deeplab_forward.12} parent=23 // pred_region
        %s131 = smul.u32 8, %s9
        %p132 = scmp.lt.s32.totalorder %s131, 15
        %s133 = scalar_select %p132, %s131, 15
        %s134 = smul.addr %s133, 3
        %s135 = smul.addr %s134, 4
        %s136 = scalar_lea.vmem %s0, %s135
        %s137 = smul.u32 8, %s9
      $region28: #{deeplab_forward.12} parent=23 // pred_fallthru
        _
    $region24: #{deeplab_forward.12} parent=5 // pred_fallthru
      _
    %p138 = scmp.le.s32.totalorder 1, %s9
    %p139 = scmp.lt.s32.totalorder %s9, 3
    %p140 = pnand %p138, %p139
    %p141 = pneg %p140
    // Predicated region
    $region29: #{deeplab_forward.12} parent=5 // pred_check
      _
    $region30: #{deeplab_forward.12} parent=5 // pred_check_branch
      %143 = sbr.rel (%p140) target = $region32
    $region31: #{deeplab_forward.12} parent=5 // pred_region
      %s144 = ssub.s32 %s9, 1
      %s145 = smul.u32 8, %s14
      %p146 = scmp.lt.s32.totalorder %s145, 15
      %s147 = scalar_select %p146, %s145, 15
      %s148 = smul.addr %s147, 3
      %s149 = smul.addr %s148, 4
      %s150 = scalar_lea.vmem %s0, %s149
      %p151 = pneg %p35
      %p152 = pneg %p32
      %p153 = pneg %p56
      %p154 = pneg %p53
      %p155 = pneg %p77
      %p156 = pneg %p74
      %p157 = pneg %p103
      %p158 = pneg %p100
      %s159 = smul.u32 8, %s14
      %p160 = scmp.lt.s32.totalorder %s159, 15
      %s161 = scalar_select %p160, %s159, 15
      %s162 = smul.addr %s161, 4
      %s163 = scalar_lea.vmem %s3, %s162
      %s164 = smul.u32 8, %s14
      %p165 = scmp.lt.s32.totalorder %s164, 15
      %s166 = scalar_select %p165, %s164, 15
      %s167 = smul.addr %s166, 3
      %s168 = smul.addr %s167, 4
      %s169 = scalar_lea.vmem %s0, %s168
      %s170 = smul.u32 8, %s14
      %s171 = smul.u32 8, %s14
      %p172 = scmp.lt.s32.totalorder %s171, 15
      %s173 = scalar_select %p172, %s171, 15
      %s174 = smul.addr %s173, 4
      %s175 = scalar_lea.vmem %s3, %s174
      %s176 = smul.u32 8, %s14
      %v178 = vld [vmem:[%s169] sm:$0xff]
      %v179 = vld [vmem:[%s169 + $0x8] sm:$0xf]
      %v180 = vld [vmem:[%s169 + $0xc] sm:$0xff]
      %v181 = vld [vmem:[%s169 + $0x14] sm:$0xf]
      %v182 = vld [vmem:[%s169 + $0x18] sm:$0xff]
      %v183 = vld [vmem:[%s169 + $0x20] sm:$0xf]
      %v184 = vld [vmem:[%s169 + $0x24] sm:$0xff]
      %v185 = vld [vmem:[%s169 + $0x2c] sm:$0xf]
      %v186 = vld [vmem:[%s169 + $0x30] sm:$0xff]
      %v187 = vld [vmem:[%s169 + $0x38] sm:$0xf]
      %v188 = vld [vmem:[%s169 + $0x3c] sm:$0xff]
      %v189 = vld [vmem:[%s169 + $0x44] sm:$0xf]
      %v190 = vld [vmem:[%s169 + $0x48] sm:$0xff]
      %v191 = vld [vmem:[%s169 + $0x50] sm:$0xf]
      %v192 = vld [vmem:[%s169 + $0x54] sm:$0xff]
      %v193 = vld [vmem:[%s169 + $0x5c] sm:$0xf]
      %v194 = vld [vmem:[%s1] sm:$0xf]
      %v195 = vld [vmem:[%s1 + $0x4] sm:$0xf]
      %v196 = vld [vmem:[%s1 + $0x8] sm:$0xf]
      %v197 = vld [vmem:[%s1 + $0xc] sm:$0xf]
      %v198 = vld [vmem:[%s1 + $0x10] sm:$0xf]
      %v199 = vld [vmem:[%s1 + $0x14] sm:$0xf]
      %v200 = vld [vmem:[%s1 + $0x18] sm:$0xf]
      %v201 = vld [vmem:[%s1 + $0x1c] sm:$0xf]
      %v202 = vld [vmem:[%s1 + $0x20] sm:$0xf]
      %v203 = vld [vmem:[%s1 + $0x24] sm:$0xf]
      %v204 = vld [vmem:[%s1 + $0x28] sm:$0xf]
      %v205 = vld [vmem:[%s1 + $0x2c] sm:$0xf]
      %v206 = vld [vmem:[%s1 + $0x30] sm:$0xf]
      %v207 = vld [vmem:[%s1 + $0x34] sm:$0xf]
      %v208 = vld [vmem:[%s1 + $0x38] sm:$0xf]
      %v209 = vld [vmem:[%s1 + $0x3c] sm:$0xf]
      %v210 = vld [vmem:[%s1 + $0x40] sm:$0xf]
      %v211 = vld [vmem:[%s1 + $0x44] sm:$0xf]
      %v212 = vld [vmem:[%s1 + $0x48] sm:$0xf]
      %v213 = vld [vmem:[%s1 + $0x4c] sm:$0xf]
      %v214 = vld [vmem:[%s1 + $0x50] sm:$0xf]
      %v215 = vld [vmem:[%s1 + $0x54] sm:$0xf]
      %v216 = vld [vmem:[%s1 + $0x58] sm:$0xf]
      %v217 = vld [vmem:[%s1 + $0x5c] sm:$0xf]
      %v218 = vld [vmem:[%s1 + $0x60] sm:$0xf]
      %v219 = vld [vmem:[%s1 + $0x64] sm:$0xf]
      %v220 = vld [vmem:[%s1 + $0x68] sm:$0xf]
      %v221 = vld [vmem:[%s1 + $0x6c] sm:$0xf]
      %v222 = vld [vmem:[%s1 + $0x70] sm:$0xf]
      %v223 = vld [vmem:[%s1 + $0x74] sm:$0xf]
      %v224 = vld [vmem:[%s1 + $0x78] sm:$0xf]
      %v225 = vld [vmem:[%s1 + $0x7c] sm:$0xf]
      %v226 = vld [vmem:[%s1 + $0x80] sm:$0xf]
      %v227 = vld [vmem:[%s1 + $0x84] sm:$0xf]
      %v228 = vld [vmem:[%s1 + $0x88] sm:$0xf]
      %v229 = vld [vmem:[%s1 + $0x8c] sm:$0xf]
      %v246 = vunpack.c.l.b16 %v178
      %v247 = vunpack.c.h.b16 %v178
      %v248 = vunpack.c.l.b16 %v179
      %v249 = vunpack.c.l.b16 %v180
      %v250 = vunpack.c.h.b16 %v180
      %v251 = vunpack.c.l.b16 %v181
      %v252 = vunpack.c.l.b16 %v182
      %v253 = vunpack.c.h.b16 %v182
      %v254 = vunpack.c.l.b16 %v183
      %v255 = vunpack.c.l.b16 %v184
      %v256 = vunpack.c.h.b16 %v184
      %v257 = vunpack.c.l.b16 %v185
      %v258 = vunpack.c.l.b16 %v186
      %v259 = vunpack.c.h.b16 %v186
      %v260 = vunpack.c.l.b16 %v187
      %v261 = vunpack.c.l.b16 %v188
      %v262 = vunpack.c.h.b16 %v188
      %v263 = vunpack.c.l.b16 %v189
      %v264 = vunpack.c.l.b16 %v190
      %v265 = vunpack.c.h.b16 %v190
      %v266 = vunpack.c.l.b16 %v191
      %v267 = vunpack.c.l.b16 %v192
      %v268 = vunpack.c.h.b16 %v192
      %v269 = vunpack.c.l.b16 %v193
      %v270 = vpack.c.b16 %v249, %v246
      %v271 = vpack.c.b16 %v250, %v247
      %v272 = vpack.c.b16 %v251, %v248
      %v273 = vpack.c.b16 %v255, %v252
      %v274 = vpack.c.b16 %v256, %v253
      %v275 = vpack.c.b16 %v257, %v254
      %v276 = vpack.c.b16 %v261, %v258
      %v277 = vpack.c.b16 %v262, %v259
      %v278 = vpack.c.b16 %v263, %v260
      %v279 = vpack.c.b16 %v267, %v264
      %v280 = vpack.c.b16 %v268, %v265
      %v281 = vpack.c.b16 %v269, %v266
      %v326 = vunpack.c.l.b16 %v194
      %v327 = vunpack.c.l.b16 %v195
      %v328 = vunpack.c.l.b16 %v196
      %v329 = vunpack.c.l.b16 %v197
      %v330 = vunpack.c.l.b16 %v198
      %v331 = vunpack.c.l.b16 %v199
      %v332 = vunpack.c.l.b16 %v200
      %v333 = vunpack.c.l.b16 %v201
      %v334 = vunpack.c.l.b16 %v202
      %v335 = vunpack.c.l.b16 %v203
      %v336 = vunpack.c.l.b16 %v204
      %v337 = vunpack.c.l.b16 %v205
      %v338 = vunpack.c.l.b16 %v206
      %v339 = vunpack.c.l.b16 %v207
      %v340 = vunpack.c.l.b16 %v208
      %v341 = vunpack.c.l.b16 %v209
      %v342 = vunpack.c.l.b16 %v210
      %v343 = vunpack.c.l.b16 %v211
      %v344 = vunpack.c.l.b16 %v212
      %v345 = vunpack.c.l.b16 %v213
      %v346 = vunpack.c.l.b16 %v214
      %v347 = vunpack.c.l.b16 %v215
      %v348 = vunpack.c.l.b16 %v216
      %v349 = vunpack.c.l.b16 %v217
      %v350 = vunpack.c.l.b16 %v218
      %v351 = vunpack.c.l.b16 %v219
      %v352 = vunpack.c.l.b16 %v220
      %v353 = vunpack.c.l.b16 %v221
      %v354 = vunpack.c.l.b16 %v222
      %v355 = vunpack.c.l.b16 %v223
      %v356 = vunpack.c.l.b16 %v224
      %v357 = vunpack.c.l.b16 %v225
      %v358 = vunpack.c.l.b16 %v226
      %v359 = vunpack.c.l.b16 %v227
      %v360 = vunpack.c.l.b16 %v228
      %v361 = vunpack.c.l.b16 %v229
      %v362 = vpack.c.b16 %v327, %v326
      %v363 = vpack.c.b16 %v329, %v328
      %v364 = vpack.c.b16 %v331, %v330
      %v365 = vpack.c.b16 %v333, %v332
      %v366 = vpack.c.b16 %v335, %v334
      %v367 = vpack.c.b16 %v337, %v336
      %v368 = vpack.c.b16 %v339, %v338
      %v369 = vpack.c.b16 %v341, %v340
      %v370 = vpack.c.b16 %v343, %v342
      %v371 = vpack.c.b16 %v345, %v344
      %v372 = vpack.c.b16 %v347, %v346
      %v373 = vpack.c.b16 %v349, %v348
      %v374 = vpack.c.b16 %v351, %v350
      %v375 = vpack.c.b16 %v353, %v352
      %v376 = vpack.c.b16 %v355, %v354
      %v377 = vpack.c.b16 %v357, %v356
      %v378 = vpack.c.b16 %v359, %v358
      %v379 = vpack.c.b16 %v361, %v360
      %vm398 = vcmask 261120
      %v400 = vsel %vm398, %v272, 0
      %v403 = vsel %vm398, %v275, 0
      %v406 = vsel %vm398, %v278, 0
      %v409 = vsel %vm398, %v281, 0
      %411 = vmatprep.subr.bf16.mxu0 0
      %412 = vmatpush1.bf16.msra.mxu0 %v362
      %413 = vmatprep.subr.bf16.mxu0 0
      %414 = vmatpush1.bf16.msra.mxu0 %v363
      %415 = vmatprep.subr.bf16.mxu0 0
      %416 = vmatpush1.bf16.msra.mxu0 %v364
      %417 = vmatprep.subr.bf16.mxu0 0
      %418 = vmatpush1.bf16.msra.mxu0 %v365
      %419 = vmatprep.subr.bf16.mxu0 0
      %420 = vmatpush1.bf16.msra.mxu0 %v366
      %421 = vmatprep.subr.bf16.mxu0 0
      %422 = vmatpush1.bf16.msra.mxu0 %v367
      %423 = vmatprep.subr.bf16.mxu0 0
      %424 = vmatpush1.bf16.msra.mxu0 %v368
      %425 = vmatprep.subr.bf16.mxu0 0
      %426 = vmatpush1.bf16.msra.mxu0 %v369
      %427 = vmatprep.subr.bf16.mxu0 0
      %428 = vmatpush1.bf16.msra.mxu0 %v370
      %429 = vmatprep.subr.bf16.mxu0 0
      %430 = vmatpush1.bf16.msra.mxu0 %v371
      %431 = vmatprep.subr.bf16.mxu0 0
      %432 = vmatpush1.bf16.msra.mxu0 %v372
      %433 = vmatprep.subr.bf16.mxu0 0
      %434 = vmatpush1.bf16.msra.mxu0 %v373
      %435 = vmatprep.subr.bf16.mxu0 0
      %436 = vmatpush1.bf16.msra.mxu0 %v374
      %437 = vmatprep.subr.bf16.mxu0 0
      %438 = vmatpush1.bf16.msra.mxu0 %v375
      %439 = vmatprep.subr.bf16.mxu0 0
      %440 = vmatpush1.bf16.msra.mxu0 %v376
      %441 = vmatprep.subr.bf16.mxu0 0
      %442 = vmatpush1.bf16.msra.mxu0 %v377
      %443 = vmatprep.mubr.bf16.mxu0 %v271
      %444 = vmatmul.mubr.bf16.gmra.mrb[0].mxu0 %v270
      %v445 = vpop.f32.mrb[0].mxu0
      %v446 = vadd.f32 0.0, %v445
      %v447 = vpop.f32.mrb[0].mxu0
      %v448 = vpop.f32.mrb[0].mxu0
      %v449 = vadd.f32 0.0, %v448
      %v450 = vpop.f32.mrb[0].mxu0
      %451 = vmatprep.mubr.bf16.mxu0 %v274
      %452 = vmatmul.mubr.bf16.gmra.mrb[0].mxu0 %v273
      %v453 = vpop.f32.mrb[0].mxu0
      %v454 = vadd.f32 0.0, %v453
      %v455 = vpop.f32.mrb[0].mxu0
      %v456 = vpop.f32.mrb[0].mxu0
      %v457 = vadd.f32 0.0, %v456
      %v458 = vpop.f32.mrb[0].mxu0
      %459 = vmatprep.mubr.bf16.mxu0 %v277
      %460 = vmatmul.mubr.bf16.gmra.mrb[0].mxu0 %v276
      %v461 = vpop.f32.mrb[0].mxu0
      %v462 = vadd.f32 0.0, %v461
      %v463 = vpop.f32.mrb[0].mxu0
      %v464 = vpop.f32.mrb[0].mxu0
      %v465 = vadd.f32 0.0, %v464
      %v466 = vpop.f32.mrb[0].mxu0
      %467 = vmatprep.mubr.bf16.mxu0 %v280
      %468 = vmatmul.mubr.bf16.gmra.mrb[0].mxu0 %v279
      %v469 = vpop.f32.mrb[0].mxu0
      %v470 = vadd.f32 0.0, %v469
      %v471 = vpop.f32.mrb[0].mxu0
      %v472 = vpop.f32.mrb[0].mxu0
      %v473 = vadd.f32 0.0, %v472
      %v474 = vpop.f32.mrb[0].mxu0
      %475 = vdwg.mxu0
      %476 = vmatprep.subr.bf16.mxu0 0
      %477 = vmatpush1.bf16.msra.mxu0 %v378
      %478 = vmatprep.subr.bf16.mxu0 0
      %479 = vmatpush1.bf16.msra.mxu0 %v379
      %480 = vmatprep.subr.bf16.mxu0 0
      %481 = vmatpush1.bf16.msra.mxu0 0
      %482 = vmatprep.subr.bf16.mxu0 0
      %483 = vmatpush1.bf16.msra.mxu0 0
      %484 = vmatprep.subr.bf16.mxu0 0
      %485 = vmatpush1.bf16.msra.mxu0 0
      %486 = vmatprep.subr.bf16.mxu0 0
      %487 = vmatpush1.bf16.msra.mxu0 0
      %488 = vmatprep.subr.bf16.mxu0 0
      %489 = vmatpush1.bf16.msra.mxu0 0
      %490 = vmatprep.subr.bf16.mxu0 0
      %491 = vmatpush1.bf16.msra.mxu0 0
      %492 = vmatprep.subr.bf16.mxu0 0
      %493 = vmatpush1.bf16.msra.mxu0 0
      %494 = vmatprep.subr.bf16.mxu0 0
      %495 = vmatpush1.bf16.msra.mxu0 0
      %496 = vmatprep.subr.bf16.mxu0 0
      %497 = vmatpush1.bf16.msra.mxu0 0
      %498 = vmatprep.subr.bf16.mxu0 0
      %499 = vmatpush1.bf16.msra.mxu0 0
      %500 = vmatprep.subr.bf16.mxu0 0
      %501 = vmatpush1.bf16.msra.mxu0 0
      %502 = vmatprep.subr.bf16.mxu0 0
      %503 = vmatpush1.bf16.msra.mxu0 0
      %504 = vmatprep.subr.bf16.mxu0 0
      %505 = vmatpush1.bf16.msra.mxu0 0
      %506 = vmatprep.subr.bf16.mxu0 0
      %507 = vmatpush1.bf16.msra.mxu0 0
      %508 = vmatprep.mubr.bf16.mxu0 0
      %509 = vmatmul.mubr.bf16.gmra.mrb[0].mxu0 %v400
      %v510 = vpop.f32.mrb[0].mxu0
      %v511 = vadd.f32 %v446, %v510
      %v512 = vpop.f32.mrb[0].mxu0
      %v513 = vpop.f32.mrb[0].mxu0
      %v514 = vadd.f32 %v449, %v513
      %v515 = vpop.f32.mrb[0].mxu0
      %516 = vmatprep.mubr.bf16.mxu0 0
      %517 = vmatmul.mubr.bf16.gmra.mrb[0].mxu0 %v403
      %v518 = vpop.f32.mrb[0].mxu0
      %v519 = vadd.f32 %v454, %v518
      %v520 = vpop.f32.mrb[0].mxu0
      %v521 = vpop.f32.mrb[0].mxu0
      %v522 = vadd.f32 %v457, %v521
      %v523 = vpop.f32.mrb[0].mxu0
      %524 = vmatprep.mubr.bf16.mxu0 0
      %525 = vmatmul.mubr.bf16.gmra.mrb[0].mxu0 %v406
      %v526 = vpop.f32.mrb[0].mxu0
      %v527 = vadd.f32 %v462, %v526
      %v528 = vpop.f32.mrb[0].mxu0
      %v529 = vpop.f32.mrb[0].mxu0
      %v530 = vadd.f32 %v465, %v529
      %v531 = vpop.f32.mrb[0].mxu0
      %532 = vmatprep.mubr.bf16.mxu0 0
      %533 = vmatmul.mubr.bf16.gmra.mrb[0].mxu0 %v409
      %v534 = vpop.f32.mrb[0].mxu0
      %v535 = vadd.f32 %v470, %v534
      %v536 = vpop.f32.mrb[0].mxu0
      %v537 = vpop.f32.mrb[0].mxu0
      %v538 = vadd.f32 %v473, %v537
      %v539 = vpop.f32.mrb[0].mxu0
      %540 = vdwg.mxu0
      %v541 = vld [vmem:[%s2] sm:$0x1]
      %v542 = vlaneseq
      %v543 = vshrl.u32 %v542, 7
      %v544 = vsub.s32 0, %v543
      %v545 = vrot.slane %v541, %v544
      %v546 = vmul.f32 %v511, %v545
      %v547 = vmul.f32 %v514, %v545
      %v548 = vmul.f32 %v519, %v545
      %v549 = vmul.f32 %v522, %v545
      %v550 = vmul.f32 %v527, %v545
      %v551 = vmul.f32 %v530, %v545
      %v552 = vmul.f32 %v535, %v545
      %v553 = vmul.f32 %v538, %v545
      %v554 = vld [vmem:[%s2 + $0x1] sm:$0x1]
      %v555 = vlaneseq
      %v556 = vshrl.u32 %v555, 7
      %v557 = vsub.s32 0, %v556
      %v558 = vrot.slane %v554, %v557
      %v559 = vadd.f32 %v546, %v558
      %v560 = vadd.f32 %v547, %v558
      %v561 = vadd.f32 %v548, %v558
      %v562 = vadd.f32 %v549, %v558
      %v563 = vadd.f32 %v550, %v558
      %v564 = vadd.f32 %v551, %v558
      %v565 = vadd.f32 %v552, %v558
      %v566 = vadd.f32 %v553, %v558
      %v567 = vmax.f32 %v559, 0.0
      %v568 = vmax.f32 %v560, 0.0
      %v569 = vmax.f32 %v561, 0.0
      %v570 = vmax.f32 %v562, 0.0
      %v571 = vmax.f32 %v563, 0.0
      %v572 = vmax.f32 %v564, 0.0
      %v573 = vmax.f32 %v565, 0.0
      %v574 = vmax.f32 %v566, 0.0
      %v575 = vpack.c.bf16 %v568, %v567
      %v576 = vpack.c.bf16 %v570, %v569
      %v577 = vpack.c.bf16 %v572, %v571
      %v578 = vpack.c.bf16 %v574, %v573
      %v583 = vunpack.c.l.b16 %v575
      %v584 = vunpack.c.h.b16 %v575
      %v585 = vunpack.c.l.b16 %v576
      %v586 = vunpack.c.h.b16 %v576
      %v587 = vunpack.c.l.b16 %v577
      %v588 = vunpack.c.h.b16 %v577
      %v589 = vunpack.c.l.b16 %v578
      %v590 = vunpack.c.h.b16 %v578
      %v591 = vpack.c.b16 %v583, %v583
      %v592 = vpack.c.b16 %v584, %v584
      %v593 = vpack.c.b16 %v585, %v585
      %v594 = vpack.c.b16 %v586, %v586
      %v595 = vpack.c.b16 %v587, %v587
      %v596 = vpack.c.b16 %v588, %v588
      %v597 = vpack.c.b16 %v589, %v589
      %v598 = vpack.c.b16 %v590, %v590
      %vm607 = vcmask 257024
      %608 = vst.msk [vmem:[%s175] sm:$0xf] %vm607, %v591
      %609 = vst.msk [vmem:[%s175 + $0x4] sm:$0xf] %vm607, %v592
      %610 = vst.msk [vmem:[%s175 + $0x8] sm:$0xf] %vm607, %v593
      %611 = vst.msk [vmem:[%s175 + $0xc] sm:$0xf] %vm607, %v594
      %612 = vst.msk [vmem:[%s175 + $0x10] sm:$0xf] %vm607, %v595
      %613 = vst.msk [vmem:[%s175 + $0x14] sm:$0xf] %vm607, %v596
      %614 = vst.msk [vmem:[%s175 + $0x18] sm:$0xf] %vm607, %v597
      %615 = vst.msk [vmem:[%s175 + $0x1c] sm:$0xf] %vm607, %v598
      %s616 = smul.u32 8, %s14
      %p617 = scmp.lt.s32.totalorder %s616, 15
      %s618 = scalar_select %p617, %s616, 15
      %s619 = smul.addr %s618, 4
      %s620 = scalar_lea.vmem %s3, %s619
      // Predicated region
      $region33: #{deeplab_forward.12} parent=31 // pred_check
        %p621 = pneg %p100
      $region34: #{deeplab_forward.12} parent=31 // pred_check_branch
        %623 = sbr.rel (%p621) target = $region36
      $region35: #{deeplab_forward.12} parent=31 // pred_region
        %s624 = smul.u32 8, %s14
      $region36: #{deeplab_forward.12} parent=31 // pred_fallthru
        _
    $region32: #{deeplab_forward.12} parent=5 // pred_fallthru
      _
    %p625 = scmp.le.s32.totalorder 2, %s9
    // Predicated region
    $region37: #{deeplab_forward.12} parent=5 // pred_check
      %p626 = pneg %p625
    $region38: #{deeplab_forward.12} parent=5 // pred_check_branch
      %628 = sbr.rel (%p626) target = $region40
    $region39: #{deeplab_forward.12} parent=5 // pred_region
      %s629 = ssub.s32 %s9, 2
      // Predicated region
      $region41: #{deeplab_forward.12} parent=39 // pred_check
        %p630 = pneg %p106
      $region42: #{deeplab_forward.12} parent=39 // pred_check_branch
        %632 = sbr.rel (%p630) target = $region44
      $region43: #{deeplab_forward.12} parent=39 // pred_region
        %s633 = smul.u32 8, %s15
        %p634 = scmp.lt.s32.totalorder %s633, 15
        %s635 = scalar_select %p634, %s633, 15
        %s636 = smul.addr %s635, 4
        %s637 = scalar_lea.vmem %s3, %s636
      $region44: #{deeplab_forward.12} parent=39 // pred_fallthru
        _
    $region40: #{deeplab_forward.12} parent=5 // pred_fallthru
      _
  $region6: #{deeplab_forward.12} parent=0 // loop_footer
    %s13 = sadd.s32 1, %s9
  $region7: #{deeplab_forward.12} parent=0 // loop_footer_branch
    %8 = sbr.rel target = $region3
  $region8: #{deeplab_forward.12} parent=0 // loop_exit
    _

// kernel: deeplab_forward.15
$region0: #{deeplab_forward.15}
  #allocation0 [shape = 'u32[]', space=smem, size = 0x4, offset = 0x4, fixed_abs, tag = 'smem constant byte address 0x4 - core index']
  #allocation1 [shape = 'u32[144,128]{1,0:T(1,128)}', space=vmem, size = 0x12000, scoped, tag = 'internal scratch']
  %s0 = inlined_call_operand.vmem [shape: s32[32], index: 0, kind: input, shape index: {}]
  %s1 = inlined_call_operand.vmem [shape: f32[32], index: 1, kind: input, shape index: {}]
  %s2 = inlined_call_operand.vmem [shape: bf16[2,8,8,42], index: 2, kind: input, shape index: {}]
  %s3 = inlined_call_operand.vmem [shape: f32[32,8], index: 3, kind: input, shape index: {}]
  %s4 = inlined_call_operand.vmem [shape: f32[2,32,32,42], index: 4, kind: output, shape index: {}]
  %s5 = sld [smem:[#allocation0]]
  $region57: #{deeplab_forward.15} parent=0
    _
  %s7 = ssub.s32 1, %s5
  %s8 = scalar_select 0, %s7, %s5
  $region1: #{deeplab_forward.15} parent=0
    #allocation2 [shape = 'u8[512]{0}', space=smem, size = 0x200, scoped, tag = 'input window, operand 0, single buffered']
    #allocation3 [shape = 's32[2]{0}', space=sflag, size = 0x8, scoped, tag = 'scoped memory for deeplab_forward.15']
    #allocation4 [shape = 'u8[512]{0}', space=smem, size = 0x200, scoped, tag = 'input window, operand 1, single buffered']
    #allocation5 [shape = 's32[1]{0}', space=sflag, size = 0x4, scoped, tag = 'scoped memory for deeplab_forward.15']
    %9 = vsyncpa [#allocation3], 0
    %10 = vsyncpa [#allocation5], 0
    loop: start=0, step=1, limit=10
    $region2: #{deeplab_forward.15} parent=1 // loop_pre_header
      _
    $region3: #{deeplab_forward.15} parent=1 // loop_header
      %s12 = sphi 0, %s16
      %p13 = scmp.ge.s32.totalorder %s12, 10
      %s19 = sphi 0, %s31
      %s20 = sphi 0, %s27
      %s21 = sphi 0, %s19
      %s22 = sphi 0, %s20
      %s23 = sphi 0, %s21
      %s24 = sphi 0, %s22
      %s32 = sphi 0, %s32
      %s34 = sphi 0, %s32
      %s35 = sphi 0, %s34
      %s49 = sphi 0, %s35
      %s53 = sphi 0, %s53
      %s55 = sphi 0, %s53
      %s56 = sphi 0, %s55
      %s70 = sphi 0, %s56
      %s76 = sphi 0, %s78
      %s79 = sphi 0, %s76
      %s80 = sphi 0, %s79
      %s96 = sphi 0, %s80
      %s100 = sphi 0, %s100
      %s102 = sphi 0, %s100
      %s103 = sphi 0, %s102
      %s117 = sphi 0, %s103
      %s125 = sphi 0, %s127
      %s128 = sphi 0, %s125
      %s129 = sphi 0, %s128
      %s145 = sphi 0, %s129
    $region4: #{deeplab_forward.15} parent=1 // loop_header_branch
      %15 = sbr.rel (%p13) target = $region8
    $region5: #{deeplab_forward.15} parent=1 // loop_body
      %s17 = ssub.s32 %s12, 1
      %s18 = ssub.s32 %s12, 2
      %s25 = sadd.s32 1, %s20
      %p26 = scmp.ge.s32.totalorder %s25, 4
      %s27 = scalar_select %p26, 0, %s25
      %s28 = sadd.s32 1, %s19
      %s29 = scalar_select %p26, %s28, %s19
      %p30 = scmp.ge.s32.totalorder %s29, 2
      %s31 = scalar_select %p30, 0, %s29
      %s33 = sadd.s32 %s32, 1
      %p36 = scmp.eq.s32.totalorder %s12, 7
      %p37 = scmp.ne.s32.totalorder %s32, %s34
      %p38 = scmp.eq.s32.totalorder %s12, 0
      %p39 = por %p37, %p38
      %p40 = scmp.ne.s32.totalorder %s32, %s34
      %p41 = scmp.eq.s32.totalorder %s17, 7
      %p42 = por %p40, %p41
      %p43 = scmp.ne.s32.totalorder %s34, %s35
      %p44 = scmp.eq.s32.totalorder %s17, 0
      %p45 = por %p43, %p44
      %p46 = scmp.ne.s32.totalorder %s34, %s35
      %p47 = scmp.eq.s32.totalorder %s18, 7
      %p48 = por %p46, %p47
      %p50 = scmp.ne.s32.totalorder %s35, %s49
      %p51 = scmp.eq.s32.totalorder %s18, 0
      %p52 = por %p50, %p51
      %s54 = sadd.s32 %s53, 1
      %p57 = scmp.eq.s32.totalorder %s12, 7
      %p58 = scmp.ne.s32.totalorder %s53, %s55
      %p59 = scmp.eq.s32.totalorder %s12, 0
      %p60 = por %p58, %p59
      %p61 = scmp.ne.s32.totalorder %s53, %s55
      %p62 = scmp.eq.s32.totalorder %s17, 7
      %p63 = por %p61, %p62
      %p64 = scmp.ne.s32.totalorder %s55, %s56
      %p65 = scmp.eq.s32.totalorder %s17, 0
      %p66 = por %p64, %p65
      %p67 = scmp.ne.s32.totalorder %s55, %s56
      %p68 = scmp.eq.s32.totalorder %s18, 7
      %p69 = por %p67, %p68
      %p71 = scmp.ne.s32.totalorder %s56, %s70
      %p72 = scmp.eq.s32.totalorder %s18, 0
      %p73 = por %p71, %p72
      %s74 = ssub.s32 %s19, %s31
      %p75 = scmp.eq.s32.totalorder %s74, 0
      %s77 = sadd.s32 %s76, 1
      %s78 = scalar_select %p75, %s76, %s77
      %p81 = pneg %p75
      %p82 = scmp.eq.s32.totalorder %s12, 7
      %p83 = por %p81, %p82
      %p84 = scmp.ne.s32.totalorder %s76, %s79
      %p85 = scmp.eq.s32.totalorder %s12, 0
      %p86 = por %p84, %p85
      %p87 = scmp.ne.s32.totalorder %s76, %s79
      %p88 = scmp.eq.s32.totalorder %s17, 7
      %p89 = por %p87, %p88
      %p90 = scmp.ne.s32.totalorder %s79, %s80
      %p91 = scmp.eq.s32.totalorder %s17, 0
      %p92 = por %p90, %p91
      %p93 = scmp.ne.s32.totalorder %s79, %s80
      %p94 = scmp.eq.s32.totalorder %s18, 7
      %p95 = por %p93, %p94
      %p97 = scmp.ne.s32.totalorder %s80, %s96
      %p98 = scmp.eq.s32.totalorder %s18, 0
      %p99 = por %p97, %p98
      %s101 = sadd.s32 %s100, 1
      %p104 = scmp.eq.s32.totalorder %s12, 7
      %p105 = scmp.ne.s32.totalorder %s100, %s102
      %p106 = scmp.eq.s32.totalorder %s12, 0
      %p107 = por %p105, %p106
      %p108 = scmp.ne.s32.totalorder %s100, %s102
      %p109 = scmp.eq.s32.totalorder %s17, 7
      %p110 = por %p108, %p109
      %p111 = scmp.ne.s32.totalorder %s102, %s103
      %p112 = scmp.eq.s32.totalorder %s17, 0
      %p113 = por %p111, %p112
      %p114 = scmp.ne.s32.totalorder %s102, %s103
      %p115 = scmp.eq.s32.totalorder %s18, 7
      %p116 = por %p114, %p115
      %p118 = scmp.ne.s32.totalorder %s103, %s117
      %p119 = scmp.eq.s32.totalorder %s18, 0
      %p120 = por %p118, %p119
      %s121 = ssub.s32 %s19, %s31
      %s122 = ssub.s32 %s20, %s27
      %s123 = sor.u32 %s121, %s122
      %p124 = scmp.eq.s32.totalorder %s123, 0
      %s126 = sadd.s32 %s125, 1
      %s127 = scalar_select %p124, %s125, %s126
      %p130 = pneg %p124
      %p131 = scmp.eq.s32.totalorder %s12, 7
      %p132 = por %p130, %p131
      %p133 = scmp.ne.s32.totalorder %s125, %s128
      %p134 = scmp.eq.s32.totalorder %s12, 0
      %p135 = por %p133, %p134
      %p136 = scmp.ne.s32.totalorder %s125, %s128
      %p137 = scmp.eq.s32.totalorder %s17, 7
      %p138 = por %p136, %p137
      %p139 = scmp.ne.s32.totalorder %s128, %s129
      %p140 = scmp.eq.s32.totalorder %s17, 0
      %p141 = por %p139, %p140
      %p142 = scmp.ne.s32.totalorder %s128, %s129
      %p143 = scmp.eq.s32.totalorder %s18, 7
      %p144 = por %p142, %p143
      %p146 = scmp.ne.s32.totalorder %s129, %s145
      %p147 = scmp.eq.s32.totalorder %s18, 0
      %p148 = por %p146, %p147
      %p149 = scmp.le.s32.totalorder 1, %s12
      %p150 = scmp.lt.s32.totalorder %s12, 9
      %p151 = pnand %p149, %p150
      %p152 = pneg %p151
      // Predicated region
      $region9: #{deeplab_forward.15} parent=5 // pred_check
        _
      $region10: #{deeplab_forward.15} parent=5 // pred_check_branch
        %154 = sbr.rel (%p151) target = $region12
      $region11: #{deeplab_forward.15} parent=5 // pred_region
        %s155 = ssub.s32 %s12, 1
        // Predicated region
        $region13: #{deeplab_forward.15} parent=11 // pred_check
          %p156 = pneg %p45
        $region14: #{deeplab_forward.15} parent=11 // pred_check_branch
          %158 = sbr.rel (%p156) target = $region16
        $region15: #{deeplab_forward.15} parent=11 // pred_region
          %s160 = ssub.s32 16, 16
          %161 = vsyncadd [#allocation3], %s160
          %s163 = sshll.u32 %s0, 4
          %s164 = int_to_ptr.vmem [resolvable:$true] %s163
          %166 = dma.vmem_to_smem %s164, 16, [#allocation2], [#allocation3]
        $region16: #{deeplab_forward.15} parent=11 // pred_fallthru
          _
        // Predicated region
        $region17: #{deeplab_forward.15} parent=11 // pred_check
          %p167 = pneg %p66
        $region18: #{deeplab_forward.15} parent=11 // pred_check_branch
          %169 = sbr.rel (%p167) target = $region20
        $region19: #{deeplab_forward.15} parent=11 // pred_region
          %s171 = ssub.s32 16, 16
          %172 = vsyncadd [#allocation5], %s171
          %s174 = sshll.u32 %s1, 4
          %s175 = int_to_ptr.vmem [resolvable:$true] %s174
          %177 = dma.vmem_to_smem %s175, 16, [#allocation4], [#allocation5]
        $region20: #{deeplab_forward.15} parent=11 // pred_fallthru
          _
        // Predicated region
        $region21: #{deeplab_forward.15} parent=11 // pred_check
          %p178 = pneg %p113
        $region22: #{deeplab_forward.15} parent=11 // pred_check_branch
          %180 = sbr.rel (%p178) target = $region24
        $region23: #{deeplab_forward.15} parent=11 // pred_region
          _
        $region24: #{deeplab_forward.15} parent=11 // pred_fallthru
          _
      $region12: #{deeplab_forward.15} parent=5 // pred_fallthru
        _
      %p181 = scmp.lt.s32.totalorder %s12, 8
      // Predicated region
      $region25: #{deeplab_forward.15} parent=5 // pred_check
        %p182 = pneg %p181
      $region26: #{deeplab_forward.15} parent=5 // pred_check_branch
        %184 = sbr.rel (%p182) target = $region28
      $region27: #{deeplab_forward.15} parent=5 // pred_region
        // Predicated region
        $region29: #{deeplab_forward.15} parent=27 // pred_check
          %p185 = pneg %p86
        $region30: #{deeplab_forward.15} parent=27 // pred_check_branch
          %187 = sbr.rel (%p185) target = $region32
        $region31: #{deeplab_forward.15} parent=27 // pred_region
          %p188 = scmp.lt.s32.totalorder %s19, 1
          %s189 = scalar_select %p188, %s19, 1
          %s190 = smul.addr %s189, 8
          %s191 = smul.addr %s190, 4
          %s192 = scalar_lea.vmem %s2, %s191
        $region32: #{deeplab_forward.15} parent=27 // pred_fallthru
          _
      $region28: #{deeplab_forward.15} parent=5 // pred_fallthru
        _
      %p193 = scmp.le.s32.totalorder 1, %s12
      %p194 = scmp.lt.s32.totalorder %s12, 9
      %p195 = pnand %p193, %p194
      %p196 = pneg %p195
      // Predicated region
      $region33: #{deeplab_forward.15} parent=5 // pred_check
        _
      $region34: #{deeplab_forward.15} parent=5 // pred_check_branch
        %198 = sbr.rel (%p195) target = $region36
      $region35: #{deeplab_forward.15} parent=5 // pred_region
        %s199 = ssub.s32 %s12, 1
        // Predicated region
        $region37: #{deeplab_forward.15} parent=35 // pred_check
          %p200 = pneg %p45
        $region38: #{deeplab_forward.15} parent=35 // pred_check_branch
          %202 = sbr.rel (%p200) target = $region40
        $region39: #{deeplab_forward.15} parent=35 // pred_region
          %203 = dma.done [#allocation3], 16
        $region40: #{deeplab_forward.15} parent=35 // pred_fallthru
          _
        // Predicated region
        $region41: #{deeplab_forward.15} parent=35 // pred_check
          %p204 = pneg %p66
        $region42: #{deeplab_forward.15} parent=35 // pred_check_branch
          %206 = sbr.rel (%p204) target = $region44
        $region43: #{deeplab_forward.15} parent=35 // pred_region
          %207 = dma.done [#allocation5], 16
        $region44: #{deeplab_forward.15} parent=35 // pred_fallthru
          _
        %208 = sfence
        %p209 = pneg %p45
        %p210 = pneg %p42
        %p211 = pneg %p66
        %p212 = pneg %p63
        %p213 = scmp.lt.s32.totalorder %s21, 1
        %s214 = scalar_select %p213, %s21, 1
        %s215 = smul.addr %s214, 8
        %s216 = smul.addr %s215, 4
        %s217 = scalar_lea.vmem %s2, %s216
        %p218 = pneg %p92
        %p219 = pneg %p89
        %p220 = pneg %p113
        %p221 = pneg %p110
        %p222 = pneg %p141
        %p223 = pneg %p138
        %s224 = smul.u32 8, %s22
        %p225 = scmp.lt.s32.totalorder %s21, 1
        %s226 = scalar_select %p225, %s21, 1
        %p227 = scmp.lt.s32.totalorder %s224, 31
        %s228 = scalar_select %p227, %s224, 31
        %s229 = smul.addr %s228, 4
        %s230 = smul.addr %s226, 128
        %s231 = sadd.s32 %s229, %s230
        %s232 = smul.addr %s231, 8
        %s233 = scalar_lea.vmem %s4, %s232
        %p234 = scmp.lt.s32.totalorder %s21, 1
        %s235 = scalar_select %p234, %s21, 1
        %s236 = smul.addr %s235, 8
        %s237 = smul.addr %s236, 4
        %s238 = scalar_lea.vmem %s2, %s237
        %s239 = smul.u32 8, %s22
        %p240 = scmp.lt.s32.totalorder %s21, 1
        %s241 = scalar_select %p240, %s21, 1
        %p242 = scmp.lt.s32.totalorder %s239, 31
        %s243 = scalar_select %p242, %s239, 31
        %s244 = smul.addr %s243, 4
        %s245 = smul.addr %s241, 128
        %s246 = sadd.s32 %s244, %s245
        %s247 = smul.addr %s246, 8
        %s248 = scalar_lea.vmem %s4, %s247
        %s249 = smul.u32 8, %s22
        %s250 = smul.u32 %s22, 8
        %v251 = vld [vmem:[%s3] sm:$0xff]
        %v252 = vld [vmem:[%s3 + $0x8] sm:$0xff]
        %v253 = vld [vmem:[%s3 + $0x10] sm:$0xff]
        %v254 = vld [vmem:[%s3 + $0x18] sm:$0xff]
        %s255 = sld [smem:[#allocation2 + %s250]]
        %s256 = sadd.s32 %s255, 1
        %p257 = scmp.lt.s32.totalorder %s256, 7
        %s258 = scalar_select %p257, %s256, 7
        %s259 = sld [smem:[#allocation4 + %s250]]
        %s260 = smul.addr %s255, 4
        %s261 = scalar_lea.vmem %s238, %s260
        %v262 = vld [vmem:[%s261] sm:$0xf]
        %v263 = vunpack.c.l.bf16 %v262
        %s264 = smul.addr %s258, 4
        %s265 = scalar_lea.vmem %s238, %s264
        %v266 = vld [vmem:[%s265] sm:$0xf]
        %v267 = vunpack.c.l.bf16 %v266
        %v268 = vsub.f32 %v267, %v263
        %v269 = vstv %s259
        %v270 = vmul.f32 %v268, %v269
        %v271 = vadd.f32 %v263, %v270
        %vm272 = vcmask 64512
        %v274 = vsel %vm272, %v251, 0
        %v277 = vsel %vm272, %v252, 0
        %v280 = vsel %vm272, %v253, 0
        %v283 = vsel %vm272, %v254, 0
        %285 = vmatprep.subr.mxu0 0.0
        %286 = vmatpush1.msra.mxu0 %v271
        %287 = vmatprep.subr.mxu0 0.0
        %288 = vmatpush1.msra.mxu0 0.0
        %289 = vmatprep.subr.mxu0 0.0
        %290 = vmatpush1.msra.mxu0 0.0
        %291 = vmatprep.subr.mxu0 0.0
        %292 = vmatpush1.msra.mxu0 0.0
        %293 = vmatprep.subr.mxu0 0.0
        %294 = vmatpush1.msra.mxu0 0.0
        %295 = vmatprep.subr.mxu0 0.0
        %296 = vmatpush1.msra.mxu0 0.0
        %297 = vmatprep.subr.mxu0 0.0
        %298 = vmatpush1.msra.mxu0 0.0
        %299 = vmatprep.subr.mxu0 0.0
        %300 = vmatpush1.msra.mxu0 0.0
        %301 = vmatprep.subr.mxu0 0.0
        %302 = vmatpush1.msra.mxu0 0.0
        %303 = vmatprep.subr.mxu0 0.0
        %304 = vmatpush1.msra.mxu0 0.0
        %305 = vmatprep.subr.mxu0 0.0
        %306 = vmatpush1.msra.mxu0 0.0
        %307 = vmatprep.subr.mxu0 0.0
        %308 = vmatpush1.msra.mxu0 0.0
        %309 = vmatprep.subr.mxu0 0.0
        %310 = vmatpush1.msra.mxu0 0.0
        %311 = vmatprep.subr.mxu0 0.0
        %312 = vmatpush1.msra.mxu0 0.0
        %313 = vmatprep.subr.mxu0 0.0
        %314 = vmatpush1.msra.mxu0 0.0
        %315 = vmatprep.subr.mxu0 0.0
        %316 = vmatpush1.msra.mxu0 0.0
        %317 = vmatprep.subr.mxu0 0.0
        %318 = vmatpush1.msra.mxu0 0.0
        %319 = vmatprep.subr.mxu0 0.0
        %320 = vmatpush1.msra.mxu0 0.0
        %321 = vmatprep.subr.mxu0 0.0
        %322 = vmatpush1.msra.mxu0 0.0
        %323 = vmatprep.subr.mxu0 0.0
        %324 = vmatpush1.msra.mxu0 0.0
        %325 = vmatprep.subr.mxu0 0.0
        %326 = vmatpush1.msra.mxu0 0.0
        %327 = vmatprep.subr.mxu0 0.0
        %328 = vmatpush1.msra.mxu0 0.0
        %329 = vmatprep.subr.mxu0 0.0
        %330 = vmatpush1.msra.mxu0 0.0
        %331 = vmatprep.subr.mxu0 0.0
        %332 = vmatpush1.msra.mxu0 0.0
        %333 = vmatprep.subr.mxu0 0.0
        %334 = vmatpush1.msra.mxu0 0.0
        %335 = vmatprep.subr.mxu0 0.0
        %336 = vmatpush1.msra.mxu0 0.0
        %337 = vmatprep.subr.mxu0 0.0
        %338 = vmatpush1.msra.mxu0 0.0
        %339 = vmatprep.subr.mxu0 0.0
        %340 = vmatpush1.msra.mxu0 0.0
        %341 = vmatprep.subr.mxu0 0.0
        %342 = vmatpush1.msra.mxu0 0.0
        %343 = vmatprep.subr.mxu0 0.0
        %344 = vmatpush1.msra.mxu0 0.0
        %345 = vmatprep.subr.mxu0 0.0
        %346 = vmatpush1.msra.mxu0 0.0
        %347 = vmatprep.subr.mxu0 0.0
        %348 = vmatpush1.msra.mxu0 0.0
        %349 = vmatprep.mubr.f32.mxu0 0.0
        %350 = vmatmul.mubr.f32.gmra.mrb[0].mxu0 %v274
        %v351 = vpop.f32.mrb[0].mxu0
        %v352 = vadd.f32 0.0, %v351
        %v353 = vpop.f32.mrb[0].mxu0
        %354 = vmatprep.mubr.f32.mxu0 0.0
        %355 = vmatmul.mubr.f32.gmra.mrb[0].mxu0 %v277
        %v356 = vpop.f32.mrb[0].mxu0
        %v357 = vadd.f32 0.0, %v356
        %v358 = vpop.f32.mrb[0].mxu0
        %359 = vmatprep.mubr.f32.mxu0 0.0
        %360 = vmatmul.mubr.f32.gmra.mrb[0].mxu0 %v280
        %v361 = vpop.f32.mrb[0].mxu0
        %v362 = vadd.f32 0.0, %v361
        %v363 = vpop.f32.mrb[0].mxu0
        %364 = vmatprep.mubr.f32.mxu0 0.0
        %365 = vmatmul.mubr.f32.gmra.mrb[0].mxu0 %v283
        %v366 = vpop.f32.mrb[0].mxu0
        %v367 = vadd.f32 0.0, %v366
        %v368 = vpop.f32.mrb[0].mxu0
        %369 = vdwg.mxu0
        %vm370 = vcmask 343040
        %371 = vst.msk [vmem:[%s248] sm:$0xff] %vm370, %v352
        %372 = vst.msk [vmem:[%s248 + $0x8] sm:$0xff] %vm370, %v357
        %373 = vst.msk [vmem:[%s248 + $0x10] sm:$0xff] %vm370, %v362
        %374 = vst.msk [vmem:[%s248 + $0x18] sm:$0xff] %vm370, %v367
        %s375 = sadd.s32 %s250, 1
        %s376 = sld [smem:[#allocation2 + %s375]]
        %s377 = sadd.s32 %s376, 1
        %p378 = scmp.lt.s32.totalorder %s377, 7
        %s379 = scalar_select %p378, %s377, 7
        %s380 = sld [smem:[#allocation4 + %s375]]
        %s381 = smul.addr %s376, 4
        %s382 = scalar_lea.vmem %s238, %s381
        %v383 = vld [vmem:[%s382] sm:$0xf]
        %v384 = vunpack.c.l.bf16 %v383
        %s385 = smul.addr %s379, 4
        %s386 = scalar_lea.vmem %s238, %s385
        %v387 = vld [vmem:[%s386] sm:$0xf]
        %v388 = vunpack.c.l.bf16 %v387
        %v389 = vsub.f32 %v388, %v384
        %v390 = vstv %s380
        %v391 = vmul.f32 %v389, %v390
        %v392 = vadd.f32 %v384, %v391
        %393 = vmatprep.subr.mxu0 0.0
        %394 = vmatpush1.msra.mxu0 %v392
        %395 = vmatprep.subr.mxu0 0.0
        %396 = vmatpush1.msra.mxu0 0.0
        %397 = vmatprep.subr.mxu0 0.0
        %398 = vmatpush1.msra.mxu0 0.0
        %399 = vmatprep.subr.mxu0 0.0
        %400 = vmatpush1.msra.mxu0 0.0
        %401 = vmatprep.subr.mxu0 0.0
        %402 = vmatpush1.msra.mxu0 0.0
        %403 = vmatprep.subr.mxu0 0.0
        %404 = vmatpush1.msra.mxu0 0.0
        %405 = vmatprep.subr.mxu0 0.0
        %406 = vmatpush1.msra.mxu0 0.0
        %407 = vmatprep.subr.mxu0 0.0
        %408 = vmatpush1.msra.mxu0 0.0
        %409 = vmatprep.subr.mxu0 0.0
        %410 = vmatpush1.msra.mxu0 0.0
        %411 = vmatprep.subr.mxu0 0.0
        %412 = vmatpush1.msra.mxu0 0.0
        %413 = vmatprep.subr.mxu0 0.0
        %414 = vmatpush1.msra.mxu0 0.0
        %415 = vmatprep.subr.mxu0 0.0
        %416 = vmatpush1.msra.mxu0 0.0
        %417 = vmatprep.subr.mxu0 0.0
        %418 = vmatpush1.msra.mxu0 0.0
        %419 = vmatprep.subr.mxu0 0.0
        %420 = vmatpush1.msra.mxu0 0.0
        %421 = vmatprep.subr.mxu0 0.0
        %422 = vmatpush1.msra.mxu0 0.0
        %423 = vmatprep.subr.mxu0 0.0
        %424 = vmatpush1.msra.mxu0 0.0
        %425 = vmatprep.subr.mxu0 0.0
        %426 = vmatpush1.msra.mxu0 0.0
        %427 = vmatprep.subr.mxu0 0.0
        %428 = vmatpush1.msra.mxu0 0.0
        %429 = vmatprep.subr.mxu0 0.0
        %430 = vmatpush1.msra.mxu0 0.0
        %431 = vmatprep.subr.mxu0 0.0
        %432 = vmatpush1.msra.mxu0 0.0
        %433 = vmatprep.subr.mxu0 0.0
        %434 = vmatpush1.msra.mxu0 0.0
        %435 = vmatprep.subr.mxu0 0.0
        %436 = vmatpush1.msra.mxu0 0.0
        %437 = vmatprep.subr.mxu0 0.0
        %438 = vmatpush1.msra.mxu0 0.0
        %439 = vmatprep.subr.mxu0 0.0
        %440 = vmatpush1.msra.mxu0 0.0
        %441 = vmatprep.subr.mxu0 0.0
        %442 = vmatpush1.msra.mxu0 0.0
        %443 = vmatprep.subr.mxu0 0.0
        %444 = vmatpush1.msra.mxu0 0.0
        %445 = vmatprep.subr.mxu0 0.0
        %446 = vmatpush1.msra.mxu0 0.0
        %447 = vmatprep.subr.mxu0 0.0
        %448 = vmatpush1.msra.mxu0 0.0
        %449 = vmatprep.subr.mxu0 0.0
        %450 = vmatpush1.msra.mxu0 0.0
        %451 = vmatprep.subr.mxu0 0.0
        %452 = vmatpush1.msra.mxu0 0.0
        %453 = vmatprep.subr.mxu0 0.0
        %454 = vmatpush1.msra.mxu0 0.0
        %455 = vmatprep.subr.mxu0 0.0
        %456 = vmatpush1.msra.mxu0 0.0
        %457 = vmatprep.mubr.f32.mxu0 0.0
        %458 = vmatmul.mubr.f32.gmra.mrb[0].mxu0 %v274
        %v459 = vpop.f32.mrb[0].mxu0
        %v460 = vadd.f32 0.0, %v459
        %v461 = vpop.f32.mrb[0].mxu0
        %462 = vmatprep.mubr.f32.mxu0 0.0
        %463 = vmatmul.mubr.f32.gmra.mrb[0].mxu0 %v277
        %v464 = vpop.f32.mrb[0].mxu0
        %v465 = vadd.f32 0.0, %v464
        %v466 = vpop.f32.mrb[0].mxu0
        %467 = vmatprep.mubr.f32.mxu0 0.0
        %468 = vmatmul.mubr.f32.gmra.mrb[0].mxu0 %v280
        %v469 = vpop.f32.mrb[0].mxu0
        %v470 = vadd.f32 0.0, %v469
        %v471 = vpop.f32.mrb[0].mxu0
        %472 = vmatprep.mubr.f32.mxu0 0.0
        %473 = vmatmul.mubr.f32.gmra.mrb[0].mxu0 %v283
        %v474 = vpop.f32.mrb[0].mxu0
        %v475 = vadd.f32 0.0, %v474
        %v476 = vpop.f32.mrb[0].mxu0
        %477 = vdwg.mxu0
        %s478 = scalar_lea.vmem %s248, 32
        %479 = vst.msk [vmem:[%s478] sm:$0xff] %vm370, %v460
        %480 = vst.msk [vmem:[%s478 + $0x8] sm:$0xff] %vm370, %v465
        %481 = vst.msk [vmem:[%s478 + $0x10] sm:$0xff] %vm370, %v470
        %482 = vst.msk [vmem:[%s478 + $0x18] sm:$0xff] %vm370, %v475
        %s483 = sadd.s32 %s250, 2
        %s484 = sld [smem:[#allocation2 + %s483]]
        %s485 = sadd.s32 %s484, 1
        %p486 = scmp.lt.s32.totalorder %s485, 7
        %s487 = scalar_select %p486, %s485, 7
        %s488 = sld [smem:[#allocation4 + %s483]]
        %s489 = smul.addr %s484, 4
        %s490 = scalar_lea.vmem %s238, %s489
        %v491 = vld [vmem:[%s490] sm:$0xf]
        %v492 = vunpack.c.l.bf16 %v491
        %s493 = smul.addr %s487, 4
        %s494 = scalar_lea.vmem %s238, %s493
        %v495 = vld [vmem:[%s494] sm:$0xf]
        %v496 = vunpack.c.l.bf16 %v495
        %v497 = vsub.f32 %v496, %v492
        %v498 = vstv %s488
        %v499 = vmul.f32 %v497, %v498
        %v500 = vadd.f32 %v492, %v499
        %501 = vmatprep.subr.mxu0 0.0
        %502 = vmatpush1.msra.mxu0 %v500
        %503 = vmatprep.subr.mxu0 0.0
        %504 = vmatpush1.msra.mxu0 0.0
        %505 = vmatprep.subr.mxu0 0.0
        %506 = vmatpush1.msra.mxu0 0.0
        %507 = vmatprep.subr.mxu0 0.0
        %508 = vmatpush1.msra.mxu0 0.0
        %509 = vmatprep.subr.mxu0 0.0
        %510 = vmatpush1.msra.mxu0 0.0
        %511 = vmatprep.subr.mxu0 0.0
        %512 = vmatpush1.msra.mxu0 0.0
        %513 = vmatprep.subr.mxu0 0.0
        %514 = vmatpush1.msra.mxu0 0.0
        %515 = vmatprep.subr.mxu0 0.0
        %516 = vmatpush1.msra.mxu0 0.0
        %517 = vmatprep.subr.mxu0 0.0
        %518 = vmatpush1.msra.mxu0 0.0
        %519 = vmatprep.subr.mxu0 0.0
        %520 = vmatpush1.msra.mxu0 0.0
        %521 = vmatprep.subr.mxu0 0.0
        %522 = vmatpush1.msra.mxu0 0.0
        %523 = vmatprep.subr.mxu0 0.0
        %524 = vmatpush1.msra.mxu0 0.0
        %525 = vmatprep.subr.mxu0 0.0
        %526 = vmatpush1.msra.mxu0 0.0
        %527 = vmatprep.subr.mxu0 0.0
        %528 = vmatpush1.msra.mxu0 0.0
        %529 = vmatprep.subr.mxu0 0.0
        %530 = vmatpush1.msra.mxu0 0.0
        %531 = vmatprep.subr.mxu0 0.0
        %532 = vmatpush1.msra.mxu0 0.0
        %533 = vmatprep.subr.mxu0 0.0
        %534 = vmatpush1.msra.mxu0 0.0
        %535 = vmatprep.subr.mxu0 0.0
        %536 = vmatpush1.msra.mxu0 0.0
        %537 = vmatprep.subr.mxu0 0.0
        %538 = vmatpush1.msra.mxu0 0.0
        %539 = vmatprep.subr.mxu0 0.0
        %540 = vmatpush1.msra.mxu0 0.0
        %541 = vmatprep.subr.mxu0 0.0
        %542 = vmatpush1.msra.mxu0 0.0
        %543 = vmatprep.subr.mxu0 0.0
        %544 = vmatpush1.msra.mxu0 0.0
        %545 = vmatprep.subr.mxu0 0.0
        %546 = vmatpush1.msra.mxu0 0.0
        %547 = vmatprep.subr.mxu0 0.0
        %548 = vmatpush1.msra.mxu0 0.0
        %549 = vmatprep.subr.mxu0 0.0
        %550 = vmatpush1.msra.mxu0 0.0
        %551 = vmatprep.subr.mxu0 0.0
        %552 = vmatpush1.msra.mxu0 0.0
        %553 = vmatprep.subr.mxu0 0.0
        %554 = vmatpush1.msra.mxu0 0.0
        %555 = vmatprep.subr.mxu0 0.0
        %556 = vmatpush1.msra.mxu0 0.0
        %557 = vmatprep.subr.mxu0 0.0
        %558 = vmatpush1.msra.mxu0 0.0
        %559 = vmatprep.subr.mxu0 0.0
        %560 = vmatpush1.msra.mxu0 0.0
        %561 = vmatprep.subr.mxu0 0.0
        %562 = vmatpush1.msra.mxu0 0.0
        %563 = vmatprep.subr.mxu0 0.0
        %564 = vmatpush1.msra.mxu0 0.0
        %565 = vmatprep.mubr.f32.mxu0 0.0
        %566 = vmatmul.mubr.f32.gmra.mrb[0].mxu0 %v274
        %v567 = vpop.f32.mrb[0].mxu0
        %v568 = vadd.f32 0.0, %v567
        %v569 = vpop.f32.mrb[0].mxu0
        %570 = vmatprep.mubr.f32.mxu0 0.0
        %571 = vmatmul.mubr.f32.gmra.mrb[0].mxu0 %v277
        %v572 = vpop.f32.mrb[0].mxu0
        %v573 = vadd.f32 0.0, %v572
        %v574 = vpop.f32.mrb[0].mxu0
        %575 = vmatprep.mubr.f32.mxu0 0.0
        %576 = vmatmul.mubr.f32.gmra.mrb[0].mxu0 %v280
        %v577 = vpop.f32.mrb[0].mxu0
        %v578 = vadd.f32 0.0, %v577
        %v579 = vpop.f32.mrb[0].mxu0
        %580 = vmatprep.mubr.f32.mxu0 0.0
        %581 = vmatmul.mubr.f32.gmra.mrb[0].mxu0 %v283
        %v582 = vpop.f32.mrb[0].mxu0
        %v583 = vadd.f32 0.0, %v582
        %v584 = vpop.f32.mrb[0].mxu0
        %585 = vdwg.mxu0
        %s586 = scalar_lea.vmem %s248, 64
        %587 = vst.msk [vmem:[%s586] sm:$0xff] %vm370, %v568
        %588 = vst.msk [vmem:[%s586 + $0x8] sm:$0xff] %vm370, %v573
        %589 = vst.msk [vmem:[%s586 + $0x10] sm:$0xff] %vm370, %v578
        %590 = vst.msk [vmem:[%s586 + $0x18] sm:$0xff] %vm370, %v583
        %s591 = sadd.s32 %s250, 3
        %s592 = sld [smem:[#allocation2 + %s591]]
        %s593 = sadd.s32 %s592, 1
        %p594 = scmp.lt.s32.totalorder %s593, 7
        %s595 = scalar_select %p594, %s593, 7
        %s596 = sld [smem:[#allocation4 + %s591]]
        %s597 = smul.addr %s592, 4
        %s598 = scalar_lea.vmem %s238, %s597
        %v599 = vld [vmem:[%s598] sm:$0xf]
        %v600 = vunpack.c.l.bf16 %v599
        %s601 = smul.addr %s595, 4
        %s602 = scalar_lea.vmem %s238, %s601
        %v603 = vld [vmem:[%s602] sm:$0xf]
        %v604 = vunpack.c.l.bf16 %v603
        %v605 = vsub.f32 %v604, %v600
        %v606 = vstv %s596
        %v607 = vmul.f32 %v605, %v606
        %v608 = vadd.f32 %v600, %v607
        %609 = vmatprep.subr.mxu0 0.0
        %610 = vmatpush1.msra.mxu0 %v608
        %611 = vmatprep.subr.mxu0 0.0
        %612 = vmatpush1.msra.mxu0 0.0
        %613 = vmatprep.subr.mxu0 0.0
        %614 = vmatpush1.msra.mxu0 0.0
        %615 = vmatprep.subr.mxu0 0.0
        %616 = vmatpush1.msra.mxu0 0.0
        %617 = vmatprep.subr.mxu0 0.0
        %618 = vmatpush1.msra.mxu0 0.0
        %619 = vmatprep.subr.mxu0 0.0
        %620 = vmatpush1.msra.mxu0 0.0
        %621 = vmatprep.subr.mxu0 0.0
        %622 = vmatpush1.msra.mxu0 0.0
        %623 = vmatprep.subr.mxu0 0.0
        %624 = vmatpush1.msra.mxu0 0.0
        %625 = vmatprep.subr.mxu0 0.0
        %626 = vmatpush1.msra.mxu0 0.0
        %627 = vmatprep.subr.mxu0 0.0
        %628 = vmatpush1.msra.mxu0 0.0
        %629 = vmatprep.subr.mxu0 0.0
        %630 = vmatpush1.msra.mxu0 0.0
        %631 = vmatprep.subr.mxu0 0.0
        %632 = vmatpush1.msra.mxu0 0.0
        %633 = vmatprep.subr.mxu0 0.0
        %634 = vmatpush1.msra.mxu0 0.0
        %635 = vmatprep.subr.mxu0 0.0
        %636 = vmatpush1.msra.mxu0 0.0
        %637 = vmatprep.subr.mxu0 0.0
        %638 = vmatpush1.msra.mxu0 0.0
        %639 = vmatprep.subr.mxu0 0.0
        %640 = vmatpush1.msra.mxu0 0.0
        %641 = vmatprep.subr.mxu0 0.0
        %642 = vmatpush1.msra.mxu0 0.0
        %643 = vmatprep.subr.mxu0 0.0
        %644 = vmatpush1.msra.mxu0 0.0
        %645 = vmatprep.subr.mxu0 0.0
        %646 = vmatpush1.msra.mxu0 0.0
        %647 = vmatprep.subr.mxu0 0.0
        %648 = vmatpush1.msra.mxu0 0.0
        %649 = vmatprep.subr.mxu0 0.0
        %650 = vmatpush1.msra.mxu0 0.0
        %651 = vmatprep.subr.mxu0 0.0
        %652 = vmatpush1.msra.mxu0 0.0
        %653 = vmatprep.subr.mxu0 0.0
        %654 = vmatpush1.msra.mxu0 0.0
        %655 = vmatprep.subr.mxu0 0.0
        %656 = vmatpush1.msra.mxu0 0.0
        %657 = vmatprep.subr.mxu0 0.0
        %658 = vmatpush1.msra.mxu0 0.0
        %659 = vmatprep.subr.mxu0 0.0
        %660 = vmatpush1.msra.mxu0 0.0
        %661 = vmatprep.subr.mxu0 0.0
        %662 = vmatpush1.msra.mxu0 0.0
        %663 = vmatprep.subr.mxu0 0.0
        %664 = vmatpush1.msra.mxu0 0.0
        %665 = vmatprep.subr.mxu0 0.0
        %666 = vmatpush1.msra.mxu0 0.0
        %667 = vmatprep.subr.mxu0 0.0
        %668 = vmatpush1.msra.mxu0 0.0
        %669 = vmatprep.subr.mxu0 0.0
        %670 = vmatpush1.msra.mxu0 0.0
        %671 = vmatprep.subr.mxu0 0.0
        %672 = vmatpush1.msra.mxu0 0.0
        %673 = vmatprep.mubr.f32.mxu0 0.0
        %674 = vmatmul.mubr.f32.gmra.mrb[0].mxu0 %v274
        %v675 = vpop.f32.mrb[0].mxu0
        %v676 = vadd.f32 0.0, %v675
        %v677 = vpop.f32.mrb[0].mxu0
        %678 = vmatprep.mubr.f32.mxu0 0.0
        %679 = vmatmul.mubr.f32.gmra.mrb[0].mxu0 %v277
        %v680 = vpop.f32.mrb[0].mxu0
        %v681 = vadd.f32 0.0, %v680
        %v682 = vpop.f32.mrb[0].mxu0
        %683 = vmatprep.mubr.f32.mxu0 0.0
        %684 = vmatmul.mubr.f32.gmra.mrb[0].mxu0 %v280
        %v685 = vpop.f32.mrb[0].mxu0
        %v686 = vadd.f32 0.0, %v685
        %v687 = vpop.f32.mrb[0].mxu0
        %688 = vmatprep.mubr.f32.mxu0 0.0
        %689 = vmatmul.mubr.f32.gmra.mrb[0].mxu0 %v283
        %v690 = vpop.f32.mrb[0].mxu0
        %v691 = vadd.f32 0.0, %v690
        %v692 = vpop.f32.mrb[0].mxu0
        %693 = vdwg.mxu0
        %s694 = scalar_lea.vmem %s248, 96
        %695 = vst.msk [vmem:[%s694] sm:$0xff] %vm370, %v676
        %696 = vst.msk [vmem:[%s694 + $0x8] sm:$0xff] %vm370, %v681
        %697 = vst.msk [vmem:[%s694 + $0x10] sm:$0xff] %vm370, %v686
        %698 = vst.msk [vmem:[%s694 + $0x18] sm:$0xff] %vm370, %v691
        %s699 = sadd.s32 %s250, 4
        %s700 = sld [smem:[#allocation2 + %s699]]
        %s701 = sadd.s32 %s700, 1
        %p702 = scmp.lt.s32.totalorder %s701, 7
        %s703 = scalar_select %p702, %s701, 7
        %s704 = sld [smem:[#allocation4 + %s699]]
        %s705 = smul.addr %s700, 4
        %s706 = scalar_lea.vmem %s238, %s705
        %v707 = vld [vmem:[%s706] sm:$0xf]
        %v708 = vunpack.c.l.bf16 %v707
        %s709 = smul.addr %s703, 4
        %s710 = scalar_lea.vmem %s238, %s709
        %v711 = vld [vmem:[%s710] sm:$0xf]
        %v712 = vunpack.c.l.bf16 %v711
        %v713 = vsub.f32 %v712, %v708
        %v714 = vstv %s704
        %v715 = vmul.f32 %v713, %v714
        %v716 = vadd.f32 %v708, %v715
        %717 = vmatprep.subr.mxu0 0.0
        %718 = vmatpush1.msra.mxu0 %v716
        %719 = vmatprep.subr.mxu0 0.0
        %720 = vmatpush1.msra.mxu0 0.0
        %721 = vmatprep.subr.mxu0 0.0
        %722 = vmatpush1.msra.mxu0 0.0
        %723 = vmatprep.subr.mxu0 0.0
        %724 = vmatpush1.msra.mxu0 0.0
        %725 = vmatprep.subr.mxu0 0.0
        %726 = vmatpush1.msra.mxu0 0.0
        %727 = vmatprep.subr.mxu0 0.0
        %728 = vmatpush1.msra.mxu0 0.0
        %729 = vmatprep.subr.mxu0 0.0
        %730 = vmatpush1.msra.mxu0 0.0
        %731 = vmatprep.subr.mxu0 0.0
        %732 = vmatpush1.msra.mxu0 0.0
        %733 = vmatprep.subr.mxu0 0.0
        %734 = vmatpush1.msra.mxu0 0.0
        %735 = vmatprep.subr.mxu0 0.0
        %736 = vmatpush1.msra.mxu0 0.0
        %737 = vmatprep.subr.mxu0 0.0
        %738 = vmatpush1.msra.mxu0 0.0
        %739 = vmatprep.subr.mxu0 0.0
        %740 = vmatpush1.msra.mxu0 0.0
        %741 = vmatprep.subr.mxu0 0.0
        %742 = vmatpush1.msra.mxu0 0.0
        %743 = vmatprep.subr.mxu0 0.0
        %744 = vmatpush1.msra.mxu0 0.0
        %745 = vmatprep.subr.mxu0 0.0
        %746 = vmatpush1.msra.mxu0 0.0
        %747 = vmatprep.subr.mxu0 0.0
        %748 = vmatpush1.msra.mxu0 0.0
        %749 = vmatprep.subr.mxu0 0.0
        %750 = vmatpush1.msra.mxu0 0.0
        %751 = vmatprep.subr.mxu0 0.0
        %752 = vmatpush1.msra.mxu0 0.0
        %753 = vmatprep.subr.mxu0 0.0
        %754 = vmatpush1.msra.mxu0 0.0
        %755 = vmatprep.subr.mxu0 0.0
        %756 = vmatpush1.msra.mxu0 0.0
        %757 = vmatprep.subr.mxu0 0.0
        %758 = vmatpush1.msra.mxu0 0.0
        %759 = vmatprep.subr.mxu0 0.0
        %760 = vmatpush1.msra.mxu0 0.0
        %761 = vmatprep.subr.mxu0 0.0
        %762 = vmatpush1.msra.mxu0 0.0
        %763 = vmatprep.subr.mxu0 0.0
        %764 = vmatpush1.msra.mxu0 0.0
        %765 = vmatprep.subr.mxu0 0.0
        %766 = vmatpush1.msra.mxu0 0.0
        %767 = vmatprep.subr.mxu0 0.0
        %768 = vmatpush1.msra.mxu0 0.0
        %769 = vmatprep.subr.mxu0 0.0
        %770 = vmatpush1.msra.mxu0 0.0
        %771 = vmatprep.subr.mxu0 0.0
        %772 = vmatpush1.msra.mxu0 0.0
        %773 = vmatprep.subr.mxu0 0.0
        %774 = vmatpush1.msra.mxu0 0.0
        %775 = vmatprep.subr.mxu0 0.0
        %776 = vmatpush1.msra.mxu0 0.0
        %777 = vmatprep.subr.mxu0 0.0
        %778 = vmatpush1.msra.mxu0 0.0
        %779 = vmatprep.subr.mxu0 0.0
        %780 = vmatpush1.msra.mxu0 0.0
        %781 = vmatprep.mubr.f32.mxu0 0.0
        %782 = vmatmul.mubr.f32.gmra.mrb[0].mxu0 %v274
        %v783 = vpop.f32.mrb[0].mxu0
        %v784 = vadd.f32 0.0, %v783
        %v785 = vpop.f32.mrb[0].mxu0
        %786 = vmatprep.mubr.f32.mxu0 0.0
        %787 = vmatmul.mubr.f32.gmra.mrb[0].mxu0 %v277
        %v788 = vpop.f32.mrb[0].mxu0
        %v789 = vadd.f32 0.0, %v788
        %v790 = vpop.f32.mrb[0].mxu0
        %791 = vmatprep.mubr.f32.mxu0 0.0
        %792 = vmatmul.mubr.f32.gmra.mrb[0].mxu0 %v280
        %v793 = vpop.f32.mrb[0].mxu0
        %v794 = vadd.f32 0.0, %v793
        %v795 = vpop.f32.mrb[0].mxu0
        %796 = vmatprep.mubr.f32.mxu0 0.0
        %797 = vmatmul.mubr.f32.gmra.mrb[0].mxu0 %v283
        %v798 = vpop.f32.mrb[0].mxu0
        %v799 = vadd.f32 0.0, %v798
        %v800 = vpop.f32.mrb[0].mxu0
        %801 = vdwg.mxu0
        %s802 = scalar_lea.vmem %s248, 128
        %803 = vst.msk [vmem:[%s802] sm:$0xff] %vm370, %v784
        %804 = vst.msk [vmem:[%s802 + $0x8] sm:$0xff] %vm370, %v789
        %805 = vst.msk [vmem:[%s802 + $0x10] sm:$0xff] %vm370, %v794
        %806 = vst.msk [vmem:[%s802 + $0x18] sm:$0xff] %vm370, %v799
        %s807 = sadd.s32 %s250, 5
        %s808 = sld [smem:[#allocation2 + %s807]]
        %s809 = sadd.s32 %s808, 1
        %p810 = scmp.lt.s32.totalorder %s809, 7
        %s811 = scalar_select %p810, %s809, 7
        %s812 = sld [smem:[#allocation4 + %s807]]
        %s813 = smul.addr %s808, 4
        %s814 = scalar_lea.vmem %s238, %s813
        %v815 = vld [vmem:[%s814] sm:$0xf]
        %v816 = vunpack.c.l.bf16 %v815
        %s817 = smul.addr %s811, 4
        %s818 = scalar_lea.vmem %s238, %s817
        %v819 = vld [vmem:[%s818] sm:$0xf]
        %v820 = vunpack.c.l.bf16 %v819
        %v821 = vsub.f32 %v820, %v816
        %v822 = vstv %s812
        %v823 = vmul.f32 %v821, %v822
        %v824 = vadd.f32 %v816, %v823
        %825 = vmatprep.subr.mxu0 0.0
        %826 = vmatpush1.msra.mxu0 %v824
        %827 = vmatprep.subr.mxu0 0.0
        %828 = vmatpush1.msra.mxu0 0.0
        %829 = vmatprep.subr.mxu0 0.0
        %830 = vmatpush1.msra.mxu0 0.0
        %831 = vmatprep.subr.mxu0 0.0
        %832 = vmatpush1.msra.mxu0 0.0
        %833 = vmatprep.subr.mxu0 0.0
        %834 = vmatpush1.msra.mxu0 0.0
        %835 = vmatprep.subr.mxu0 0.0
        %836 = vmatpush1.msra.mxu0 0.0
        %837 = vmatprep.subr.mxu0 0.0
        %838 = vmatpush1.msra.mxu0 0.0
        %839 = vmatprep.subr.mxu0 0.0
        %840 = vmatpush1.msra.mxu0 0.0
        %841 = vmatprep.subr.mxu0 0.0
        %842 = vmatpush1.msra.mxu0 0.0
        %843 = vmatprep.subr.mxu0 0.0
        %844 = vmatpush1.msra.mxu0 0.0
        %845 = vmatprep.subr.mxu0 0.0
        %846 = vmatpush1.msra.mxu0 0.0
        %847 = vmatprep.subr.mxu0 0.0
        %848 = vmatpush1.msra.mxu0 0.0
        %849 = vmatprep.subr.mxu0 0.0
        %850 = vmatpush1.msra.mxu0 0.0
        %851 = vmatprep.subr.mxu0 0.0
        %852 = vmatpush1.msra.mxu0 0.0
        %853 = vmatprep.subr.mxu0 0.0
        %854 = vmatpush1.msra.mxu0 0.0
        %855 = vmatprep.subr.mxu0 0.0
        %856 = vmatpush1.msra.mxu0 0.0
        %857 = vmatprep.subr.mxu0 0.0
        %858 = vmatpush1.msra.mxu0 0.0
        %859 = vmatprep.subr.mxu0 0.0
        %860 = vmatpush1.msra.mxu0 0.0
        %861 = vmatprep.subr.mxu0 0.0
        %862 = vmatpush1.msra.mxu0 0.0
        %863 = vmatprep.subr.mxu0 0.0
        %864 = vmatpush1.msra.mxu0 0.0
        %865 = vmatprep.subr.mxu0 0.0
        %866 = vmatpush1.msra.mxu0 0.0
        %867 = vmatprep.subr.mxu0 0.0
        %868 = vmatpush1.msra.mxu0 0.0
        %869 = vmatprep.subr.mxu0 0.0
        %870 = vmatpush1.msra.mxu0 0.0
        %871 = vmatprep.subr.mxu0 0.0
        %872 = vmatpush1.msra.mxu0 0.0
        %873 = vmatprep.subr.mxu0 0.0
        %874 = vmatpush1.msra.mxu0 0.0
        %875 = vmatprep.subr.mxu0 0.0
        %876 = vmatpush1.msra.mxu0 0.0
        %877 = vmatprep.subr.mxu0 0.0
        %878 = vmatpush1.msra.mxu0 0.0
        %879 = vmatprep.subr.mxu0 0.0
        %880 = vmatpush1.msra.mxu0 0.0
        %881 = vmatprep.subr.mxu0 0.0
        %882 = vmatpush1.msra.mxu0 0.0
        %883 = vmatprep.subr.mxu0 0.0
        %884 = vmatpush1.msra.mxu0 0.0
        %885 = vmatprep.subr.mxu0 0.0
        %886 = vmatpush1.msra.mxu0 0.0
        %887 = vmatprep.subr.mxu0 0.0
        %888 = vmatpush1.msra.mxu0 0.0
        %889 = vmatprep.mubr.f32.mxu0 0.0
        %890 = vmatmul.mubr.f32.gmra.mrb[0].mxu0 %v274
        %v891 = vpop.f32.mrb[0].mxu0
        %v892 = vadd.f32 0.0, %v891
        %v893 = vpop.f32.mrb[0].mxu0
        %894 = vmatprep.mubr.f32.mxu0 0.0
        %895 = vmatmul.mubr.f32.gmra.mrb[0].mxu0 %v277
        %v896 = vpop.f32.mrb[0].mxu0
        %v897 = vadd.f32 0.0, %v896
        %v898 = vpop.f32.mrb[0].mxu0
        %899 = vmatprep.mubr.f32.mxu0 0.0
        %900 = vmatmul.mubr.f32.gmra.mrb[0].mxu0 %v280
        %v901 = vpop.f32.mrb[0].mxu0
        %v902 = vadd.f32 0.0, %v901
        %v903 = vpop.f32.mrb[0].mxu0
        %904 = vmatprep.mubr.f32.mxu0 0.0
        %905 = vmatmul.mubr.f32.gmra.mrb[0].mxu0 %v283
        %v906 = vpop.f32.mrb[0].mxu0
        %v907 = vadd.f32 0.0, %v906
        %v908 = vpop.f32.mrb[0].mxu0
        %909 = vdwg.mxu0
        %s910 = scalar_lea.vmem %s248, 160
        %911 = vst.msk [vmem:[%s910] sm:$0xff] %vm370, %v892
        %912 = vst.msk [vmem:[%s910 + $0x8] sm:$0xff] %vm370, %v897
        %913 = vst.msk [vmem:[%s910 + $0x10] sm:$0xff] %vm370, %v902
        %914 = vst.msk [vmem:[%s910 + $0x18] sm:$0xff] %vm370, %v907
        %s915 = sadd.s32 %s250, 6
        %s916 = sld [smem:[#allocation2 + %s915]]
        %s917 = sadd.s32 %s916, 1
        %p918 = scmp.lt.s32.totalorder %s917, 7
        %s919 = scalar_select %p918, %s917, 7
        %s920 = sld [smem:[#allocation4 + %s915]]
        %s921 = smul.addr %s916, 4
        %s922 = scalar_lea.vmem %s238, %s921
        %v923 = vld [vmem:[%s922] sm:$0xf]
        %v924 = vunpack.c.l.bf16 %v923
        %s925 = smul.addr %s919, 4
        %s926 = scalar_lea.vmem %s238, %s925
        %v927 = vld [vmem:[%s926] sm:$0xf]
        %v928 = vunpack.c.l.bf16 %v927
        %v929 = vsub.f32 %v928, %v924
        %v930 = vstv %s920
        %v931 = vmul.f32 %v929, %v930
        %v932 = vadd.f32 %v924, %v931
        %933 = vmatprep.subr.mxu0 0.0
        %934 = vmatpush1.msra.mxu0 %v932
        %935 = vmatprep.subr.mxu0 0.0
        %936 = vmatpush1.msra.mxu0 0.0
        %937 = vmatprep.subr.mxu0 0.0
        %938 = vmatpush1.msra.mxu0 0.0
        %939 = vmatprep.subr.mxu0 0.0
        %940 = vmatpush1.msra.mxu0 0.0
        %941 = vmatprep.subr.mxu0 0.0
        %942 = vmatpush1.msra.mxu0 0.0
        %943 = vmatprep.subr.mxu0 0.0
        %944 = vmatpush1.msra.mxu0 0.0
        %945 = vmatprep.subr.mxu0 0.0
        %946 = vmatpush1.msra.mxu0 0.0
        %947 = vmatprep.subr.mxu0 0.0
        %948 = vmatpush1.msra.mxu0 0.0
        %949 = vmatprep.subr.mxu0 0.0
        %950 = vmatpush1.msra.mxu0 0.0
        %951 = vmatprep.subr.mxu0 0.0
        %952 = vmatpush1.msra.mxu0 0.0
        %953 = vmatprep.subr.mxu0 0.0
        %954 = vmatpush1.msra.mxu0 0.0
        %955 = vmatprep.subr.mxu0 0.0
        %956 = vmatpush1.msra.mxu0 0.0
        %957 = vmatprep.subr.mxu0 0.0
        %958 = vmatpush1.msra.mxu0 0.0
        %959 = vmatprep.subr.mxu0 0.0
        %960 = vmatpush1.msra.mxu0 0.0
        %961 = vmatprep.subr.mxu0 0.0
        %962 = vmatpush1.msra.mxu0 0.0
        %963 = vmatprep.subr.mxu0 0.0
        %964 = vmatpush1.msra.mxu0 0.0
        %965 = vmatprep.subr.mxu0 0.0
        %966 = vmatpush1.msra.mxu0 0.0
        %967 = vmatprep.subr.mxu0 0.0
        %968 = vmatpush1.msra.mxu0 0.0
        %969 = vmatprep.subr.mxu0 0.0
        %970 = vmatpush1.msra.mxu0 0.0
        %971 = vmatprep.subr.mxu0 0.0
        %972 = vmatpush1.msra.mxu0 0.0
        %973 = vmatprep.subr.mxu0 0.0
        %974 = vmatpush1.msra.mxu0 0.0
        %975 = vmatprep.subr.mxu0 0.0
        %976 = vmatpush1.msra.mxu0 0.0
        %977 = vmatprep.subr.mxu0 0.0
        %978 = vmatpush1.msra.mxu0 0.0
        %979 = vmatprep.subr.mxu0 0.0
        %980 = vmatpush1.msra.mxu0 0.0
        %981 = vmatprep.subr.mxu0 0.0
        %982 = vmatpush1.msra.mxu0 0.0
        %983 = vmatprep.subr.mxu0 0.0
        %984 = vmatpush1.msra.mxu0 0.0
        %985 = vmatprep.subr.mxu0 0.0
        %986 = vmatpush1.msra.mxu0 0.0
        %987 = vmatprep.subr.mxu0 0.0
        %988 = vmatpush1.msra.mxu0 0.0
        %989 = vmatprep.subr.mxu0 0.0
        %990 = vmatpush1.msra.mxu0 0.0
        %991 = vmatprep.subr.mxu0 0.0
        %992 = vmatpush1.msra.mxu0 0.0
        %993 = vmatprep.subr.mxu0 0.0
        %994 = vmatpush1.msra.mxu0 0.0
        %995 = vmatprep.subr.mxu0 0.0
        %996 = vmatpush1.msra.mxu0 0.0
        %997 = vmatprep.mubr.f32.mxu0 0.0
        %998 = vmatmul.mubr.f32.gmra.mrb[0].mxu0 %v274
        %v999 = vpop.f32.mrb[0].mxu0
        %v1000 = vadd.f32 0.0, %v999
        %v1001 = vpop.f32.mrb[0].mxu0
        %1002 = vmatprep.mubr.f32.mxu0 0.0
        %1003 = vmatmul.mubr.f32.gmra.mrb[0].mxu0 %v277
        %v1004 = vpop.f32.mrb[0].mxu0
        %v1005 = vadd.f32 0.0, %v1004
        %v1006 = vpop.f32.mrb[0].mxu0
        %1007 = vmatprep.mubr.f32.mxu0 0.0
        %1008 = vmatmul.mubr.f32.gmra.mrb[0].mxu0 %v280
        %v1009 = vpop.f32.mrb[0].mxu0
        %v1010 = vadd.f32 0.0, %v1009
        %v1011 = vpop.f32.mrb[0].mxu0
        %1012 = vmatprep.mubr.f32.mxu0 0.0
        %1013 = vmatmul.mubr.f32.gmra.mrb[0].mxu0 %v283
        %v1014 = vpop.f32.mrb[0].mxu0
        %v1015 = vadd.f32 0.0, %v1014
        %v1016 = vpop.f32.mrb[0].mxu0
        %1017 = vdwg.mxu0
        %s1018 = scalar_lea.vmem %s248, 192
        %1019 = vst.msk [vmem:[%s1018] sm:$0xff] %vm370, %v1000
        %1020 = vst.msk [vmem:[%s1018 + $0x8] sm:$0xff] %vm370, %v1005
        %1021 = vst.msk [vmem:[%s1018 + $0x10] sm:$0xff] %vm370, %v1010
        %1022 = vst.msk [vmem:[%s1018 + $0x18] sm:$0xff] %vm370, %v1015
        %s1023 = sadd.s32 %s250, 7
        %s1024 = sld [smem:[#allocation2 + %s1023]]
        %s1025 = sadd.s32 %s1024, 1
        %p1026 = scmp.lt.s32.totalorder %s1025, 7
        %s1027 = scalar_select %p1026, %s1025, 7
        %s1028 = sld [smem:[#allocation4 + %s1023]]
        %s1029 = smul.addr %s1024, 4
        %s1030 = scalar_lea.vmem %s238, %s1029
        %v1031 = vld [vmem:[%s1030] sm:$0xf]
        %v1032 = vunpack.c.l.bf16 %v1031
        %s1033 = smul.addr %s1027, 4
        %s1034 = scalar_lea.vmem %s238, %s1033
        %v1035 = vld [vmem:[%s1034] sm:$0xf]
        %v1036 = vunpack.c.l.bf16 %v1035
        %v1037 = vsub.f32 %v1036, %v1032
        %v1038 = vstv %s1028
        %v1039 = vmul.f32 %v1037, %v1038
        %v1040 = vadd.f32 %v1032, %v1039
        %1041 = vmatprep.subr.mxu0 0.0
        %1042 = vmatpush1.msra.mxu0 %v1040
        %1043 = vmatprep.subr.mxu0 0.0
        %1044 = vmatpush1.msra.mxu0 0.0
        %1045 = vmatprep.subr.mxu0 0.0
        %1046 = vmatpush1.msra.mxu0 0.0
        %1047 = vmatprep.subr.mxu0 0.0
        %1048 = vmatpush1.msra.mxu0 0.0
        %1049 = vmatprep.subr.mxu0 0.0
        %1050 = vmatpush1.msra.mxu0 0.0
        %1051 = vmatprep.subr.mxu0 0.0
        %1052 = vmatpush1.msra.mxu0 0.0
        %1053 = vmatprep.subr.mxu0 0.0
        %1054 = vmatpush1.msra.mxu0 0.0
        %1055 = vmatprep.subr.mxu0 0.0
        %1056 = vmatpush1.msra.mxu0 0.0
        %1057 = vmatprep.subr.mxu0 0.0
        %1058 = vmatpush1.msra.mxu0 0.0
        %1059 = vmatprep.subr.mxu0 0.0
        %1060 = vmatpush1.msra.mxu0 0.0
        %1061 = vmatprep.subr.mxu0 0.0
        %1062 = vmatpush1.msra.mxu0 0.0
        %1063 = vmatprep.subr.mxu0 0.0
        %1064 = vmatpush1.msra.mxu0 0.0
        %1065 = vmatprep.subr.mxu0 0.0
        %1066 = vmatpush1.msra.mxu0 0.0
        %1067 = vmatprep.subr.mxu0 0.0
        %1068 = vmatpush1.msra.mxu0 0.0
        %1069 = vmatprep.subr.mxu0 0.0
        %1070 = vmatpush1.msra.mxu0 0.0
        %1071 = vmatprep.subr.mxu0 0.0
        %1072 = vmatpush1.msra.mxu0 0.0
        %1073 = vmatprep.subr.mxu0 0.0
        %1074 = vmatpush1.msra.mxu0 0.0
        %1075 = vmatprep.subr.mxu0 0.0
        %1076 = vmatpush1.msra.mxu0 0.0
        %1077 = vmatprep.subr.mxu0 0.0
        %1078 = vmatpush1.msra.mxu0 0.0
        %1079 = vmatprep.subr.mxu0 0.0
        %1080 = vmatpush1.msra.mxu0 0.0
        %1081 = vmatprep.subr.mxu0 0.0
        %1082 = vmatpush1.msra.mxu0 0.0
        %1083 = vmatprep.subr.mxu0 0.0
        %1084 = vmatpush1.msra.mxu0 0.0
        %1085 = vmatprep.subr.mxu0 0.0
        %1086 = vmatpush1.msra.mxu0 0.0
        %1087 = vmatprep.subr.mxu0 0.0
        %1088 = vmatpush1.msra.mxu0 0.0
        %1089 = vmatprep.subr.mxu0 0.0
        %1090 = vmatpush1.msra.mxu0 0.0
        %1091 = vmatprep.subr.mxu0 0.0
        %1092 = vmatpush1.msra.mxu0 0.0
        %1093 = vmatprep.subr.mxu0 0.0
        %1094 = vmatpush1.msra.mxu0 0.0
        %1095 = vmatprep.subr.mxu0 0.0
        %1096 = vmatpush1.msra.mxu0 0.0
        %1097 = vmatprep.subr.mxu0 0.0
        %1098 = vmatpush1.msra.mxu0 0.0
        %1099 = vmatprep.subr.mxu0 0.0
        %1100 = vmatpush1.msra.mxu0 0.0
        %1101 = vmatprep.subr.mxu0 0.0
        %1102 = vmatpush1.msra.mxu0 0.0
        %1103 = vmatprep.subr.mxu0 0.0
        %1104 = vmatpush1.msra.mxu0 0.0
        %1105 = vmatprep.mubr.f32.mxu0 0.0
        %1106 = vmatmul.mubr.f32.gmra.mrb[0].mxu0 %v274
        %v1107 = vpop.f32.mrb[0].mxu0
        %v1108 = vadd.f32 0.0, %v1107
        %v1109 = vpop.f32.mrb[0].mxu0
        %1110 = vmatprep.mubr.f32.mxu0 0.0
        %1111 = vmatmul.mubr.f32.gmra.mrb[0].mxu0 %v277
        %v1112 = vpop.f32.mrb[0].mxu0
        %v1113 = vadd.f32 0.0, %v1112
        %v1114 = vpop.f32.mrb[0].mxu0
        %1115 = vmatprep.mubr.f32.mxu0 0.0
        %1116 = vmatmul.mubr.f32.gmra.mrb[0].mxu0 %v280
        %v1117 = vpop.f32.mrb[0].mxu0
        %v1118 = vadd.f32 0.0, %v1117
        %v1119 = vpop.f32.mrb[0].mxu0
        %1120 = vmatprep.mubr.f32.mxu0 0.0
        %1121 = vmatmul.mubr.f32.gmra.mrb[0].mxu0 %v283
        %v1122 = vpop.f32.mrb[0].mxu0
        %v1123 = vadd.f32 0.0, %v1122
        %v1124 = vpop.f32.mrb[0].mxu0
        %1125 = vdwg.mxu0
        %s1126 = scalar_lea.vmem %s248, 224
        %1127 = vst.msk [vmem:[%s1126] sm:$0xff] %vm370, %v1108
        %1128 = vst.msk [vmem:[%s1126 + $0x8] sm:$0xff] %vm370, %v1113
        %1129 = vst.msk [vmem:[%s1126 + $0x10] sm:$0xff] %vm370, %v1118
        %1130 = vst.msk [vmem:[%s1126 + $0x18] sm:$0xff] %vm370, %v1123
        %s1131 = smul.u32 8, %s22
        %p1132 = scmp.lt.s32.totalorder %s21, 1
        %s1133 = scalar_select %p1132, %s21, 1
        %p1134 = scmp.lt.s32.totalorder %s1131, 31
        %s1135 = scalar_select %p1134, %s1131, 31
        %s1136 = smul.addr %s1135, 4
        %s1137 = smul.addr %s1133, 128
        %s1138 = sadd.s32 %s1136, %s1137
        %s1139 = smul.addr %s1138, 8
        %s1140 = scalar_lea.vmem %s4, %s1139
        // Predicated region
        $region45: #{deeplab_forward.15} parent=35 // pred_check
          %p1141 = pneg %p138
        $region46: #{deeplab_forward.15} parent=35 // pred_check_branch
          %1143 = sbr.rel (%p1141) target = $region48
        $region47: #{deeplab_forward.15} parent=35 // pred_region
          %s1144 = smul.u32 8, %s22
        $region48: #{deeplab_forward.15} parent=35 // pred_fallthru
          _
      $region36: #{deeplab_forward.15} parent=5 // pred_fallthru
        _
      %p1145 = scmp.le.s32.totalorder 2, %s12
      // Predicated region
      $region49: #{deeplab_forward.15} parent=5 // pred_check
        %p1146 = pneg %p1145
      $region50: #{deeplab_forward.15} parent=5 // pred_check_branch
        %1148 = sbr.rel (%p1146) target = $region52
      $region51: #{deeplab_forward.15} parent=5 // pred_region
        %s1149 = ssub.s32 %s12, 2
        // Predicated region
        $region53: #{deeplab_forward.15} parent=51 // pred_check
          %p1150 = pneg %p144
        $region54: #{deeplab_forward.15} parent=51 // pred_check_branch
          %1152 = sbr.rel (%p1150) target = $region56
        $region55: #{deeplab_forward.15} parent=51 // pred_region
          %s1153 = smul.u32 8, %s24
          %p1154 = scmp.lt.s32.totalorder %s23, 1
          %s1155 = scalar_select %p1154, %s23, 1
          %p1156 = scmp.lt.s32.totalorder %s1153, 31
          %s1157 = scalar_select %p1156, %s1153, 31
          %s1158 = smul.addr %s1157, 4
          %s1159 = smul.addr %s1155, 128
          %s1160 = sadd.s32 %s1158, %s1159
          %s1161 = smul.addr %s1160, 8
          %s1162 = scalar_lea.vmem %s4, %s1161
        $region56: #{deeplab_forward.15} parent=51 // pred_fallthru
          _
      $region52: #{deeplab_forward.15} parent=5 // pred_fallthru
        _
    $region6: #{deeplab_forward.15} parent=1 // loop_footer
      %s16 = sadd.s32 1, %s12
    $region7: #{deeplab_forward.15} parent=1 // loop_footer_branch
      %11 = sbr.rel target = $region3
    $region8: #{deeplab_forward.15} parent=1 // loop_exit
      _
    %1163 = vsyncpa [#allocation3], 1
    %s1164 = scalar_lea.sflag [#allocation3], 1
    %1165 = vsyncpa %s1164, 1
    %1166 = vsyncpa [#allocation5], 1

</llo_original>
